<compile_context>
chip_gen: v7x
topology: tpu7x:2x2x1
jax: 0.10.0
libtpu: 0.0.40
codegen_flags: <defaults>
</compile_context>

<pallas_src>
import math
import functools

import jax
import jax.numpy as jnp
from jax.experimental import pallas as pl
from jax.experimental.pallas import tpu as pltpu

BN_EPS = 1e-5


def _round_up(v, m):
    return (v + m - 1) // m * m


# ---------------------------------------------------------------------------
# Pallas kernel: one full bottleneck block for b_tile batch elements
# ---------------------------------------------------------------------------
def _bottleneck_kernel(H, W, B, offsets, pad_rows,
                       x_ref, w1_ref, w2_ref, w3_ref, o_ref,
                       h1pad_ref, im2col_ref):
    """Fused Bottleneck_noResidual forward for B batch elements.

    x_ref      : (B, H*W, Cin)          bf16  NHWC input, spatial flattened
    w1_ref     : (Cin, P)               bf16  1x1 conv weight, BN1 folded
    w2_ref     : (9*P, P)               bf16  3x3 conv weight (dy,dx,cin major->minor), BN2 folded
    w3_ref     : (P, 4P)                bf16  1x1 conv weight, BN3 folded
    o_ref      : (B, H*W, 4P)           bf16  output block (lane-dense)
    h1pad_ref  : (3, B, pad_rows, P)    bf16  3 edge-variants of conv1 output,
                                              vertically zero-padded staging
    im2col_ref : (B*H*W, 9*P)           bf16  im2col matrix for conv2
    """
    HW = H * W
    M = B * HW
    Cin = x_ref.shape[-1]
    P = w1_ref.shape[1]
    C3 = w3_ref.shape[1]

    # ---- conv1 (1x1) + bn1 + relu (BN scale folded into w1) -----------------
    x = x_ref[...].reshape(M, Cin)
    h1 = jnp.dot(x, w1_ref[...], preferred_element_type=jnp.float32)
    h1 = jnp.maximum(h1, 0.0)

    # Column index within each image row; masking is done here, in f32, once —
    # never on the bf16 matmul operands.
    col = jax.lax.broadcasted_iota(jnp.int32, (M, 1), 0) % W
    slabs = (
        jnp.where(col == W - 1, 0.0, h1),   # read at offset -1 (dx = 0 taps)
        h1,                                  # dx = 1 taps
        jnp.where(col == 0, 0.0, h1),        # read at offset +1 (dx = 2 taps)
    )

    # Stage the three variants into vertically zero-padded buffers.  Only the
    # border rows are zeroed (interior is fully overwritten every step).
    for s in range(3):
        off = offsets[s]
        h1pad_ref[s, :, 0:off, :] = jnp.zeros((B, off, P), h1pad_ref.dtype)
        h1pad_ref[s, :, off + HW:pad_rows, :] = jnp.zeros(
            (B, pad_rows - off - HW, P), h1pad_ref.dtype)
        h1pad_ref[s, :, off:off + HW, :] = (
            slabs[s].astype(h1pad_ref.dtype).reshape(B, HW, P))

    # ---- conv2 (3x3, stride 1, pad 1) + bn2 + relu ---------------------------
    # Build im2col (M, 9P) with nine contiguous row-shifted slice copies
    # (dy offsets are 16-row aligned per slab), then ONE K=9P MXU matmul.
    for dy in range(3):
        for dx in range(3):
            start = offsets[dx] + (dy - 1) * W + (dx - 1)
            t = dy * 3 + dx
            im2col_ref[:, t * P:(t + 1) * P] = (
                h1pad_ref[dx, :, start:start + HW, :].reshape(M, P))

    h2 = jnp.dot(im2col_ref[...], w2_ref[...],
                 preferred_element_type=jnp.float32)
    h2 = jnp.maximum(h2, 0.0).astype(jnp.bfloat16)

    # ---- conv3 (1x1) + bn3 + relu --------------------------------------------
    out = jnp.dot(h2, w3_ref[...], preferred_element_type=jnp.float32)
    out = jnp.maximum(out, 0.0)
    o_ref[...] = out.astype(o_ref.dtype).reshape(B, HW, C3)


# ---------------------------------------------------------------------------
# Wrapper
# ---------------------------------------------------------------------------
def _fold_bn(w_oihw, eps=BN_EPS):
    """Fold eval-mode BatchNorm with identity running stats (mean=0, var=1,
    gamma=1, beta=0) into the conv weight: y = conv(x) * 1/sqrt(1+eps)."""
    # TODO(synk): non-identity per-channel gamma/beta/mean/var (real
    # checkpoints) need a per-channel scale folded into the weight plus a bias
    # added in the kernel epilogue; training-mode batch stats are out of scope.
    return w_oihw * (1.0 / math.sqrt(1.0 + eps))


def bottleneck_noresidual_forward(x_nchw, params, *, stride=1, b_tile=1,
                                  out_dtype=jnp.bfloat16):
    """x_nchw: (N, Cin, H, W) f32. params: conv weights in PyTorch OIHW layout."""
    assert stride == 1  # TODO(synk): stride > 1 for conv2 not implemented
                        # (module default is stride=1).
    n, cin, h, w = x_nchw.shape
    assert n % b_tile == 0, "batch must be divisible by b_tile"

    w1 = _fold_bn(params["conv1"])            # (P, Cin, 1, 1)
    w2 = _fold_bn(params["conv2"])            # (P, P, 3, 3)
    w3 = _fold_bn(params["conv3"])            # (4P, P, 1, 1)
    p = w1.shape[0]
    c3 = w3.shape[0]
    hw = h * w

    # NCHW -> NHWC -> (N, H*W, Cin); bf16 operands for the MXU.
    x = jnp.transpose(x_nchw, (0, 2, 3, 1)).reshape(n, hw, cin).astype(jnp.bfloat16)
    w1m = jnp.transpose(w1[:, :, 0, 0], (1, 0)).astype(jnp.bfloat16)             # (Cin, P)
    # (kh, kw, in, out) -> flat K = (dy*3 + dx)*P + cin, matching the im2col order.
    w2m = jnp.transpose(w2, (2, 3, 1, 0)).reshape(9 * p, p).astype(jnp.bfloat16)  # (9P, P)
    w3m = jnp.transpose(w3[:, :, 0, 0], (1, 0)).astype(jnp.bfloat16)             # (P, 4P)

    # Per-slab staging offsets: chosen so the dy tap reads are 16-row aligned
    # (the dy=0 read offsets are 0/16/16) when W is a multiple of 16.
    offsets = (w + 1, w + 16, w + 15)           # dx = 0, 1, 2 slabs
    pad_rows = _round_up(hw + 2 * w + 16, 16)

    kernel = functools.partial(_bottleneck_kernel, h, w, b_tile, offsets, pad_rows)

    out = pl.pallas_call(
        kernel,
        out_shape=jax.ShapeDtypeStruct((n, hw, c3), out_dtype),
        grid=(n // b_tile,),
        in_specs=[
            pl.BlockSpec((b_tile, hw, cin), lambda b: (b, 0, 0)),
            pl.BlockSpec((cin, p), lambda b: (0, 0)),
            pl.BlockSpec((9 * p, p), lambda b: (0, 0)),
            pl.BlockSpec((p, c3), lambda b: (0, 0)),
        ],
        out_specs=pl.BlockSpec((b_tile, hw, c3), lambda b: (b, 0, 0)),
        scratch_shapes=[
            pltpu.VMEM((3, b_tile, pad_rows, p), jnp.bfloat16),
            pltpu.VMEM((b_tile * hw, 9 * p), jnp.bfloat16),
        ],
        compiler_params=pltpu.CompilerParams(
            dimension_semantics=("parallel",)),
    )(x, w1m, w2m, w3m)

    # (N, H*W, 4P) -> NCHW to match the PyTorch module.
    return jnp.transpose(out.reshape(n, h, w, c3), (0, 3, 1, 2))


# ---------------------------------------------------------------------------
# Plain-JAX f32 reference (for a numerics sanity check)
# ---------------------------------------------------------------------------
def _reference_forward(x_nchw, params, eps=BN_EPS):
    scale = 1.0 / math.sqrt(1.0 + eps)

    def conv(x_nhwc, w_oihw, pad):
        return jax.lax.conv_general_dilated(
            x_nhwc, jnp.transpose(w_oihw, (2, 3, 1, 0)),
            window_strides=(1, 1), padding=[(pad, pad), (pad, pad)],
            dimension_numbers=("NHWC", "HWIO", "NHWC"),
            precision=jax.lax.Precision.HIGHEST)

    x = jnp.transpose(x_nchw, (0, 2, 3, 1)).astype(jnp.float32)
    h = jax.nn.relu(conv(x, params["conv1"], 0) * scale)
    h = jax.nn.relu(conv(h, params["conv2"], 1) * scale)
    h = jax.nn.relu(conv(h, params["conv3"], 0) * scale)
    return jnp.transpose(h, (0, 3, 1, 2))


# ---------------------------------------------------------------------------
# Deterministic parameter initialization (matches module __init__ shapes)
# ---------------------------------------------------------------------------
def init_params(key, inplanes, planes):
    def conv_w(k, oc, ic, kh, kw):
        std = math.sqrt(2.0 / (kh * kw * oc))
        return std * jax.random.normal(k, (oc, ic, kh, kw), jnp.float32)

    k1, k2, k3 = jax.random.split(key, 3)
    return {
        "conv1": conv_w(k1, planes, inplanes, 1, 1),
        "conv2": conv_w(k2, planes, planes, 3, 3),
        "conv3": conv_w(k3, planes * 4, planes, 1, 1),
    }


# ---------------------------------------------------------------------------
if __name__ == "__main__":
    key = jax.random.PRNGKey(0)
    kp, kx = jax.random.split(key)

    inplanes, planes = 64, 32          # expansion 4 -> 128 output channels
    n, h, w = 2, 16, 16

    params = init_params(kp, inplanes, planes)
    x = jax.random.normal(kx, (n, inplanes, h, w), jnp.float32)   # NCHW

    fwd = jax.jit(bottleneck_noresidual_forward)
    out = fwd(x, params)
    jax.block_until_ready(out)

    assert out.shape == (n, planes * 4, h, w), out.shape
    assert bool(jnp.isfinite(out).all())

    # Numerics check against a plain-JAX f32 reference. bf16 MXU operands plus
    # the bf16 output stream give ~1-2% worst-case error; compare the max abs
    # error relative to the output magnitude.
    ref = _reference_forward(x, params)
    rel = float(jnp.max(jnp.abs(out.astype(jnp.float32) - ref)) /
                (jnp.max(jnp.abs(ref)) + 1e-6))
    assert rel < 4e-2, f"max relative-to-max error {rel}"

    print("KERNEL_OK")
</pallas_src>

<mosaic_0001>
module attributes {stable_mosaic.version = 11 : i64} {
  func.func @_bottleneck_kernel(%arg0: i32, %arg1: memref<1x256x64xbf16, #tpu.memory_space<vmem>>, %arg2: memref<64x32xbf16, #tpu.memory_space<vmem>>, %arg3: memref<288x32xbf16, #tpu.memory_space<vmem>>, %arg4: memref<32x128xbf16, #tpu.memory_space<vmem>>, %arg5: memref<1x256x128xbf16, #tpu.memory_space<vmem>>, %arg6: memref<3x1x304x32xbf16, #tpu.memory_space<vmem>>, %arg7: memref<256x288xbf16, #tpu.memory_space<vmem>>) attributes {dimension_semantics = [#tpu.dimension_semantics<parallel>], iteration_bounds = array<i64: 2>, scalar_prefetch = 0 : i64, scratch_operands = 2 : i64, tpu.core_type = #tpu.core_type<tc>, window_params = [{transform_indices = @transform_0, window_bounds = array<i64: 1, 256, 64>}, {pipeline_mode = #tpu.pipeline_mode<synchronous>, transform_indices = @transform_1, window_bounds = array<i64: 64, 32>}, {pipeline_mode = #tpu.pipeline_mode<synchronous>, transform_indices = @transform_2, window_bounds = array<i64: 288, 32>}, {pipeline_mode = #tpu.pipeline_mode<synchronous>, transform_indices = @transform_3, window_bounds = array<i64: 32, 128>}, {transform_indices = @transform_4, window_bounds = array<i64: 1, 256, 128>}]} {
    %c0 = arith.constant 0 : index
    %c0_0 = arith.constant 0 : index
    %c0_1 = arith.constant 0 : index
    %0 = vector.load %arg1[%c0, %c0_0, %c0_1] : memref<1x256x64xbf16, #tpu.memory_space<vmem>>, vector<1x256x64xbf16>
    %1 = vector.shape_cast %0 : vector<1x256x64xbf16> to vector<256x64xbf16>
    %c0_2 = arith.constant 0 : index
    %c0_3 = arith.constant 0 : index
    %2 = vector.load %arg2[%c0_2, %c0_3] : memref<64x32xbf16, #tpu.memory_space<vmem>>, vector<64x32xbf16>
    %cst = arith.constant dense<0.000000e+00> : vector<256x32xf32>
    %3 = tpu.matmul %1, %2, %cst {dimension_numbers = #tpu.dot_dimension_numbers<[1], [0], [0], [1], [0, 0, 1, 1], [], []>} : vector<256x64xbf16>, vector<64x32xbf16>, vector<256x32xf32> -> vector<256x32xf32>
    %cst_4 = arith.constant 0.000000e+00 : f32
    %4 = vector.broadcast %cst_4 : f32 to vector<256x32xf32>
    %5 = arith.maximumf %3, %4 : vector<256x32xf32>
    %6 = tpu.iota {dimensions = array<i32: 0>} : vector<256x1xi32>
    %c16_i32 = arith.constant 16 : i32
    %c0_i32 = arith.constant 0 : i32
    %7 = arith.cmpi eq, %c16_i32, %c0_i32 : i32
    %c1_i32 = arith.constant 1 : i32
    %8 = arith.select %7, %c1_i32, %c16_i32 : i32
    %9 = vector.broadcast %8 : i32 to vector<256x1xi32>
    %10 = arith.remsi %6, %9 : vector<256x1xi32>
    %c0_i32_5 = arith.constant 0 : i32
    %11 = vector.broadcast %c0_i32_5 : i32 to vector<256x1xi32>
    %12 = arith.cmpi ne, %10, %11 : vector<256x1xi32>
    %c0_i32_6 = arith.constant 0 : i32
    %13 = vector.broadcast %c0_i32_6 : i32 to vector<256x1xi32>
    %14 = arith.cmpi slt, %10, %13 : vector<256x1xi32>
    %c0_i32_7 = arith.constant 0 : i32
    %15 = arith.cmpi slt, %8, %c0_i32_7 : i32
    %16 = vector.broadcast %15 : i1 to vector<256x1xi1>
    %17 = vector.broadcast %16 : vector<256x1xi1> to vector<256x1xi1>
    %18 = arith.xori %14, %17 : vector<256x1xi1>
    %19 = arith.andi %18, %12 : vector<256x1xi1>
    %20 = vector.broadcast %8 : i32 to vector<256x1xi32>
    %21 = arith.addi %10, %20 : vector<256x1xi32>
    %22 = arith.select %19, %21, %10 : vector<256x1xi1>, vector<256x1xi32>
    %c15_i32 = arith.constant 15 : i32
    %23 = vector.broadcast %c15_i32 : i32 to vector<256x1xi32>
    %24 = arith.cmpi eq, %22, %23 : vector<256x1xi32>
    %cst_8 = arith.constant 0.000000e+00 : f32
    %25 = vector.shape_cast %24 : vector<256x1xi1> to vector<256x1xi1>
    %26 = vector.broadcast %25 : vector<256x1xi1> to vector<256x32xi1>
    %27 = vector.broadcast %cst_8 : f32 to vector<256x32xf32>
    %28 = arith.select %26, %27, %5 : vector<256x32xi1>, vector<256x32xf32>
    %c0_i32_9 = arith.constant 0 : i32
    %29 = vector.broadcast %c0_i32_9 : i32 to vector<256x1xi32>
    %30 = arith.cmpi eq, %22, %29 : vector<256x1xi32>
    %cst_10 = arith.constant 0.000000e+00 : f32
    %31 = vector.shape_cast %30 : vector<256x1xi1> to vector<256x1xi1>
    %32 = vector.broadcast %31 : vector<256x1xi1> to vector<256x32xi1>
    %33 = vector.broadcast %cst_10 : f32 to vector<256x32xf32>
    %34 = arith.select %32, %33, %5 : vector<256x32xi1>, vector<256x32xf32>
    %cst_11 = arith.constant 0.000000e+00 : bf16
    %35 = vector.broadcast %cst_11 : bf16 to vector<1x17x32xbf16>
    %c0_12 = arith.constant 0 : index
    %c0_13 = arith.constant 0 : index
    %c0_14 = arith.constant 0 : index
    %c0_15 = arith.constant 0 : index
    %36 = vector.load %arg6[%c0_12, %c0_13, %c0_14, %c0_15] : memref<3x1x304x32xbf16, #tpu.memory_space<vmem>>, vector<1x1x17x32xbf16>
    %37 = vector.shape_cast %36 : vector<1x1x17x32xbf16> to vector<1x17x32xbf16>
    %38 = vector.shape_cast %35 : vector<1x17x32xbf16> to vector<1x1x17x32xbf16>
    tpu.vector_store %arg6[%c0_12, %c0_13, %c0_14, %c0_15], %38 {strides = array<i32>} : memref<3x1x304x32xbf16, #tpu.memory_space<vmem>>, vector<1x1x17x32xbf16>,
    %cst_16 = arith.constant 0.000000e+00 : bf16
    %39 = vector.broadcast %cst_16 : bf16 to vector<1x31x32xbf16>
    %c0_17 = arith.constant 0 : index
    %c0_18 = arith.constant 0 : index
    %c273 = arith.constant 273 : index
    %c0_19 = arith.constant 0 : index
    %40 = vector.load %arg6[%c0_17, %c0_18, %c273, %c0_19] : memref<3x1x304x32xbf16, #tpu.memory_space<vmem>>, vector<1x1x31x32xbf16>
    %41 = vector.shape_cast %40 : vector<1x1x31x32xbf16> to vector<1x31x32xbf16>
    %42 = vector.shape_cast %39 : vector<1x31x32xbf16> to vector<1x1x31x32xbf16>
    tpu.vector_store %arg6[%c0_17, %c0_18, %c273, %c0_19], %42 {strides = array<i32>} : memref<3x1x304x32xbf16, #tpu.memory_space<vmem>>, vector<1x1x31x32xbf16>,
    %43 = arith.truncf %28 : vector<256x32xf32> to vector<256x32xbf16>
    %44 = vector.shape_cast %43 : vector<256x32xbf16> to vector<1x256x32xbf16>
    %c0_20 = arith.constant 0 : index
    %c0_21 = arith.constant 0 : index
    %c17 = arith.constant 17 : index
    %c0_22 = arith.constant 0 : index
    %45 = vector.load %arg6[%c0_20, %c0_21, %c17, %c0_22] : memref<3x1x304x32xbf16, #tpu.memory_space<vmem>>, vector<1x1x256x32xbf16>
    %46 = vector.shape_cast %45 : vector<1x1x256x32xbf16> to vector<1x256x32xbf16>
    %47 = vector.shape_cast %44 : vector<1x256x32xbf16> to vector<1x1x256x32xbf16>
    tpu.vector_store %arg6[%c0_20, %c0_21, %c17, %c0_22], %47 {strides = array<i32>} : memref<3x1x304x32xbf16, #tpu.memory_space<vmem>>, vector<1x1x256x32xbf16>,
    %cst_23 = arith.constant 0.000000e+00 : bf16
    %48 = vector.broadcast %cst_23 : bf16 to vector<1x32x32xbf16>
    %c1 = arith.constant 1 : index
    %c0_24 = arith.constant 0 : index
    %c0_25 = arith.constant 0 : index
    %c0_26 = arith.constant 0 : index
    %49 = vector.load %arg6[%c1, %c0_24, %c0_25, %c0_26] : memref<3x1x304x32xbf16, #tpu.memory_space<vmem>>, vector<1x1x32x32xbf16>
    %50 = vector.shape_cast %49 : vector<1x1x32x32xbf16> to vector<1x32x32xbf16>
    %51 = vector.shape_cast %48 : vector<1x32x32xbf16> to vector<1x1x32x32xbf16>
    tpu.vector_store %arg6[%c1, %c0_24, %c0_25, %c0_26], %51 {strides = array<i32>} : memref<3x1x304x32xbf16, #tpu.memory_space<vmem>>, vector<1x1x32x32xbf16>,
    %cst_27 = arith.constant 0.000000e+00 : bf16
    %52 = vector.broadcast %cst_27 : bf16 to vector<1x16x32xbf16>
    %c1_28 = arith.constant 1 : index
    %c0_29 = arith.constant 0 : index
    %c288 = arith.constant 288 : index
    %c0_30 = arith.constant 0 : index
    %53 = vector.load %arg6[%c1_28, %c0_29, %c288, %c0_30] : memref<3x1x304x32xbf16, #tpu.memory_space<vmem>>, vector<1x1x16x32xbf16>
    %54 = vector.shape_cast %53 : vector<1x1x16x32xbf16> to vector<1x16x32xbf16>
    %55 = vector.shape_cast %52 : vector<1x16x32xbf16> to vector<1x1x16x32xbf16>
    tpu.vector_store %arg6[%c1_28, %c0_29, %c288, %c0_30], %55 {strides = array<i32>} : memref<3x1x304x32xbf16, #tpu.memory_space<vmem>>, vector<1x1x16x32xbf16>,
    %56 = arith.truncf %5 : vector<256x32xf32> to vector<256x32xbf16>
    %57 = vector.shape_cast %56 : vector<256x32xbf16> to vector<1x256x32xbf16>
    %c1_31 = arith.constant 1 : index
    %c0_32 = arith.constant 0 : index
    %c32 = arith.constant 32 : index
    %c0_33 = arith.constant 0 : index
    %58 = vector.load %arg6[%c1_31, %c0_32, %c32, %c0_33] : memref<3x1x304x32xbf16, #tpu.memory_space<vmem>>, vector<1x1x256x32xbf16>
    %59 = vector.shape_cast %58 : vector<1x1x256x32xbf16> to vector<1x256x32xbf16>
    %60 = vector.shape_cast %57 : vector<1x256x32xbf16> to vector<1x1x256x32xbf16>
    tpu.vector_store %arg6[%c1_31, %c0_32, %c32, %c0_33], %60 {strides = array<i32>} : memref<3x1x304x32xbf16, #tpu.memory_space<vmem>>, vector<1x1x256x32xbf16>,
    %cst_34 = arith.constant 0.000000e+00 : bf16
    %61 = vector.broadcast %cst_34 : bf16 to vector<1x31x32xbf16>
    %c2 = arith.constant 2 : index
    %c0_35 = arith.constant 0 : index
    %c0_36 = arith.constant 0 : index
    %c0_37 = arith.constant 0 : index
    %62 = vector.load %arg6[%c2, %c0_35, %c0_36, %c0_37] : memref<3x1x304x32xbf16, #tpu.memory_space<vmem>>, vector<1x1x31x32xbf16>
    %63 = vector.shape_cast %62 : vector<1x1x31x32xbf16> to vector<1x31x32xbf16>
    %64 = vector.shape_cast %61 : vector<1x31x32xbf16> to vector<1x1x31x32xbf16>
    tpu.vector_store %arg6[%c2, %c0_35, %c0_36, %c0_37], %64 {strides = array<i32>} : memref<3x1x304x32xbf16, #tpu.memory_space<vmem>>, vector<1x1x31x32xbf16>,
    %cst_38 = arith.constant 0.000000e+00 : bf16
    %65 = vector.broadcast %cst_38 : bf16 to vector<1x17x32xbf16>
    %c2_39 = arith.constant 2 : index
    %c0_40 = arith.constant 0 : index
    %c287 = arith.constant 287 : index
    %c0_41 = arith.constant 0 : index
    %66 = vector.load %arg6[%c2_39, %c0_40, %c287, %c0_41] : memref<3x1x304x32xbf16, #tpu.memory_space<vmem>>, vector<1x1x17x32xbf16>
    %67 = vector.shape_cast %66 : vector<1x1x17x32xbf16> to vector<1x17x32xbf16>
    %68 = vector.shape_cast %65 : vector<1x17x32xbf16> to vector<1x1x17x32xbf16>
    tpu.vector_store %arg6[%c2_39, %c0_40, %c287, %c0_41], %68 {strides = array<i32>} : memref<3x1x304x32xbf16, #tpu.memory_space<vmem>>, vector<1x1x17x32xbf16>,
    %69 = arith.truncf %34 : vector<256x32xf32> to vector<256x32xbf16>
    %70 = vector.shape_cast %69 : vector<256x32xbf16> to vector<1x256x32xbf16>
    %c2_42 = arith.constant 2 : index
    %c0_43 = arith.constant 0 : index
    %c31 = arith.constant 31 : index
    %c0_44 = arith.constant 0 : index
    %71 = vector.load %arg6[%c2_42, %c0_43, %c31, %c0_44] : memref<3x1x304x32xbf16, #tpu.memory_space<vmem>>, vector<1x1x256x32xbf16>
    %72 = vector.shape_cast %71 : vector<1x1x256x32xbf16> to vector<1x256x32xbf16>
    %73 = vector.shape_cast %70 : vector<1x256x32xbf16> to vector<1x1x256x32xbf16>
    tpu.vector_store %arg6[%c2_42, %c0_43, %c31, %c0_44], %73 {strides = array<i32>} : memref<3x1x304x32xbf16, #tpu.memory_space<vmem>>, vector<1x1x256x32xbf16>,
    %c0_45 = arith.constant 0 : index
    %c0_46 = arith.constant 0 : index
    %c0_47 = arith.constant 0 : index
    %c0_48 = arith.constant 0 : index
    %74 = vector.load %arg6[%c0_45, %c0_46, %c0_47, %c0_48] : memref<3x1x304x32xbf16, #tpu.memory_space<vmem>>, vector<1x1x256x32xbf16>
    %75 = vector.shape_cast %74 : vector<1x1x256x32xbf16> to vector<1x256x32xbf16>
    %76 = vector.shape_cast %75 : vector<1x256x32xbf16> to vector<256x32xbf16>
    %c0_49 = arith.constant 0 : index
    %c0_50 = arith.constant 0 : index
    %77 = vector.load %arg7[%c0_49, %c0_50] : memref<256x288xbf16, #tpu.memory_space<vmem>>, vector<256x32xbf16>
    tpu.vector_store %arg7[%c0_49, %c0_50], %76 {strides = array<i32>} : memref<256x288xbf16, #tpu.memory_space<vmem>>, vector<256x32xbf16>,
    %c1_51 = arith.constant 1 : index
    %c0_52 = arith.constant 0 : index
    %c16 = arith.constant 16 : index
    %c0_53 = arith.constant 0 : index
    %78 = vector.load %arg6[%c1_51, %c0_52, %c16, %c0_53] : memref<3x1x304x32xbf16, #tpu.memory_space<vmem>>, vector<1x1x256x32xbf16>
    %79 = vector.shape_cast %78 : vector<1x1x256x32xbf16> to vector<1x256x32xbf16>
    %80 = vector.shape_cast %79 : vector<1x256x32xbf16> to vector<256x32xbf16>
    %c0_54 = arith.constant 0 : index
    %c32_55 = arith.constant 32 : index
    %81 = vector.load %arg7[%c0_54, %c32_55] : memref<256x288xbf16, #tpu.memory_space<vmem>>, vector<256x32xbf16>
    tpu.vector_store %arg7[%c0_54, %c32_55], %80 {strides = array<i32>} : memref<256x288xbf16, #tpu.memory_space<vmem>>, vector<256x32xbf16>,
    %c2_56 = arith.constant 2 : index
    %c0_57 = arith.constant 0 : index
    %c16_58 = arith.constant 16 : index
    %c0_59 = arith.constant 0 : index
    %82 = vector.load %arg6[%c2_56, %c0_57, %c16_58, %c0_59] : memref<3x1x304x32xbf16, #tpu.memory_space<vmem>>, vector<1x1x256x32xbf16>
    %83 = vector.shape_cast %82 : vector<1x1x256x32xbf16> to vector<1x256x32xbf16>
    %84 = vector.shape_cast %83 : vector<1x256x32xbf16> to vector<256x32xbf16>
    %c0_60 = arith.constant 0 : index
    %c64 = arith.constant 64 : index
    %85 = vector.load %arg7[%c0_60, %c64] : memref<256x288xbf16, #tpu.memory_space<vmem>>, vector<256x32xbf16>
    tpu.vector_store %arg7[%c0_60, %c64], %84 {strides = array<i32>} : memref<256x288xbf16, #tpu.memory_space<vmem>>, vector<256x32xbf16>,
    %c0_61 = arith.constant 0 : index
    %c0_62 = arith.constant 0 : index
    %c16_63 = arith.constant 16 : index
    %c0_64 = arith.constant 0 : index
    %86 = vector.load %arg6[%c0_61, %c0_62, %c16_63, %c0_64] : memref<3x1x304x32xbf16, #tpu.memory_space<vmem>>, vector<1x1x256x32xbf16>
    %87 = vector.shape_cast %86 : vector<1x1x256x32xbf16> to vector<1x256x32xbf16>
    %88 = vector.shape_cast %87 : vector<1x256x32xbf16> to vector<256x32xbf16>
    %c0_65 = arith.constant 0 : index
    %c96 = arith.constant 96 : index
    %89 = vector.load %arg7[%c0_65, %c96] : memref<256x288xbf16, #tpu.memory_space<vmem>>, vector<256x32xbf16>
    tpu.vector_store %arg7[%c0_65, %c96], %88 {strides = array<i32>} : memref<256x288xbf16, #tpu.memory_space<vmem>>, vector<256x32xbf16>,
    %c1_66 = arith.constant 1 : index
    %c0_67 = arith.constant 0 : index
    %c32_68 = arith.constant 32 : index
    %c0_69 = arith.constant 0 : index
    %90 = vector.load %arg6[%c1_66, %c0_67, %c32_68, %c0_69] : memref<3x1x304x32xbf16, #tpu.memory_space<vmem>>, vector<1x1x256x32xbf16>
    %91 = vector.shape_cast %90 : vector<1x1x256x32xbf16> to vector<1x256x32xbf16>
    %92 = vector.shape_cast %91 : vector<1x256x32xbf16> to vector<256x32xbf16>
    %c0_70 = arith.constant 0 : index
    %c128 = arith.constant 128 : index
    %93 = vector.load %arg7[%c0_70, %c128] : memref<256x288xbf16, #tpu.memory_space<vmem>>, vector<256x32xbf16>
    tpu.vector_store %arg7[%c0_70, %c128], %92 {strides = array<i32>} : memref<256x288xbf16, #tpu.memory_space<vmem>>, vector<256x32xbf16>,
    %c2_71 = arith.constant 2 : index
    %c0_72 = arith.constant 0 : index
    %c32_73 = arith.constant 32 : index
    %c0_74 = arith.constant 0 : index
    %94 = vector.load %arg6[%c2_71, %c0_72, %c32_73, %c0_74] : memref<3x1x304x32xbf16, #tpu.memory_space<vmem>>, vector<1x1x256x32xbf16>
    %95 = vector.shape_cast %94 : vector<1x1x256x32xbf16> to vector<1x256x32xbf16>
    %96 = vector.shape_cast %95 : vector<1x256x32xbf16> to vector<256x32xbf16>
    %c0_75 = arith.constant 0 : index
    %c160 = arith.constant 160 : index
    %97 = vector.load %arg7[%c0_75, %c160] : memref<256x288xbf16, #tpu.memory_space<vmem>>, vector<256x32xbf16>
    tpu.vector_store %arg7[%c0_75, %c160], %96 {strides = array<i32>} : memref<256x288xbf16, #tpu.memory_space<vmem>>, vector<256x32xbf16>,
    %c0_76 = arith.constant 0 : index
    %c0_77 = arith.constant 0 : index
    %c32_78 = arith.constant 32 : index
    %c0_79 = arith.constant 0 : index
    %98 = vector.load %arg6[%c0_76, %c0_77, %c32_78, %c0_79] : memref<3x1x304x32xbf16, #tpu.memory_space<vmem>>, vector<1x1x256x32xbf16>
    %99 = vector.shape_cast %98 : vector<1x1x256x32xbf16> to vector<1x256x32xbf16>
    %100 = vector.shape_cast %99 : vector<1x256x32xbf16> to vector<256x32xbf16>
    %c0_80 = arith.constant 0 : index
    %c192 = arith.constant 192 : index
    %101 = vector.load %arg7[%c0_80, %c192] : memref<256x288xbf16, #tpu.memory_space<vmem>>, vector<256x32xbf16>
    tpu.vector_store %arg7[%c0_80, %c192], %100 {strides = array<i32>} : memref<256x288xbf16, #tpu.memory_space<vmem>>, vector<256x32xbf16>,
    %c1_81 = arith.constant 1 : index
    %c0_82 = arith.constant 0 : index
    %c48 = arith.constant 48 : index
    %c0_83 = arith.constant 0 : index
    %102 = vector.load %arg6[%c1_81, %c0_82, %c48, %c0_83] : memref<3x1x304x32xbf16, #tpu.memory_space<vmem>>, vector<1x1x256x32xbf16>
    %103 = vector.shape_cast %102 : vector<1x1x256x32xbf16> to vector<1x256x32xbf16>
    %104 = vector.shape_cast %103 : vector<1x256x32xbf16> to vector<256x32xbf16>
    %c0_84 = arith.constant 0 : index
    %c224 = arith.constant 224 : index
    %105 = vector.load %arg7[%c0_84, %c224] : memref<256x288xbf16, #tpu.memory_space<vmem>>, vector<256x32xbf16>
    tpu.vector_store %arg7[%c0_84, %c224], %104 {strides = array<i32>} : memref<256x288xbf16, #tpu.memory_space<vmem>>, vector<256x32xbf16>,
    %c2_85 = arith.constant 2 : index
    %c0_86 = arith.constant 0 : index
    %c48_87 = arith.constant 48 : index
    %c0_88 = arith.constant 0 : index
    %106 = vector.load %arg6[%c2_85, %c0_86, %c48_87, %c0_88] : memref<3x1x304x32xbf16, #tpu.memory_space<vmem>>, vector<1x1x256x32xbf16>
    %107 = vector.shape_cast %106 : vector<1x1x256x32xbf16> to vector<1x256x32xbf16>
    %108 = vector.shape_cast %107 : vector<1x256x32xbf16> to vector<256x32xbf16>
    %c0_89 = arith.constant 0 : index
    %c256 = arith.constant 256 : index
    %109 = vector.load %arg7[%c0_89, %c256] : memref<256x288xbf16, #tpu.memory_space<vmem>>, vector<256x32xbf16>
    tpu.vector_store %arg7[%c0_89, %c256], %108 {strides = array<i32>} : memref<256x288xbf16, #tpu.memory_space<vmem>>, vector<256x32xbf16>,
    %c0_90 = arith.constant 0 : index
    %c0_91 = arith.constant 0 : index
    %110 = vector.load %arg7[%c0_90, %c0_91] : memref<256x288xbf16, #tpu.memory_space<vmem>>, vector<256x288xbf16>
    %c0_92 = arith.constant 0 : index
    %c0_93 = arith.constant 0 : index
    %111 = vector.load %arg3[%c0_92, %c0_93] : memref<288x32xbf16, #tpu.memory_space<vmem>>, vector<288x32xbf16>
    %cst_94 = arith.constant dense<0.000000e+00> : vector<256x32xf32>
    %112 = tpu.matmul %110, %111, %cst_94 {dimension_numbers = #tpu.dot_dimension_numbers<[1], [0], [0], [1], [0, 0, 1, 1], [], []>} : vector<256x288xbf16>, vector<288x32xbf16>, vector<256x32xf32> -> vector<256x32xf32>
    %cst_95 = arith.constant 0.000000e+00 : f32
    %113 = vector.broadcast %cst_95 : f32 to vector<256x32xf32>
    %114 = arith.maximumf %112, %113 : vector<256x32xf32>
    %115 = arith.truncf %114 : vector<256x32xf32> to vector<256x32xbf16>
    %c0_96 = arith.constant 0 : index
    %c0_97 = arith.constant 0 : index
    %116 = vector.load %arg4[%c0_96, %c0_97] : memref<32x128xbf16, #tpu.memory_space<vmem>>, vector<32x128xbf16>
    %cst_98 = arith.constant dense<0.000000e+00> : vector<256x128xf32>
    %117 = tpu.matmul %115, %116, %cst_98 {dimension_numbers = #tpu.dot_dimension_numbers<[1], [0], [0], [1], [0, 0, 1, 1], [], []>} : vector<256x32xbf16>, vector<32x128xbf16>, vector<256x128xf32> -> vector<256x128xf32>
    %cst_99 = arith.constant 0.000000e+00 : f32
    %118 = vector.broadcast %cst_99 : f32 to vector<256x128xf32>
    %119 = arith.maximumf %117, %118 : vector<256x128xf32>
    %120 = arith.truncf %119 : vector<256x128xf32> to vector<256x128xbf16>
    %121 = vector.shape_cast %120 : vector<256x128xbf16> to vector<1x256x128xbf16>
    %c0_100 = arith.constant 0 : index
    %c0_101 = arith.constant 0 : index
    %c0_102 = arith.constant 0 : index
    %122 = vector.load %arg5[%c0_100, %c0_101, %c0_102] : memref<1x256x128xbf16, #tpu.memory_space<vmem>>, vector<1x256x128xbf16>
    tpu.vector_store %arg5[%c0_100, %c0_101, %c0_102], %121 {strides = array<i32>} : memref<1x256x128xbf16, #tpu.memory_space<vmem>>, vector<1x256x128xbf16>,
    return
  }
  func.func @transform_0(%arg0: i32) -> (i32, i32, i32) {
    %c0_i32 = arith.constant 0 : i32
    %c0_i32_0 = arith.constant 0 : i32
    %c0_i32_1 = arith.constant 0 : i32
    return %arg0, %c0_i32, %c0_i32_0 : i32, i32, i32
  }
  func.func @transform_1(%arg0: i32) -> (i32, i32) {
    %c0_i32 = arith.constant 0 : i32
    %c0_i32_0 = arith.constant 0 : i32
    %c0_i32_1 = arith.constant 0 : i32
    return %c0_i32, %c0_i32_0 : i32, i32
  }
  func.func @transform_2(%arg0: i32) -> (i32, i32) {
    %c0_i32 = arith.constant 0 : i32
    %c0_i32_0 = arith.constant 0 : i32
    %c0_i32_1 = arith.constant 0 : i32
    return %c0_i32, %c0_i32_0 : i32, i32
  }
  func.func @transform_3(%arg0: i32) -> (i32, i32) {
    %c0_i32 = arith.constant 0 : i32
    %c0_i32_0 = arith.constant 0 : i32
    %c0_i32_1 = arith.constant 0 : i32
    return %c0_i32, %c0_i32_0 : i32, i32
  }
  func.func @transform_4(%arg0: i32) -> (i32, i32, i32) {
    %c0_i32 = arith.constant 0 : i32
    %c0_i32_0 = arith.constant 0 : i32
    %c0_i32_1 = arith.constant 0 : i32
    return %arg0, %c0_i32, %c0_i32_0 : i32, i32, i32
  }
}

</mosaic_0001>

<llo_original>
// kernel: bottleneck_noresidual_forward.1
$region0: #{bottleneck_noresidual_forward.1}
  #allocation0 [shape = 'u32[]', space=smem, size = 0x4, offset = 0x4, fixed_abs, tag = 'smem constant byte address 0x4 - core index']
  #allocation1 [shape = 'u32[144,128]{1,0:T(1,128)}', space=vmem, size = 0x12000, scoped, tag = 'internal scratch']
  #allocation2 [shape = 'bf16[3,1,304,32]{3,2,1,0:T(16,128)(2,1)}', space=vmem, size = 0x39000, scoped, tag = 'scratch operand']
  #allocation3 [shape = 'bf16[256,288]{1,0:T(16,128)(2,1)}', space=vmem, size = 0x30000, scoped, tag = 'scratch operand']
  %s0 = inlined_call_operand.vmem [shape: bf16[2,256,64], index: 0, kind: input, shape index: {}]
  %s1 = inlined_call_operand.vmem [shape: bf16[64,32], index: 1, kind: input, shape index: {}]
  %s2 = inlined_call_operand.vmem [shape: bf16[288,32], index: 2, kind: input, shape index: {}]
  %s3 = inlined_call_operand.vmem [shape: bf16[32,128], index: 3, kind: input, shape index: {}]
  %s4 = inlined_call_operand.hbm [shape: bf16[2,256,128], index: 4, kind: output, shape index: {}]
  %s5 = sld [smem:[#allocation0]]
  $region49: #{bottleneck_noresidual_forward.1} parent=0
    _
  %s7 = ssub.s32 1, %s5
  %s8 = scalar_select 0, %s7, %s5
  $region1: #{bottleneck_noresidual_forward.1} parent=0
    #allocation4 [shape = 'u8[131072]{0}', space=vmem, size = 0x20000, scoped, tag = 'output window, operand 0']
    #allocation5 [shape = 's32[2]{0}', space=sflag, size = 0x8, scoped, tag = 'scoped memory for bottleneck_noresidual_forward.1']
    %9 = vsyncpa [#allocation5], 0
    %s10 = scalar_lea.sflag [#allocation5], 1
    %11 = vsyncpa %s10, 0
    loop: start=0, step=1, limit=4
    $region2: #{bottleneck_noresidual_forward.1} parent=1 // loop_pre_header
      _
    $region3: #{bottleneck_noresidual_forward.1} parent=1 // loop_header
      %s13 = sphi 0, %s17
      %p14 = scmp.ge.s32.totalorder %s13, 4
      %s23 = sphi 0, %s25
      %s26 = sphi 0, %s23
      %s27 = sphi 0, %s26
      %s43 = sphi 0, %s27
      %s47 = sphi 0, %s47
      %s49 = sphi 0, %s47
      %s50 = sphi 0, %s49
      %s64 = sphi 0, %s50
      %s68 = sphi 0, %s68
      %s70 = sphi 0, %s68
      %s71 = sphi 0, %s70
      %s85 = sphi 0, %s71
      %s89 = sphi 0, %s89
      %s91 = sphi 0, %s89
      %s92 = sphi 0, %s91
      %s106 = sphi 0, %s92
      %s112 = sphi 0, %s114
      %s115 = sphi 0, %s112
      %s116 = sphi 0, %s115
      %s132 = sphi 0, %s116
    $region4: #{bottleneck_noresidual_forward.1} parent=1 // loop_header_branch
      %16 = sbr.rel (%p14) target = $region8
    $region5: #{bottleneck_noresidual_forward.1} parent=1 // loop_body
      %s18 = ssub.s32 %s13, 1
      %s19 = ssub.s32 %s13, 2
      %s20 = sadd.s32 %s13, 1
      %s21 = ssub.s32 %s13, %s20
      %p22 = scmp.eq.s32.totalorder %s21, 0
      %s24 = sadd.s32 %s23, 1
      %s25 = scalar_select %p22, %s23, %s24
      %p28 = pneg %p22
      %p29 = scmp.eq.s32.totalorder %s13, 1
      %p30 = por %p28, %p29
      %p31 = scmp.ne.s32.totalorder %s23, %s26
      %p32 = scmp.eq.s32.totalorder %s13, 0
      %p33 = por %p31, %p32
      %p34 = scmp.ne.s32.totalorder %s23, %s26
      %p35 = scmp.eq.s32.totalorder %s18, 1
      %p36 = por %p34, %p35
      %p37 = scmp.ne.s32.totalorder %s26, %s27
      %p38 = scmp.eq.s32.totalorder %s18, 0
      %p39 = por %p37, %p38
      %p40 = scmp.ne.s32.totalorder %s26, %s27
      %p41 = scmp.eq.s32.totalorder %s19, 1
      %p42 = por %p40, %p41
      %p44 = scmp.ne.s32.totalorder %s27, %s43
      %p45 = scmp.eq.s32.totalorder %s19, 0
      %p46 = por %p44, %p45
      %s48 = sadd.s32 %s47, 1
      %p51 = scmp.eq.s32.totalorder %s13, 1
      %p52 = scmp.ne.s32.totalorder %s47, %s49
      %p53 = scmp.eq.s32.totalorder %s13, 0
      %p54 = por %p52, %p53
      %p55 = scmp.ne.s32.totalorder %s47, %s49
      %p56 = scmp.eq.s32.totalorder %s18, 1
      %p57 = por %p55, %p56
      %p58 = scmp.ne.s32.totalorder %s49, %s50
      %p59 = scmp.eq.s32.totalorder %s18, 0
      %p60 = por %p58, %p59
      %p61 = scmp.ne.s32.totalorder %s49, %s50
      %p62 = scmp.eq.s32.totalorder %s19, 1
      %p63 = por %p61, %p62
      %p65 = scmp.ne.s32.totalorder %s50, %s64
      %p66 = scmp.eq.s32.totalorder %s19, 0
      %p67 = por %p65, %p66
      %s69 = sadd.s32 %s68, 1
      %p72 = scmp.eq.s32.totalorder %s13, 1
      %p73 = scmp.ne.s32.totalorder %s68, %s70
      %p74 = scmp.eq.s32.totalorder %s13, 0
      %p75 = por %p73, %p74
      %p76 = scmp.ne.s32.totalorder %s68, %s70
      %p77 = scmp.eq.s32.totalorder %s18, 1
      %p78 = por %p76, %p77
      %p79 = scmp.ne.s32.totalorder %s70, %s71
      %p80 = scmp.eq.s32.totalorder %s18, 0
      %p81 = por %p79, %p80
      %p82 = scmp.ne.s32.totalorder %s70, %s71
      %p83 = scmp.eq.s32.totalorder %s19, 1
      %p84 = por %p82, %p83
      %p86 = scmp.ne.s32.totalorder %s71, %s85
      %p87 = scmp.eq.s32.totalorder %s19, 0
      %p88 = por %p86, %p87
      %s90 = sadd.s32 %s89, 1
      %p93 = scmp.eq.s32.totalorder %s13, 1
      %p94 = scmp.ne.s32.totalorder %s89, %s91
      %p95 = scmp.eq.s32.totalorder %s13, 0
      %p96 = por %p94, %p95
      %p97 = scmp.ne.s32.totalorder %s89, %s91
      %p98 = scmp.eq.s32.totalorder %s18, 1
      %p99 = por %p97, %p98
      %p100 = scmp.ne.s32.totalorder %s91, %s92
      %p101 = scmp.eq.s32.totalorder %s18, 0
      %p102 = por %p100, %p101
      %p103 = scmp.ne.s32.totalorder %s91, %s92
      %p104 = scmp.eq.s32.totalorder %s19, 1
      %p105 = por %p103, %p104
      %p107 = scmp.ne.s32.totalorder %s92, %s106
      %p108 = scmp.eq.s32.totalorder %s19, 0
      %p109 = por %p107, %p108
      %s110 = ssub.s32 %s13, %s20
      %p111 = scmp.eq.s32.totalorder %s110, 0
      %s113 = sadd.s32 %s112, 1
      %s114 = scalar_select %p111, %s112, %s113
      %p117 = pneg %p111
      %p118 = scmp.eq.s32.totalorder %s13, 1
      %p119 = por %p117, %p118
      %p120 = scmp.ne.s32.totalorder %s112, %s115
      %p121 = scmp.eq.s32.totalorder %s13, 0
      %p122 = por %p120, %p121
      %p123 = scmp.ne.s32.totalorder %s112, %s115
      %p124 = scmp.eq.s32.totalorder %s18, 1
      %p125 = por %p123, %p124
      %p126 = scmp.ne.s32.totalorder %s115, %s116
      %p127 = scmp.eq.s32.totalorder %s18, 0
      %p128 = por %p126, %p127
      %p129 = scmp.ne.s32.totalorder %s115, %s116
      %p130 = scmp.eq.s32.totalorder %s19, 1
      %p131 = por %p129, %p130
      %p133 = scmp.ne.s32.totalorder %s116, %s132
      %p134 = scmp.eq.s32.totalorder %s19, 0
      %p135 = por %p133, %p134
      %p136 = scmp.le.s32.totalorder 1, %s13
      %p137 = scmp.lt.s32.totalorder %s13, 3
      %p138 = pnand %p136, %p137
      %p139 = pneg %p138
      // Predicated region
      $region9: #{bottleneck_noresidual_forward.1} parent=5 // pred_check
        _
      $region10: #{bottleneck_noresidual_forward.1} parent=5 // pred_check_branch
        %141 = sbr.rel (%p138) target = $region12
      $region11: #{bottleneck_noresidual_forward.1} parent=5 // pred_region
        %s142 = ssub.s32 %s13, 1
        // Predicated region
        $region13: #{bottleneck_noresidual_forward.1} parent=11 // pred_check
          %p143 = pneg %p60
        $region14: #{bottleneck_noresidual_forward.1} parent=11 // pred_check_branch
          %145 = sbr.rel (%p143) target = $region16
        $region15: #{bottleneck_noresidual_forward.1} parent=11 // pred_region
          _
        $region16: #{bottleneck_noresidual_forward.1} parent=11 // pred_fallthru
          _
        // Predicated region
        $region17: #{bottleneck_noresidual_forward.1} parent=11 // pred_check
          %p146 = pneg %p81
        $region18: #{bottleneck_noresidual_forward.1} parent=11 // pred_check_branch
          %148 = sbr.rel (%p146) target = $region20
        $region19: #{bottleneck_noresidual_forward.1} parent=11 // pred_region
          _
        $region20: #{bottleneck_noresidual_forward.1} parent=11 // pred_fallthru
          _
        // Predicated region
        $region21: #{bottleneck_noresidual_forward.1} parent=11 // pred_check
          %p149 = pneg %p102
        $region22: #{bottleneck_noresidual_forward.1} parent=11 // pred_check_branch
          %151 = sbr.rel (%p149) target = $region24
        $region23: #{bottleneck_noresidual_forward.1} parent=11 // pred_region
          _
        $region24: #{bottleneck_noresidual_forward.1} parent=11 // pred_fallthru
          _
      $region12: #{bottleneck_noresidual_forward.1} parent=5 // pred_fallthru
        _
      %p152 = scmp.lt.s32.totalorder %s13, 2
      // Predicated region
      $region25: #{bottleneck_noresidual_forward.1} parent=5 // pred_check
        %p153 = pneg %p152
      $region26: #{bottleneck_noresidual_forward.1} parent=5 // pred_check_branch
        %155 = sbr.rel (%p153) target = $region28
      $region27: #{bottleneck_noresidual_forward.1} parent=5 // pred_region
        // Predicated region
        $region29: #{bottleneck_noresidual_forward.1} parent=27 // pred_check
          %p156 = pneg %p33
        $region30: #{bottleneck_noresidual_forward.1} parent=27 // pred_check_branch
          %158 = sbr.rel (%p156) target = $region32
        $region31: #{bottleneck_noresidual_forward.1} parent=27 // pred_region
          %p159 = scmp.lt.s32.totalorder %s13, 1
          %s160 = scalar_select %p159, %s13, 1
          %s161 = smul.addr %s160, 32
          %s162 = smul.addr %s161, 4
          %s163 = scalar_lea.vmem %s0, %s162
        $region32: #{bottleneck_noresidual_forward.1} parent=27 // pred_fallthru
          _
      $region28: #{bottleneck_noresidual_forward.1} parent=5 // pred_fallthru
        _
      %p164 = scmp.le.s32.totalorder 1, %s13
      %p165 = scmp.lt.s32.totalorder %s13, 3
      %p166 = pnand %p164, %p165
      %p167 = pneg %p166
      // Predicated region
      $region33: #{bottleneck_noresidual_forward.1} parent=5 // pred_check
        _
      $region34: #{bottleneck_noresidual_forward.1} parent=5 // pred_check_branch
        %169 = sbr.rel (%p166) target = $region36
      $region35: #{bottleneck_noresidual_forward.1} parent=5 // pred_region
        %s170 = ssub.s32 %s13, 1
        %p171 = scmp.lt.s32.totalorder %s18, 1
        %s172 = scalar_select %p171, %s18, 1
        %s173 = smul.addr %s172, 32
        %s174 = smul.addr %s173, 4
        %s175 = scalar_lea.vmem %s0, %s174
        %p176 = pneg %p39
        %p177 = pneg %p36
        %p178 = pneg %p60
        %p179 = pneg %p57
        %p180 = pneg %p81
        %p181 = pneg %p78
        %p182 = pneg %p102
        %p183 = pneg %p99
        %p184 = pneg %p128
        %p185 = pneg %p125
        %s186 = sand.u32 %s115, 1
        %s187 = scalar_lea.sflag [#allocation5], %s186
        %s188 = sand.u32 %s115, 1
        %s189 = smul.addr %s188, 128
        %s190 = scalar_lea.vmem [#allocation4], %s189
        %p191 = scmp.lt.s32.totalorder %s18, 1
        %s192 = scalar_select %p191, %s18, 1
        %s193 = smul.addr %s192, 32
        %s194 = smul.addr %s193, 4
        %s195 = scalar_lea.vmem %s0, %s194
        %v197 = vld [vmem:[%s195] sm:$0xf]
        %v198 = vld [vmem:[%s195 + $0x4] sm:$0xf]
        %v199 = vld [vmem:[%s195 + $0x8] sm:$0xf]
        %v200 = vld [vmem:[%s195 + $0xc] sm:$0xf]
        %v201 = vld [vmem:[%s195 + $0x10] sm:$0xf]
        %v202 = vld [vmem:[%s195 + $0x14] sm:$0xf]
        %v203 = vld [vmem:[%s195 + $0x18] sm:$0xf]
        %v204 = vld [vmem:[%s195 + $0x1c] sm:$0xf]
        %v205 = vld [vmem:[%s195 + $0x20] sm:$0xf]
        %v206 = vld [vmem:[%s195 + $0x24] sm:$0xf]
        %v207 = vld [vmem:[%s195 + $0x28] sm:$0xf]
        %v208 = vld [vmem:[%s195 + $0x2c] sm:$0xf]
        %v209 = vld [vmem:[%s195 + $0x30] sm:$0xf]
        %v210 = vld [vmem:[%s195 + $0x34] sm:$0xf]
        %v211 = vld [vmem:[%s195 + $0x38] sm:$0xf]
        %v212 = vld [vmem:[%s195 + $0x3c] sm:$0xf]
        %v213 = vld [vmem:[%s195 + $0x40] sm:$0xf]
        %v214 = vld [vmem:[%s195 + $0x44] sm:$0xf]
        %v215 = vld [vmem:[%s195 + $0x48] sm:$0xf]
        %v216 = vld [vmem:[%s195 + $0x4c] sm:$0xf]
        %v217 = vld [vmem:[%s195 + $0x50] sm:$0xf]
        %v218 = vld [vmem:[%s195 + $0x54] sm:$0xf]
        %v219 = vld [vmem:[%s195 + $0x58] sm:$0xf]
        %v220 = vld [vmem:[%s195 + $0x5c] sm:$0xf]
        %v221 = vld [vmem:[%s195 + $0x60] sm:$0xf]
        %v222 = vld [vmem:[%s195 + $0x64] sm:$0xf]
        %v223 = vld [vmem:[%s195 + $0x68] sm:$0xf]
        %v224 = vld [vmem:[%s195 + $0x6c] sm:$0xf]
        %v225 = vld [vmem:[%s195 + $0x70] sm:$0xf]
        %v226 = vld [vmem:[%s195 + $0x74] sm:$0xf]
        %v227 = vld [vmem:[%s195 + $0x78] sm:$0xf]
        %v228 = vld [vmem:[%s195 + $0x7c] sm:$0xf]
        %v229 = vld [vmem:[%s1] sm:$0xf]
        %v230 = vld [vmem:[%s1 + $0x4] sm:$0xf]
        %v231 = vld [vmem:[%s1 + $0x8] sm:$0xf]
        %v232 = vld [vmem:[%s1 + $0xc] sm:$0xf]
        %v233 = vld [vmem:[%s1 + $0x10] sm:$0xf]
        %v234 = vld [vmem:[%s1 + $0x14] sm:$0xf]
        %v235 = vld [vmem:[%s1 + $0x18] sm:$0xf]
        %v236 = vld [vmem:[%s1 + $0x1c] sm:$0xf]
        %v269 = vunpack.c.l.b16 %v197
        %v270 = vunpack.c.l.b16 %v198
        %v271 = vunpack.c.l.b16 %v199
        %v272 = vunpack.c.l.b16 %v200
        %v273 = vunpack.c.l.b16 %v201
        %v274 = vunpack.c.l.b16 %v202
        %v275 = vunpack.c.l.b16 %v203
        %v276 = vunpack.c.l.b16 %v204
        %v277 = vunpack.c.l.b16 %v205
        %v278 = vunpack.c.l.b16 %v206
        %v279 = vunpack.c.l.b16 %v207
        %v280 = vunpack.c.l.b16 %v208
        %v281 = vunpack.c.l.b16 %v209
        %v282 = vunpack.c.l.b16 %v210
        %v283 = vunpack.c.l.b16 %v211
        %v284 = vunpack.c.l.b16 %v212
        %v285 = vunpack.c.l.b16 %v213
        %v286 = vunpack.c.l.b16 %v214
        %v287 = vunpack.c.l.b16 %v215
        %v288 = vunpack.c.l.b16 %v216
        %v289 = vunpack.c.l.b16 %v217
        %v290 = vunpack.c.l.b16 %v218
        %v291 = vunpack.c.l.b16 %v219
        %v292 = vunpack.c.l.b16 %v220
        %v293 = vunpack.c.l.b16 %v221
        %v294 = vunpack.c.l.b16 %v222
        %v295 = vunpack.c.l.b16 %v223
        %v296 = vunpack.c.l.b16 %v224
        %v297 = vunpack.c.l.b16 %v225
        %v298 = vunpack.c.l.b16 %v226
        %v299 = vunpack.c.l.b16 %v227
        %v300 = vunpack.c.l.b16 %v228
        %v301 = vpack.c.b16 %v270, %v269
        %v302 = vpack.c.b16 %v272, %v271
        %v303 = vpack.c.b16 %v274, %v273
        %v304 = vpack.c.b16 %v276, %v275
        %v305 = vpack.c.b16 %v278, %v277
        %v306 = vpack.c.b16 %v280, %v279
        %v307 = vpack.c.b16 %v282, %v281
        %v308 = vpack.c.b16 %v284, %v283
        %v309 = vpack.c.b16 %v286, %v285
        %v310 = vpack.c.b16 %v288, %v287
        %v311 = vpack.c.b16 %v290, %v289
        %v312 = vpack.c.b16 %v292, %v291
        %v313 = vpack.c.b16 %v294, %v293
        %v314 = vpack.c.b16 %v296, %v295
        %v315 = vpack.c.b16 %v298, %v297
        %v316 = vpack.c.b16 %v300, %v299
        %v325 = vunpack.c.l.b16 %v229
        %v326 = vunpack.c.l.b16 %v230
        %v327 = vunpack.c.l.b16 %v231
        %v328 = vunpack.c.l.b16 %v232
        %v329 = vunpack.c.l.b16 %v233
        %v330 = vunpack.c.l.b16 %v234
        %v331 = vunpack.c.l.b16 %v235
        %v332 = vunpack.c.l.b16 %v236
        %v333 = vpack.c.b16 %v326, %v325
        %v334 = vpack.c.b16 %v328, %v327
        %v335 = vpack.c.b16 %v330, %v329
        %v336 = vpack.c.b16 %v332, %v331
        %vm341 = vcmask 523264
        %v343 = vsel %vm341, %v301, 0
        %v346 = vsel %vm341, %v302, 0
        %v349 = vsel %vm341, %v303, 0
        %v352 = vsel %vm341, %v304, 0
        %v355 = vsel %vm341, %v305, 0
        %v358 = vsel %vm341, %v306, 0
        %v361 = vsel %vm341, %v307, 0
        %v364 = vsel %vm341, %v308, 0
        %v367 = vsel %vm341, %v309, 0
        %v370 = vsel %vm341, %v310, 0
        %v373 = vsel %vm341, %v311, 0
        %v376 = vsel %vm341, %v312, 0
        %v379 = vsel %vm341, %v313, 0
        %v382 = vsel %vm341, %v314, 0
        %v385 = vsel %vm341, %v315, 0
        %v388 = vsel %vm341, %v316, 0
        %390 = vmatprep.subr.bf16.mxu0 0
        %391 = vmatpush1.bf16.msra.mxu0 %v333
        %392 = vmatprep.subr.bf16.mxu0 0
        %393 = vmatpush1.bf16.msra.mxu0 %v334
        %394 = vmatprep.subr.bf16.mxu0 0
        %395 = vmatpush1.bf16.msra.mxu0 %v335
        %396 = vmatprep.subr.bf16.mxu0 0
        %397 = vmatpush1.bf16.msra.mxu0 %v336
        %398 = vmatprep.subr.bf16.mxu0 0
        %399 = vmatpush1.bf16.msra.mxu0 0
        %400 = vmatprep.subr.bf16.mxu0 0
        %401 = vmatpush1.bf16.msra.mxu0 0
        %402 = vmatprep.subr.bf16.mxu0 0
        %403 = vmatpush1.bf16.msra.mxu0 0
        %404 = vmatprep.subr.bf16.mxu0 0
        %405 = vmatpush1.bf16.msra.mxu0 0
        %406 = vmatprep.subr.bf16.mxu0 0
        %407 = vmatpush1.bf16.msra.mxu0 0
        %408 = vmatprep.subr.bf16.mxu0 0
        %409 = vmatpush1.bf16.msra.mxu0 0
        %410 = vmatprep.subr.bf16.mxu0 0
        %411 = vmatpush1.bf16.msra.mxu0 0
        %412 = vmatprep.subr.bf16.mxu0 0
        %413 = vmatpush1.bf16.msra.mxu0 0
        %414 = vmatprep.subr.bf16.mxu0 0
        %415 = vmatpush1.bf16.msra.mxu0 0
        %416 = vmatprep.subr.bf16.mxu0 0
        %417 = vmatpush1.bf16.msra.mxu0 0
        %418 = vmatprep.subr.bf16.mxu0 0
        %419 = vmatpush1.bf16.msra.mxu0 0
        %420 = vmatprep.subr.bf16.mxu0 0
        %421 = vmatpush1.bf16.msra.mxu0 0
        %422 = vmatprep.mubr.bf16.mxu0 0
        %423 = vmatmul.mubr.bf16.gmra.mrb[0].mxu0 %v343
        %v424 = vpop.f32.mrb[0].mxu0
        %v425 = vadd.f32 0.0, %v424
        %v426 = vpop.f32.mrb[0].mxu0
        %v427 = vpop.f32.mrb[0].mxu0
        %v428 = vadd.f32 0.0, %v427
        %v429 = vpop.f32.mrb[0].mxu0
        %430 = vmatprep.mubr.bf16.mxu0 0
        %431 = vmatmul.mubr.bf16.gmra.mrb[0].mxu0 %v346
        %v432 = vpop.f32.mrb[0].mxu0
        %v433 = vadd.f32 0.0, %v432
        %v434 = vpop.f32.mrb[0].mxu0
        %v435 = vpop.f32.mrb[0].mxu0
        %v436 = vadd.f32 0.0, %v435
        %v437 = vpop.f32.mrb[0].mxu0
        %438 = vmatprep.mubr.bf16.mxu0 0
        %439 = vmatmul.mubr.bf16.gmra.mrb[0].mxu0 %v349
        %v440 = vpop.f32.mrb[0].mxu0
        %v441 = vadd.f32 0.0, %v440
        %v442 = vpop.f32.mrb[0].mxu0
        %v443 = vpop.f32.mrb[0].mxu0
        %v444 = vadd.f32 0.0, %v443
        %v445 = vpop.f32.mrb[0].mxu0
        %446 = vmatprep.mubr.bf16.mxu0 0
        %447 = vmatmul.mubr.bf16.gmra.mrb[0].mxu0 %v352
        %v448 = vpop.f32.mrb[0].mxu0
        %v449 = vadd.f32 0.0, %v448
        %v450 = vpop.f32.mrb[0].mxu0
        %v451 = vpop.f32.mrb[0].mxu0
        %v452 = vadd.f32 0.0, %v451
        %v453 = vpop.f32.mrb[0].mxu0
        %454 = vmatprep.mubr.bf16.mxu0 0
        %455 = vmatmul.mubr.bf16.gmra.mrb[0].mxu0 %v355
        %v456 = vpop.f32.mrb[0].mxu0
        %v457 = vadd.f32 0.0, %v456
        %v458 = vpop.f32.mrb[0].mxu0
        %v459 = vpop.f32.mrb[0].mxu0
        %v460 = vadd.f32 0.0, %v459
        %v461 = vpop.f32.mrb[0].mxu0
        %462 = vmatprep.mubr.bf16.mxu0 0
        %463 = vmatmul.mubr.bf16.gmra.mrb[0].mxu0 %v358
        %v464 = vpop.f32.mrb[0].mxu0
        %v465 = vadd.f32 0.0, %v464
        %v466 = vpop.f32.mrb[0].mxu0
        %v467 = vpop.f32.mrb[0].mxu0
        %v468 = vadd.f32 0.0, %v467
        %v469 = vpop.f32.mrb[0].mxu0
        %470 = vmatprep.mubr.bf16.mxu0 0
        %471 = vmatmul.mubr.bf16.gmra.mrb[0].mxu0 %v361
        %v472 = vpop.f32.mrb[0].mxu0
        %v473 = vadd.f32 0.0, %v472
        %v474 = vpop.f32.mrb[0].mxu0
        %v475 = vpop.f32.mrb[0].mxu0
        %v476 = vadd.f32 0.0, %v475
        %v477 = vpop.f32.mrb[0].mxu0
        %478 = vmatprep.mubr.bf16.mxu0 0
        %479 = vmatmul.mubr.bf16.gmra.mrb[0].mxu0 %v364
        %v480 = vpop.f32.mrb[0].mxu0
        %v481 = vadd.f32 0.0, %v480
        %v482 = vpop.f32.mrb[0].mxu0
        %v483 = vpop.f32.mrb[0].mxu0
        %v484 = vadd.f32 0.0, %v483
        %v485 = vpop.f32.mrb[0].mxu0
        %486 = vmatprep.mubr.bf16.mxu0 0
        %487 = vmatmul.mubr.bf16.gmra.mrb[0].mxu0 %v367
        %v488 = vpop.f32.mrb[0].mxu0
        %v489 = vadd.f32 0.0, %v488
        %v490 = vpop.f32.mrb[0].mxu0
        %v491 = vpop.f32.mrb[0].mxu0
        %v492 = vadd.f32 0.0, %v491
        %v493 = vpop.f32.mrb[0].mxu0
        %494 = vmatprep.mubr.bf16.mxu0 0
        %495 = vmatmul.mubr.bf16.gmra.mrb[0].mxu0 %v370
        %v496 = vpop.f32.mrb[0].mxu0
        %v497 = vadd.f32 0.0, %v496
        %v498 = vpop.f32.mrb[0].mxu0
        %v499 = vpop.f32.mrb[0].mxu0
        %v500 = vadd.f32 0.0, %v499
        %v501 = vpop.f32.mrb[0].mxu0
        %502 = vmatprep.mubr.bf16.mxu0 0
        %503 = vmatmul.mubr.bf16.gmra.mrb[0].mxu0 %v373
        %v504 = vpop.f32.mrb[0].mxu0
        %v505 = vadd.f32 0.0, %v504
        %v506 = vpop.f32.mrb[0].mxu0
        %v507 = vpop.f32.mrb[0].mxu0
        %v508 = vadd.f32 0.0, %v507
        %v509 = vpop.f32.mrb[0].mxu0
        %510 = vmatprep.mubr.bf16.mxu0 0
        %511 = vmatmul.mubr.bf16.gmra.mrb[0].mxu0 %v376
        %v512 = vpop.f32.mrb[0].mxu0
        %v513 = vadd.f32 0.0, %v512
        %v514 = vpop.f32.mrb[0].mxu0
        %v515 = vpop.f32.mrb[0].mxu0
        %v516 = vadd.f32 0.0, %v515
        %v517 = vpop.f32.mrb[0].mxu0
        %518 = vmatprep.mubr.bf16.mxu0 0
        %519 = vmatmul.mubr.bf16.gmra.mrb[0].mxu0 %v379
        %v520 = vpop.f32.mrb[0].mxu0
        %v521 = vadd.f32 0.0, %v520
        %v522 = vpop.f32.mrb[0].mxu0
        %v523 = vpop.f32.mrb[0].mxu0
        %v524 = vadd.f32 0.0, %v523
        %v525 = vpop.f32.mrb[0].mxu0
        %526 = vmatprep.mubr.bf16.mxu0 0
        %527 = vmatmul.mubr.bf16.gmra.mrb[0].mxu0 %v382
        %v528 = vpop.f32.mrb[0].mxu0
        %v529 = vadd.f32 0.0, %v528
        %v530 = vpop.f32.mrb[0].mxu0
        %v531 = vpop.f32.mrb[0].mxu0
        %v532 = vadd.f32 0.0, %v531
        %v533 = vpop.f32.mrb[0].mxu0
        %534 = vmatprep.mubr.bf16.mxu0 0
        %535 = vmatmul.mubr.bf16.gmra.mrb[0].mxu0 %v385
        %v536 = vpop.f32.mrb[0].mxu0
        %v537 = vadd.f32 0.0, %v536
        %v538 = vpop.f32.mrb[0].mxu0
        %v539 = vpop.f32.mrb[0].mxu0
        %v540 = vadd.f32 0.0, %v539
        %v541 = vpop.f32.mrb[0].mxu0
        %542 = vmatprep.mubr.bf16.mxu0 0
        %543 = vmatmul.mubr.bf16.gmra.mrb[0].mxu0 %v388
        %v544 = vpop.f32.mrb[0].mxu0
        %v545 = vadd.f32 0.0, %v544
        %v546 = vpop.f32.mrb[0].mxu0
        %v547 = vpop.f32.mrb[0].mxu0
        %v548 = vadd.f32 0.0, %v547
        %v549 = vpop.f32.mrb[0].mxu0
        %550 = vdwg.mxu0
        %v551 = vmax.f32 %v425, 0.0
        %v552 = vmax.f32 %v428, 0.0
        %v553 = vmax.f32 %v433, 0.0
        %v554 = vmax.f32 %v436, 0.0
        %v555 = vmax.f32 %v441, 0.0
        %v556 = vmax.f32 %v444, 0.0
        %v557 = vmax.f32 %v449, 0.0
        %v558 = vmax.f32 %v452, 0.0
        %v559 = vmax.f32 %v457, 0.0
        %v560 = vmax.f32 %v460, 0.0
        %v561 = vmax.f32 %v465, 0.0
        %v562 = vmax.f32 %v468, 0.0
        %v563 = vmax.f32 %v473, 0.0
        %v564 = vmax.f32 %v476, 0.0
        %v565 = vmax.f32 %v481, 0.0
        %v566 = vmax.f32 %v484, 0.0
        %v567 = vmax.f32 %v489, 0.0
        %v568 = vmax.f32 %v492, 0.0
        %v569 = vmax.f32 %v497, 0.0
        %v570 = vmax.f32 %v500, 0.0
        %v571 = vmax.f32 %v505, 0.0
        %v572 = vmax.f32 %v508, 0.0
        %v573 = vmax.f32 %v513, 0.0
        %v574 = vmax.f32 %v516, 0.0
        %v575 = vmax.f32 %v521, 0.0
        %v576 = vmax.f32 %v524, 0.0
        %v577 = vmax.f32 %v529, 0.0
        %v578 = vmax.f32 %v532, 0.0
        %v579 = vmax.f32 %v537, 0.0
        %v580 = vmax.f32 %v540, 0.0
        %v581 = vmax.f32 %v545, 0.0
        %v582 = vmax.f32 %v548, 0.0
        %v583 = vlaneseq
        %v584 = vshrl.u32 %v583, 7
        %v585 = vadd.s32 %v584, 8
        %v586 = vadd.s32 %v584, 16
        %v587 = vadd.s32 %v584, 24
        %v588 = vadd.s32 %v584, 32
        %v589 = vadd.s32 %v584, 40
        %v590 = vadd.s32 %v584, 48
        %v591 = vadd.s32 %v584, 56
        %v592 = vadd.s32 %v584, 64
        %v593 = vadd.s32 %v584, 72
        %v594 = vadd.s32 %v584, 80
        %v595 = vadd.s32 %v584, 88
        %v596 = vadd.s32 %v584, 96
        %v597 = vadd.s32 %v584, 104
        %v598 = vadd.s32 %v584, 112
        %v599 = vadd.s32 %v584, 120
        %v600 = vadd.s32 %v584, 128
        %v601 = vadd.s32 %v584, 136
        %v602 = vadd.s32 %v584, 144
        %v603 = vadd.s32 %v584, 152
        %v604 = vadd.s32 %v584, 160
        %v605 = vadd.s32 %v584, 168
        %v606 = vadd.s32 %v584, 176
        %v607 = vadd.s32 %v584, 184
        %v608 = vadd.s32 %v584, 192
        %v609 = vadd.s32 %v584, 200
        %v610 = vadd.s32 %v584, 208
        %v611 = vadd.s32 %v584, 216
        %v612 = vadd.s32 %v584, 224
        %v613 = vadd.s32 %v584, 232
        %v614 = vadd.s32 %v584, 240
        %v615 = vadd.s32 %v584, 248
        %vm616 = vcmp.lt.s32.totalorder %v584, 0
        %v617 = vsub.s32 0, %v584
        %v618 = vsel %vm616, %v617, %v584
        %v619 = vshrl.u32 %v618, 4
        %v620 = vand.u32 %v618, 15
        %v621 = vsub.s32 0, %v620
        %v622 = vsel %vm616, %v621, %v620
        %vm623 = vcmp.lt.s32.totalorder %v585, 0
        %v624 = vsub.s32 0, %v585
        %v625 = vsel %vm623, %v624, %v585
        %v626 = vshrl.u32 %v625, 4
        %v627 = vand.u32 %v625, 15
        %v628 = vsub.s32 0, %v627
        %v629 = vsel %vm623, %v628, %v627
        %vm630 = vcmp.lt.s32.totalorder %v586, 0
        %v631 = vsub.s32 0, %v586
        %v632 = vsel %vm630, %v631, %v586
        %v633 = vshrl.u32 %v632, 4
        %v634 = vand.u32 %v632, 15
        %v635 = vsub.s32 0, %v634
        %v636 = vsel %vm630, %v635, %v634
        %vm637 = vcmp.lt.s32.totalorder %v587, 0
        %v638 = vsub.s32 0, %v587
        %v639 = vsel %vm637, %v638, %v587
        %v640 = vshrl.u32 %v639, 4
        %v641 = vand.u32 %v639, 15
        %v642 = vsub.s32 0, %v641
        %v643 = vsel %vm637, %v642, %v641
        %vm644 = vcmp.lt.s32.totalorder %v588, 0
        %v645 = vsub.s32 0, %v588
        %v646 = vsel %vm644, %v645, %v588
        %v647 = vshrl.u32 %v646, 4
        %v648 = vand.u32 %v646, 15
        %v649 = vsub.s32 0, %v648
        %v650 = vsel %vm644, %v649, %v648
        %vm651 = vcmp.lt.s32.totalorder %v589, 0
        %v652 = vsub.s32 0, %v589
        %v653 = vsel %vm651, %v652, %v589
        %v654 = vshrl.u32 %v653, 4
        %v655 = vand.u32 %v653, 15
        %v656 = vsub.s32 0, %v655
        %v657 = vsel %vm651, %v656, %v655
        %vm658 = vcmp.lt.s32.totalorder %v590, 0
        %v659 = vsub.s32 0, %v590
        %v660 = vsel %vm658, %v659, %v590
        %v661 = vshrl.u32 %v660, 4
        %v662 = vand.u32 %v660, 15
        %v663 = vsub.s32 0, %v662
        %v664 = vsel %vm658, %v663, %v662
        %vm665 = vcmp.lt.s32.totalorder %v591, 0
        %v666 = vsub.s32 0, %v591
        %v667 = vsel %vm665, %v666, %v591
        %v668 = vshrl.u32 %v667, 4
        %v669 = vand.u32 %v667, 15
        %v670 = vsub.s32 0, %v669
        %v671 = vsel %vm665, %v670, %v669
        %vm672 = vcmp.lt.s32.totalorder %v592, 0
        %v673 = vsub.s32 0, %v592
        %v674 = vsel %vm672, %v673, %v592
        %v675 = vshrl.u32 %v674, 4
        %v676 = vand.u32 %v674, 15
        %v677 = vsub.s32 0, %v676
        %v678 = vsel %vm672, %v677, %v676
        %vm679 = vcmp.lt.s32.totalorder %v593, 0
        %v680 = vsub.s32 0, %v593
        %v681 = vsel %vm679, %v680, %v593
        %v682 = vshrl.u32 %v681, 4
        %v683 = vand.u32 %v681, 15
        %v684 = vsub.s32 0, %v683
        %v685 = vsel %vm679, %v684, %v683
        %vm686 = vcmp.lt.s32.totalorder %v594, 0
        %v687 = vsub.s32 0, %v594
        %v688 = vsel %vm686, %v687, %v594
        %v689 = vshrl.u32 %v688, 4
        %v690 = vand.u32 %v688, 15
        %v691 = vsub.s32 0, %v690
        %v692 = vsel %vm686, %v691, %v690
        %vm693 = vcmp.lt.s32.totalorder %v595, 0
        %v694 = vsub.s32 0, %v595
        %v695 = vsel %vm693, %v694, %v595
        %v696 = vshrl.u32 %v695, 4
        %v697 = vand.u32 %v695, 15
        %v698 = vsub.s32 0, %v697
        %v699 = vsel %vm693, %v698, %v697
        %vm700 = vcmp.lt.s32.totalorder %v596, 0
        %v701 = vsub.s32 0, %v596
        %v702 = vsel %vm700, %v701, %v596
        %v703 = vshrl.u32 %v702, 4
        %v704 = vand.u32 %v702, 15
        %v705 = vsub.s32 0, %v704
        %v706 = vsel %vm700, %v705, %v704
        %vm707 = vcmp.lt.s32.totalorder %v597, 0
        %v708 = vsub.s32 0, %v597
        %v709 = vsel %vm707, %v708, %v597
        %v710 = vshrl.u32 %v709, 4
        %v711 = vand.u32 %v709, 15
        %v712 = vsub.s32 0, %v711
        %v713 = vsel %vm707, %v712, %v711
        %vm714 = vcmp.lt.s32.totalorder %v598, 0
        %v715 = vsub.s32 0, %v598
        %v716 = vsel %vm714, %v715, %v598
        %v717 = vshrl.u32 %v716, 4
        %v718 = vand.u32 %v716, 15
        %v719 = vsub.s32 0, %v718
        %v720 = vsel %vm714, %v719, %v718
        %vm721 = vcmp.lt.s32.totalorder %v599, 0
        %v722 = vsub.s32 0, %v599
        %v723 = vsel %vm721, %v722, %v599
        %v724 = vshrl.u32 %v723, 4
        %v725 = vand.u32 %v723, 15
        %v726 = vsub.s32 0, %v725
        %v727 = vsel %vm721, %v726, %v725
        %vm728 = vcmp.lt.s32.totalorder %v600, 0
        %v729 = vsub.s32 0, %v600
        %v730 = vsel %vm728, %v729, %v600
        %v731 = vshrl.u32 %v730, 4
        %v732 = vand.u32 %v730, 15
        %v733 = vsub.s32 0, %v732
        %v734 = vsel %vm728, %v733, %v732
        %vm735 = vcmp.lt.s32.totalorder %v601, 0
        %v736 = vsub.s32 0, %v601
        %v737 = vsel %vm735, %v736, %v601
        %v738 = vshrl.u32 %v737, 4
        %v739 = vand.u32 %v737, 15
        %v740 = vsub.s32 0, %v739
        %v741 = vsel %vm735, %v740, %v739
        %vm742 = vcmp.lt.s32.totalorder %v602, 0
        %v743 = vsub.s32 0, %v602
        %v744 = vsel %vm742, %v743, %v602
        %v745 = vshrl.u32 %v744, 4
        %v746 = vand.u32 %v744, 15
        %v747 = vsub.s32 0, %v746
        %v748 = vsel %vm742, %v747, %v746
        %vm749 = vcmp.lt.s32.totalorder %v603, 0
        %v750 = vsub.s32 0, %v603
        %v751 = vsel %vm749, %v750, %v603
        %v752 = vshrl.u32 %v751, 4
        %v753 = vand.u32 %v751, 15
        %v754 = vsub.s32 0, %v753
        %v755 = vsel %vm749, %v754, %v753
        %vm756 = vcmp.lt.s32.totalorder %v604, 0
        %v757 = vsub.s32 0, %v604
        %v758 = vsel %vm756, %v757, %v604
        %v759 = vshrl.u32 %v758, 4
        %v760 = vand.u32 %v758, 15
        %v761 = vsub.s32 0, %v760
        %v762 = vsel %vm756, %v761, %v760
        %vm763 = vcmp.lt.s32.totalorder %v605, 0
        %v764 = vsub.s32 0, %v605
        %v765 = vsel %vm763, %v764, %v605
        %v766 = vshrl.u32 %v765, 4
        %v767 = vand.u32 %v765, 15
        %v768 = vsub.s32 0, %v767
        %v769 = vsel %vm763, %v768, %v767
        %vm770 = vcmp.lt.s32.totalorder %v606, 0
        %v771 = vsub.s32 0, %v606
        %v772 = vsel %vm770, %v771, %v606
        %v773 = vshrl.u32 %v772, 4
        %v774 = vand.u32 %v772, 15
        %v775 = vsub.s32 0, %v774
        %v776 = vsel %vm770, %v775, %v774
        %vm777 = vcmp.lt.s32.totalorder %v607, 0
        %v778 = vsub.s32 0, %v607
        %v779 = vsel %vm777, %v778, %v607
        %v780 = vshrl.u32 %v779, 4
        %v781 = vand.u32 %v779, 15
        %v782 = vsub.s32 0, %v781
        %v783 = vsel %vm777, %v782, %v781
        %vm784 = vcmp.lt.s32.totalorder %v608, 0
        %v785 = vsub.s32 0, %v608
        %v786 = vsel %vm784, %v785, %v608
        %v787 = vshrl.u32 %v786, 4
        %v788 = vand.u32 %v786, 15
        %v789 = vsub.s32 0, %v788
        %v790 = vsel %vm784, %v789, %v788
        %vm791 = vcmp.lt.s32.totalorder %v609, 0
        %v792 = vsub.s32 0, %v609
        %v793 = vsel %vm791, %v792, %v609
        %v794 = vshrl.u32 %v793, 4
        %v795 = vand.u32 %v793, 15
        %v796 = vsub.s32 0, %v795
        %v797 = vsel %vm791, %v796, %v795
        %vm798 = vcmp.lt.s32.totalorder %v610, 0
        %v799 = vsub.s32 0, %v610
        %v800 = vsel %vm798, %v799, %v610
        %v801 = vshrl.u32 %v800, 4
        %v802 = vand.u32 %v800, 15
        %v803 = vsub.s32 0, %v802
        %v804 = vsel %vm798, %v803, %v802
        %vm805 = vcmp.lt.s32.totalorder %v611, 0
        %v806 = vsub.s32 0, %v611
        %v807 = vsel %vm805, %v806, %v611
        %v808 = vshrl.u32 %v807, 4
        %v809 = vand.u32 %v807, 15
        %v810 = vsub.s32 0, %v809
        %v811 = vsel %vm805, %v810, %v809
        %vm812 = vcmp.lt.s32.totalorder %v612, 0
        %v813 = vsub.s32 0, %v612
        %v814 = vsel %vm812, %v813, %v612
        %v815 = vshrl.u32 %v814, 4
        %v816 = vand.u32 %v814, 15
        %v817 = vsub.s32 0, %v816
        %v818 = vsel %vm812, %v817, %v816
        %vm819 = vcmp.lt.s32.totalorder %v613, 0
        %v820 = vsub.s32 0, %v613
        %v821 = vsel %vm819, %v820, %v613
        %v822 = vshrl.u32 %v821, 4
        %v823 = vand.u32 %v821, 15
        %v824 = vsub.s32 0, %v823
        %v825 = vsel %vm819, %v824, %v823
        %vm826 = vcmp.lt.s32.totalorder %v614, 0
        %v827 = vsub.s32 0, %v614
        %v828 = vsel %vm826, %v827, %v614
        %v829 = vshrl.u32 %v828, 4
        %v830 = vand.u32 %v828, 15
        %v831 = vsub.s32 0, %v830
        %v832 = vsel %vm826, %v831, %v830
        %vm833 = vcmp.lt.s32.totalorder %v615, 0
        %v834 = vsub.s32 0, %v615
        %v835 = vsel %vm833, %v834, %v615
        %v836 = vshrl.u32 %v835, 4
        %v837 = vand.u32 %v835, 15
        %v838 = vsub.s32 0, %v837
        %v839 = vsel %vm833, %v838, %v837
        %vm840 = vcmp.ne.s32.totalorder %v622, 0
        %vm841 = vcmp.ne.s32.totalorder %v629, 0
        %vm842 = vcmp.ne.s32.totalorder %v636, 0
        %vm843 = vcmp.ne.s32.totalorder %v643, 0
        %vm844 = vcmp.ne.s32.totalorder %v650, 0
        %vm845 = vcmp.ne.s32.totalorder %v657, 0
        %vm846 = vcmp.ne.s32.totalorder %v664, 0
        %vm847 = vcmp.ne.s32.totalorder %v671, 0
        %vm848 = vcmp.ne.s32.totalorder %v678, 0
        %vm849 = vcmp.ne.s32.totalorder %v685, 0
        %vm850 = vcmp.ne.s32.totalorder %v692, 0
        %vm851 = vcmp.ne.s32.totalorder %v699, 0
        %vm852 = vcmp.ne.s32.totalorder %v706, 0
        %vm853 = vcmp.ne.s32.totalorder %v713, 0
        %vm854 = vcmp.ne.s32.totalorder %v720, 0
        %vm855 = vcmp.ne.s32.totalorder %v727, 0
        %vm856 = vcmp.ne.s32.totalorder %v734, 0
        %vm857 = vcmp.ne.s32.totalorder %v741, 0
        %vm858 = vcmp.ne.s32.totalorder %v748, 0
        %vm859 = vcmp.ne.s32.totalorder %v755, 0
        %vm860 = vcmp.ne.s32.totalorder %v762, 0
        %vm861 = vcmp.ne.s32.totalorder %v769, 0
        %vm862 = vcmp.ne.s32.totalorder %v776, 0
        %vm863 = vcmp.ne.s32.totalorder %v783, 0
        %vm864 = vcmp.ne.s32.totalorder %v790, 0
        %vm865 = vcmp.ne.s32.totalorder %v797, 0
        %vm866 = vcmp.ne.s32.totalorder %v804, 0
        %vm867 = vcmp.ne.s32.totalorder %v811, 0
        %vm868 = vcmp.ne.s32.totalorder %v818, 0
        %vm869 = vcmp.ne.s32.totalorder %v825, 0
        %vm870 = vcmp.ne.s32.totalorder %v832, 0
        %vm871 = vcmp.ne.s32.totalorder %v839, 0
        %vm872 = vcmp.lt.s32.totalorder %v622, 0
        %vm873 = vcmp.lt.s32.totalorder %v629, 0
        %vm874 = vcmp.lt.s32.totalorder %v636, 0
        %vm875 = vcmp.lt.s32.totalorder %v643, 0
        %vm876 = vcmp.lt.s32.totalorder %v650, 0
        %vm877 = vcmp.lt.s32.totalorder %v657, 0
        %vm878 = vcmp.lt.s32.totalorder %v664, 0
        %vm879 = vcmp.lt.s32.totalorder %v671, 0
        %vm880 = vcmp.lt.s32.totalorder %v678, 0
        %vm881 = vcmp.lt.s32.totalorder %v685, 0
        %vm882 = vcmp.lt.s32.totalorder %v692, 0
        %vm883 = vcmp.lt.s32.totalorder %v699, 0
        %vm884 = vcmp.lt.s32.totalorder %v706, 0
        %vm885 = vcmp.lt.s32.totalorder %v713, 0
        %vm886 = vcmp.lt.s32.totalorder %v720, 0
        %vm887 = vcmp.lt.s32.totalorder %v727, 0
        %vm888 = vcmp.lt.s32.totalorder %v734, 0
        %vm889 = vcmp.lt.s32.totalorder %v741, 0
        %vm890 = vcmp.lt.s32.totalorder %v748, 0
        %vm891 = vcmp.lt.s32.totalorder %v755, 0
        %vm892 = vcmp.lt.s32.totalorder %v762, 0
        %vm893 = vcmp.lt.s32.totalorder %v769, 0
        %vm894 = vcmp.lt.s32.totalorder %v776, 0
        %vm895 = vcmp.lt.s32.totalorder %v783, 0
        %vm896 = vcmp.lt.s32.totalorder %v790, 0
        %vm897 = vcmp.lt.s32.totalorder %v797, 0
        %vm898 = vcmp.lt.s32.totalorder %v804, 0
        %vm899 = vcmp.lt.s32.totalorder %v811, 0
        %vm900 = vcmp.lt.s32.totalorder %v818, 0
        %vm901 = vcmp.lt.s32.totalorder %v825, 0
        %vm902 = vcmp.lt.s32.totalorder %v832, 0
        %vm903 = vcmp.lt.s32.totalorder %v839, 0
        %vm904 = vmand %vm872, %vm840
        %vm905 = vmand %vm873, %vm841
        %vm906 = vmand %vm874, %vm842
        %vm907 = vmand %vm875, %vm843
        %vm908 = vmand %vm876, %vm844
        %vm909 = vmand %vm877, %vm845
        %vm910 = vmand %vm878, %vm846
        %vm911 = vmand %vm879, %vm847
        %vm912 = vmand %vm880, %vm848
        %vm913 = vmand %vm881, %vm849
        %vm914 = vmand %vm882, %vm850
        %vm915 = vmand %vm883, %vm851
        %vm916 = vmand %vm884, %vm852
        %vm917 = vmand %vm885, %vm853
        %vm918 = vmand %vm886, %vm854
        %vm919 = vmand %vm887, %vm855
        %vm920 = vmand %vm888, %vm856
        %vm921 = vmand %vm889, %vm857
        %vm922 = vmand %vm890, %vm858
        %vm923 = vmand %vm891, %vm859
        %vm924 = vmand %vm892, %vm860
        %vm925 = vmand %vm893, %vm861
        %vm926 = vmand %vm894, %vm862
        %vm927 = vmand %vm895, %vm863
        %vm928 = vmand %vm896, %vm864
        %vm929 = vmand %vm897, %vm865
        %vm930 = vmand %vm898, %vm866
        %vm931 = vmand %vm899, %vm867
        %vm932 = vmand %vm900, %vm868
        %vm933 = vmand %vm901, %vm869
        %vm934 = vmand %vm902, %vm870
        %vm935 = vmand %vm903, %vm871
        %v936 = vadd.s32 %v622, 16
        %v937 = vadd.s32 %v629, 16
        %v938 = vadd.s32 %v636, 16
        %v939 = vadd.s32 %v643, 16
        %v940 = vadd.s32 %v650, 16
        %v941 = vadd.s32 %v657, 16
        %v942 = vadd.s32 %v664, 16
        %v943 = vadd.s32 %v671, 16
        %v944 = vadd.s32 %v678, 16
        %v945 = vadd.s32 %v685, 16
        %v946 = vadd.s32 %v692, 16
        %v947 = vadd.s32 %v699, 16
        %v948 = vadd.s32 %v706, 16
        %v949 = vadd.s32 %v713, 16
        %v950 = vadd.s32 %v720, 16
        %v951 = vadd.s32 %v727, 16
        %v952 = vadd.s32 %v734, 16
        %v953 = vadd.s32 %v741, 16
        %v954 = vadd.s32 %v748, 16
        %v955 = vadd.s32 %v755, 16
        %v956 = vadd.s32 %v762, 16
        %v957 = vadd.s32 %v769, 16
        %v958 = vadd.s32 %v776, 16
        %v959 = vadd.s32 %v783, 16
        %v960 = vadd.s32 %v790, 16
        %v961 = vadd.s32 %v797, 16
        %v962 = vadd.s32 %v804, 16
        %v963 = vadd.s32 %v811, 16
        %v964 = vadd.s32 %v818, 16
        %v965 = vadd.s32 %v825, 16
        %v966 = vadd.s32 %v832, 16
        %v967 = vadd.s32 %v839, 16
        %v968 = vsel %vm904, %v936, %v622
        %v969 = vsel %vm905, %v937, %v629
        %v970 = vsel %vm906, %v938, %v636
        %v971 = vsel %vm907, %v939, %v643
        %v972 = vsel %vm908, %v940, %v650
        %v973 = vsel %vm909, %v941, %v657
        %v974 = vsel %vm910, %v942, %v664
        %v975 = vsel %vm911, %v943, %v671
        %v976 = vsel %vm912, %v944, %v678
        %v977 = vsel %vm913, %v945, %v685
        %v978 = vsel %vm914, %v946, %v692
        %v979 = vsel %vm915, %v947, %v699
        %v980 = vsel %vm916, %v948, %v706
        %v981 = vsel %vm917, %v949, %v713
        %v982 = vsel %vm918, %v950, %v720
        %v983 = vsel %vm919, %v951, %v727
        %v984 = vsel %vm920, %v952, %v734
        %v985 = vsel %vm921, %v953, %v741
        %v986 = vsel %vm922, %v954, %v748
        %v987 = vsel %vm923, %v955, %v755
        %v988 = vsel %vm924, %v956, %v762
        %v989 = vsel %vm925, %v957, %v769
        %v990 = vsel %vm926, %v958, %v776
        %v991 = vsel %vm927, %v959, %v783
        %v992 = vsel %vm928, %v960, %v790
        %v993 = vsel %vm929, %v961, %v797
        %v994 = vsel %vm930, %v962, %v804
        %v995 = vsel %vm931, %v963, %v811
        %v996 = vsel %vm932, %v964, %v818
        %v997 = vsel %vm933, %v965, %v825
        %v998 = vsel %vm934, %v966, %v832
        %v999 = vsel %vm935, %v967, %v839
        %vm1000 = vcmp.eq.s32.totalorder %v968, 15
        %vm1001 = vcmp.eq.s32.totalorder %v969, 15
        %vm1002 = vcmp.eq.s32.totalorder %v970, 15
        %vm1003 = vcmp.eq.s32.totalorder %v971, 15
        %vm1004 = vcmp.eq.s32.totalorder %v972, 15
        %vm1005 = vcmp.eq.s32.totalorder %v973, 15
        %vm1006 = vcmp.eq.s32.totalorder %v974, 15
        %vm1007 = vcmp.eq.s32.totalorder %v975, 15
        %vm1008 = vcmp.eq.s32.totalorder %v976, 15
        %vm1009 = vcmp.eq.s32.totalorder %v977, 15
        %vm1010 = vcmp.eq.s32.totalorder %v978, 15
        %vm1011 = vcmp.eq.s32.totalorder %v979, 15
        %vm1012 = vcmp.eq.s32.totalorder %v980, 15
        %vm1013 = vcmp.eq.s32.totalorder %v981, 15
        %vm1014 = vcmp.eq.s32.totalorder %v982, 15
        %vm1015 = vcmp.eq.s32.totalorder %v983, 15
        %vm1016 = vcmp.eq.s32.totalorder %v984, 15
        %vm1017 = vcmp.eq.s32.totalorder %v985, 15
        %vm1018 = vcmp.eq.s32.totalorder %v986, 15
        %vm1019 = vcmp.eq.s32.totalorder %v987, 15
        %vm1020 = vcmp.eq.s32.totalorder %v988, 15
        %vm1021 = vcmp.eq.s32.totalorder %v989, 15
        %vm1022 = vcmp.eq.s32.totalorder %v990, 15
        %vm1023 = vcmp.eq.s32.totalorder %v991, 15
        %vm1024 = vcmp.eq.s32.totalorder %v992, 15
        %vm1025 = vcmp.eq.s32.totalorder %v993, 15
        %vm1026 = vcmp.eq.s32.totalorder %v994, 15
        %vm1027 = vcmp.eq.s32.totalorder %v995, 15
        %vm1028 = vcmp.eq.s32.totalorder %v996, 15
        %vm1029 = vcmp.eq.s32.totalorder %v997, 15
        %vm1030 = vcmp.eq.s32.totalorder %v998, 15
        %vm1031 = vcmp.eq.s32.totalorder %v999, 15
        %v1032 = vsel %vm1000, 1, 0
        %v1033 = vsel %vm1001, 1, 0
        %v1034 = vsel %vm1002, 1, 0
        %v1035 = vsel %vm1003, 1, 0
        %v1036 = vsel %vm1004, 1, 0
        %v1037 = vsel %vm1005, 1, 0
        %v1038 = vsel %vm1006, 1, 0
        %v1039 = vsel %vm1007, 1, 0
        %v1040 = vsel %vm1008, 1, 0
        %v1041 = vsel %vm1009, 1, 0
        %v1042 = vsel %vm1010, 1, 0
        %v1043 = vsel %vm1011, 1, 0
        %v1044 = vsel %vm1012, 1, 0
        %v1045 = vsel %vm1013, 1, 0
        %v1046 = vsel %vm1014, 1, 0
        %v1047 = vsel %vm1015, 1, 0
        %v1048 = vsel %vm1016, 1, 0
        %v1049 = vsel %vm1017, 1, 0
        %v1050 = vsel %vm1018, 1, 0
        %v1051 = vsel %vm1019, 1, 0
        %v1052 = vsel %vm1020, 1, 0
        %v1053 = vsel %vm1021, 1, 0
        %v1054 = vsel %vm1022, 1, 0
        %v1055 = vsel %vm1023, 1, 0
        %v1056 = vsel %vm1024, 1, 0
        %v1057 = vsel %vm1025, 1, 0
        %v1058 = vsel %vm1026, 1, 0
        %v1059 = vsel %vm1027, 1, 0
        %v1060 = vsel %vm1028, 1, 0
        %v1061 = vsel %vm1029, 1, 0
        %v1062 = vsel %vm1030, 1, 0
        %v1063 = vsel %vm1031, 1, 0
        %vm1064 = vcmp.eq.s32.totalorder %v1032, 1
        %vm1065 = vcmp.eq.s32.totalorder %v1033, 1
        %vm1066 = vcmp.eq.s32.totalorder %v1034, 1
        %vm1067 = vcmp.eq.s32.totalorder %v1035, 1
        %vm1068 = vcmp.eq.s32.totalorder %v1036, 1
        %vm1069 = vcmp.eq.s32.totalorder %v1037, 1
        %vm1070 = vcmp.eq.s32.totalorder %v1038, 1
        %vm1071 = vcmp.eq.s32.totalorder %v1039, 1
        %vm1072 = vcmp.eq.s32.totalorder %v1040, 1
        %vm1073 = vcmp.eq.s32.totalorder %v1041, 1
        %vm1074 = vcmp.eq.s32.totalorder %v1042, 1
        %vm1075 = vcmp.eq.s32.totalorder %v1043, 1
        %vm1076 = vcmp.eq.s32.totalorder %v1044, 1
        %vm1077 = vcmp.eq.s32.totalorder %v1045, 1
        %vm1078 = vcmp.eq.s32.totalorder %v1046, 1
        %vm1079 = vcmp.eq.s32.totalorder %v1047, 1
        %vm1080 = vcmp.eq.s32.totalorder %v1048, 1
        %vm1081 = vcmp.eq.s32.totalorder %v1049, 1
        %vm1082 = vcmp.eq.s32.totalorder %v1050, 1
        %vm1083 = vcmp.eq.s32.totalorder %v1051, 1
        %vm1084 = vcmp.eq.s32.totalorder %v1052, 1
        %vm1085 = vcmp.eq.s32.totalorder %v1053, 1
        %vm1086 = vcmp.eq.s32.totalorder %v1054, 1
        %vm1087 = vcmp.eq.s32.totalorder %v1055, 1
        %vm1088 = vcmp.eq.s32.totalorder %v1056, 1
        %vm1089 = vcmp.eq.s32.totalorder %v1057, 1
        %vm1090 = vcmp.eq.s32.totalorder %v1058, 1
        %vm1091 = vcmp.eq.s32.totalorder %v1059, 1
        %vm1092 = vcmp.eq.s32.totalorder %v1060, 1
        %vm1093 = vcmp.eq.s32.totalorder %v1061, 1
        %vm1094 = vcmp.eq.s32.totalorder %v1062, 1
        %vm1095 = vcmp.eq.s32.totalorder %v1063, 1
        %v1096 = vsel %vm1064, 0.0, %v551
        %v1097 = vsel %vm1065, 0.0, %v552
        %v1098 = vsel %vm1066, 0.0, %v553
        %v1099 = vsel %vm1067, 0.0, %v554
        %v1100 = vsel %vm1068, 0.0, %v555
        %v1101 = vsel %vm1069, 0.0, %v556
        %v1102 = vsel %vm1070, 0.0, %v557
        %v1103 = vsel %vm1071, 0.0, %v558
        %v1104 = vsel %vm1072, 0.0, %v559
        %v1105 = vsel %vm1073, 0.0, %v560
        %v1106 = vsel %vm1074, 0.0, %v561
        %v1107 = vsel %vm1075, 0.0, %v562
        %v1108 = vsel %vm1076, 0.0, %v563
        %v1109 = vsel %vm1077, 0.0, %v564
        %v1110 = vsel %vm1078, 0.0, %v565
        %v1111 = vsel %vm1079, 0.0, %v566
        %v1112 = vsel %vm1080, 0.0, %v567
        %v1113 = vsel %vm1081, 0.0, %v568
        %v1114 = vsel %vm1082, 0.0, %v569
        %v1115 = vsel %vm1083, 0.0, %v570
        %v1116 = vsel %vm1084, 0.0, %v571
        %v1117 = vsel %vm1085, 0.0, %v572
        %v1118 = vsel %vm1086, 0.0, %v573
        %v1119 = vsel %vm1087, 0.0, %v574
        %v1120 = vsel %vm1088, 0.0, %v575
        %v1121 = vsel %vm1089, 0.0, %v576
        %v1122 = vsel %vm1090, 0.0, %v577
        %v1123 = vsel %vm1091, 0.0, %v578
        %v1124 = vsel %vm1092, 0.0, %v579
        %v1125 = vsel %vm1093, 0.0, %v580
        %v1126 = vsel %vm1094, 0.0, %v581
        %v1127 = vsel %vm1095, 0.0, %v582
        %vm1128 = vcmp.eq.s32.totalorder %v968, 0
        %vm1129 = vcmp.eq.s32.totalorder %v969, 0
        %vm1130 = vcmp.eq.s32.totalorder %v970, 0
        %vm1131 = vcmp.eq.s32.totalorder %v971, 0
        %vm1132 = vcmp.eq.s32.totalorder %v972, 0
        %vm1133 = vcmp.eq.s32.totalorder %v973, 0
        %vm1134 = vcmp.eq.s32.totalorder %v974, 0
        %vm1135 = vcmp.eq.s32.totalorder %v975, 0
        %vm1136 = vcmp.eq.s32.totalorder %v976, 0
        %vm1137 = vcmp.eq.s32.totalorder %v977, 0
        %vm1138 = vcmp.eq.s32.totalorder %v978, 0
        %vm1139 = vcmp.eq.s32.totalorder %v979, 0
        %vm1140 = vcmp.eq.s32.totalorder %v980, 0
        %vm1141 = vcmp.eq.s32.totalorder %v981, 0
        %vm1142 = vcmp.eq.s32.totalorder %v982, 0
        %vm1143 = vcmp.eq.s32.totalorder %v983, 0
        %vm1144 = vcmp.eq.s32.totalorder %v984, 0
        %vm1145 = vcmp.eq.s32.totalorder %v985, 0
        %vm1146 = vcmp.eq.s32.totalorder %v986, 0
        %vm1147 = vcmp.eq.s32.totalorder %v987, 0
        %vm1148 = vcmp.eq.s32.totalorder %v988, 0
        %vm1149 = vcmp.eq.s32.totalorder %v989, 0
        %vm1150 = vcmp.eq.s32.totalorder %v990, 0
        %vm1151 = vcmp.eq.s32.totalorder %v991, 0
        %vm1152 = vcmp.eq.s32.totalorder %v992, 0
        %vm1153 = vcmp.eq.s32.totalorder %v993, 0
        %vm1154 = vcmp.eq.s32.totalorder %v994, 0
        %vm1155 = vcmp.eq.s32.totalorder %v995, 0
        %vm1156 = vcmp.eq.s32.totalorder %v996, 0
        %vm1157 = vcmp.eq.s32.totalorder %v997, 0
        %vm1158 = vcmp.eq.s32.totalorder %v998, 0
        %vm1159 = vcmp.eq.s32.totalorder %v999, 0
        %v1160 = vsel %vm1128, 1, 0
        %v1161 = vsel %vm1129, 1, 0
        %v1162 = vsel %vm1130, 1, 0
        %v1163 = vsel %vm1131, 1, 0
        %v1164 = vsel %vm1132, 1, 0
        %v1165 = vsel %vm1133, 1, 0
        %v1166 = vsel %vm1134, 1, 0
        %v1167 = vsel %vm1135, 1, 0
        %v1168 = vsel %vm1136, 1, 0
        %v1169 = vsel %vm1137, 1, 0
        %v1170 = vsel %vm1138, 1, 0
        %v1171 = vsel %vm1139, 1, 0
        %v1172 = vsel %vm1140, 1, 0
        %v1173 = vsel %vm1141, 1, 0
        %v1174 = vsel %vm1142, 1, 0
        %v1175 = vsel %vm1143, 1, 0
        %v1176 = vsel %vm1144, 1, 0
        %v1177 = vsel %vm1145, 1, 0
        %v1178 = vsel %vm1146, 1, 0
        %v1179 = vsel %vm1147, 1, 0
        %v1180 = vsel %vm1148, 1, 0
        %v1181 = vsel %vm1149, 1, 0
        %v1182 = vsel %vm1150, 1, 0
        %v1183 = vsel %vm1151, 1, 0
        %v1184 = vsel %vm1152, 1, 0
        %v1185 = vsel %vm1153, 1, 0
        %v1186 = vsel %vm1154, 1, 0
        %v1187 = vsel %vm1155, 1, 0
        %v1188 = vsel %vm1156, 1, 0
        %v1189 = vsel %vm1157, 1, 0
        %v1190 = vsel %vm1158, 1, 0
        %v1191 = vsel %vm1159, 1, 0
        %vm1192 = vcmp.eq.s32.totalorder %v1160, 1
        %vm1193 = vcmp.eq.s32.totalorder %v1161, 1
        %vm1194 = vcmp.eq.s32.totalorder %v1162, 1
        %vm1195 = vcmp.eq.s32.totalorder %v1163, 1
        %vm1196 = vcmp.eq.s32.totalorder %v1164, 1
        %vm1197 = vcmp.eq.s32.totalorder %v1165, 1
        %vm1198 = vcmp.eq.s32.totalorder %v1166, 1
        %vm1199 = vcmp.eq.s32.totalorder %v1167, 1
        %vm1200 = vcmp.eq.s32.totalorder %v1168, 1
        %vm1201 = vcmp.eq.s32.totalorder %v1169, 1
        %vm1202 = vcmp.eq.s32.totalorder %v1170, 1
        %vm1203 = vcmp.eq.s32.totalorder %v1171, 1
        %vm1204 = vcmp.eq.s32.totalorder %v1172, 1
        %vm1205 = vcmp.eq.s32.totalorder %v1173, 1
        %vm1206 = vcmp.eq.s32.totalorder %v1174, 1
        %vm1207 = vcmp.eq.s32.totalorder %v1175, 1
        %vm1208 = vcmp.eq.s32.totalorder %v1176, 1
        %vm1209 = vcmp.eq.s32.totalorder %v1177, 1
        %vm1210 = vcmp.eq.s32.totalorder %v1178, 1
        %vm1211 = vcmp.eq.s32.totalorder %v1179, 1
        %vm1212 = vcmp.eq.s32.totalorder %v1180, 1
        %vm1213 = vcmp.eq.s32.totalorder %v1181, 1
        %vm1214 = vcmp.eq.s32.totalorder %v1182, 1
        %vm1215 = vcmp.eq.s32.totalorder %v1183, 1
        %vm1216 = vcmp.eq.s32.totalorder %v1184, 1
        %vm1217 = vcmp.eq.s32.totalorder %v1185, 1
        %vm1218 = vcmp.eq.s32.totalorder %v1186, 1
        %vm1219 = vcmp.eq.s32.totalorder %v1187, 1
        %vm1220 = vcmp.eq.s32.totalorder %v1188, 1
        %vm1221 = vcmp.eq.s32.totalorder %v1189, 1
        %vm1222 = vcmp.eq.s32.totalorder %v1190, 1
        %vm1223 = vcmp.eq.s32.totalorder %v1191, 1
        %v1224 = vsel %vm1192, 0.0, %v551
        %v1225 = vsel %vm1193, 0.0, %v552
        %v1226 = vsel %vm1194, 0.0, %v553
        %v1227 = vsel %vm1195, 0.0, %v554
        %v1228 = vsel %vm1196, 0.0, %v555
        %v1229 = vsel %vm1197, 0.0, %v556
        %v1230 = vsel %vm1198, 0.0, %v557
        %v1231 = vsel %vm1199, 0.0, %v558
        %v1232 = vsel %vm1200, 0.0, %v559
        %v1233 = vsel %vm1201, 0.0, %v560
        %v1234 = vsel %vm1202, 0.0, %v561
        %v1235 = vsel %vm1203, 0.0, %v562
        %v1236 = vsel %vm1204, 0.0, %v563
        %v1237 = vsel %vm1205, 0.0, %v564
        %v1238 = vsel %vm1206, 0.0, %v565
        %v1239 = vsel %vm1207, 0.0, %v566
        %v1240 = vsel %vm1208, 0.0, %v567
        %v1241 = vsel %vm1209, 0.0, %v568
        %v1242 = vsel %vm1210, 0.0, %v569
        %v1243 = vsel %vm1211, 0.0, %v570
        %v1244 = vsel %vm1212, 0.0, %v571
        %v1245 = vsel %vm1213, 0.0, %v572
        %v1246 = vsel %vm1214, 0.0, %v573
        %v1247 = vsel %vm1215, 0.0, %v574
        %v1248 = vsel %vm1216, 0.0, %v575
        %v1249 = vsel %vm1217, 0.0, %v576
        %v1250 = vsel %vm1218, 0.0, %v577
        %v1251 = vsel %vm1219, 0.0, %v578
        %v1252 = vsel %vm1220, 0.0, %v579
        %v1253 = vsel %vm1221, 0.0, %v580
        %v1254 = vsel %vm1222, 0.0, %v581
        %v1255 = vsel %vm1223, 0.0, %v582
        %vm1256 = vcmask 261120
        %1257 = vst.msk [vmem:[#allocation2] sm:$0xff] %vm1256, 0
        %vm1258 = vcmask 253952
        %vm1259 = vsmask.f32 256
        %vm1260 = vmand %vm1258, %vm1259
        %v1261 = vld [vmem:[#allocation2 + $0x8] sm:$0x1]
        %v1262 = vsel %vm1260, 0, %v1261
        %1263 = vst [vmem:[#allocation2 + $0x8] sm:$0x1] %v1262
        %vm1264 = vcmask 261120
        %vm1265 = vsmask.f32 7938
        %vm1266 = vmand %vm1264, %vm1265
        %v1267 = vld [vmem:[#allocation2 + $0x88] sm:$0xff]
        %v1268 = vsel %vm1266, 0, %v1267
        %1269 = vst [vmem:[#allocation2 + $0x88] sm:$0xff] %v1268
        %1270 = vst.msk [vmem:[#allocation2 + $0x90] sm:$0xff] %vm1256, 0
        %v1271 = vpack.c.bf16 %v1097, %v1096
        %v1272 = vpack.c.bf16 %v1099, %v1098
        %v1273 = vpack.c.bf16 %v1101, %v1100
        %v1274 = vpack.c.bf16 %v1103, %v1102
        %v1275 = vpack.c.bf16 %v1105, %v1104
        %v1276 = vpack.c.bf16 %v1107, %v1106
        %v1277 = vpack.c.bf16 %v1109, %v1108
        %v1278 = vpack.c.bf16 %v1111, %v1110
        %v1279 = vpack.c.bf16 %v1113, %v1112
        %v1280 = vpack.c.bf16 %v1115, %v1114
        %v1281 = vpack.c.bf16 %v1117, %v1116
        %v1282 = vpack.c.bf16 %v1119, %v1118
        %v1283 = vpack.c.bf16 %v1121, %v1120
        %v1284 = vpack.c.bf16 %v1123, %v1122
        %v1285 = vpack.c.bf16 %v1125, %v1124
        %v1286 = vpack.c.bf16 %v1127, %v1126
        %v1288 = vshrl.u32 %v1271, 16
        %v1290 = vrot.slane %v1288, 7
        %v1291 = vshll.u32 %v1271, 16
        %v1293 = vor.u32 %v1290, %v1291
        %v1295 = vshrl.u32 %v1272, 16
        %v1297 = vrot.slane %v1295, 7
        %v1298 = vshll.u32 %v1272, 16
        %v1300 = vor.u32 %v1297, %v1298
        %v1301 = vsel %vm1259, %v1290, %v1300
        %v1303 = vshrl.u32 %v1273, 16
        %v1305 = vrot.slane %v1303, 7
        %v1306 = vshll.u32 %v1273, 16
        %v1308 = vor.u32 %v1305, %v1306
        %v1309 = vsel %vm1259, %v1297, %v1308
        %v1311 = vshrl.u32 %v1274, 16
        %v1313 = vrot.slane %v1311, 7
        %v1314 = vshll.u32 %v1274, 16
        %v1316 = vor.u32 %v1313, %v1314
        %v1317 = vsel %vm1259, %v1305, %v1316
        %v1319 = vshrl.u32 %v1275, 16
        %v1321 = vrot.slane %v1319, 7
        %v1322 = vshll.u32 %v1275, 16
        %v1324 = vor.u32 %v1321, %v1322
        %v1325 = vsel %vm1259, %v1313, %v1324
        %v1327 = vshrl.u32 %v1276, 16
        %v1329 = vrot.slane %v1327, 7
        %v1330 = vshll.u32 %v1276, 16
        %v1332 = vor.u32 %v1329, %v1330
        %v1333 = vsel %vm1259, %v1321, %v1332
        %v1335 = vshrl.u32 %v1277, 16
        %v1337 = vrot.slane %v1335, 7
        %v1338 = vshll.u32 %v1277, 16
        %v1340 = vor.u32 %v1337, %v1338
        %v1341 = vsel %vm1259, %v1329, %v1340
        %v1343 = vshrl.u32 %v1278, 16
        %v1345 = vrot.slane %v1343, 7
        %v1346 = vshll.u32 %v1278, 16
        %v1348 = vor.u32 %v1345, %v1346
        %v1349 = vsel %vm1259, %v1337, %v1348
        %v1351 = vshrl.u32 %v1279, 16
        %v1353 = vrot.slane %v1351, 7
        %v1354 = vshll.u32 %v1279, 16
        %v1356 = vor.u32 %v1353, %v1354
        %v1357 = vsel %vm1259, %v1345, %v1356
        %v1359 = vshrl.u32 %v1280, 16
        %v1361 = vrot.slane %v1359, 7
        %v1362 = vshll.u32 %v1280, 16
        %v1364 = vor.u32 %v1361, %v1362
        %v1365 = vsel %vm1259, %v1353, %v1364
        %v1367 = vshrl.u32 %v1281, 16
        %v1369 = vrot.slane %v1367, 7
        %v1370 = vshll.u32 %v1281, 16
        %v1372 = vor.u32 %v1369, %v1370
        %v1373 = vsel %vm1259, %v1361, %v1372
        %v1375 = vshrl.u32 %v1282, 16
        %v1377 = vrot.slane %v1375, 7
        %v1378 = vshll.u32 %v1282, 16
        %v1380 = vor.u32 %v1377, %v1378
        %v1381 = vsel %vm1259, %v1369, %v1380
        %v1383 = vshrl.u32 %v1283, 16
        %v1385 = vrot.slane %v1383, 7
        %v1386 = vshll.u32 %v1283, 16
        %v1388 = vor.u32 %v1385, %v1386
        %v1389 = vsel %vm1259, %v1377, %v1388
        %v1391 = vshrl.u32 %v1284, 16
        %v1393 = vrot.slane %v1391, 7
        %v1394 = vshll.u32 %v1284, 16
        %v1396 = vor.u32 %v1393, %v1394
        %v1397 = vsel %vm1259, %v1385, %v1396
        %v1399 = vshrl.u32 %v1285, 16
        %v1401 = vrot.slane %v1399, 7
        %v1402 = vshll.u32 %v1285, 16
        %v1404 = vor.u32 %v1401, %v1402
        %v1405 = vsel %vm1259, %v1393, %v1404
        %v1407 = vshrl.u32 %v1286, 16
        %v1409 = vrot.slane %v1407, 7
        %v1410 = vshll.u32 %v1286, 16
        %v1412 = vor.u32 %v1409, %v1410
        %v1413 = vsel %vm1259, %v1401, %v1412
        %v1431 = vld [vmem:[#allocation2 + $0x8] sm:$0xff]
        %v1432 = vsel %vm1266, %v1293, %v1431
        %1433 = vst [vmem:[#allocation2 + $0x8] sm:$0xff] %v1432
        %1434 = vst.msk [vmem:[#allocation2 + $0x10] sm:$0xff] %vm1256, %v1301
        %1435 = vst.msk [vmem:[#allocation2 + $0x18] sm:$0xff] %vm1256, %v1309
        %1436 = vst.msk [vmem:[#allocation2 + $0x20] sm:$0xff] %vm1256, %v1317
        %1437 = vst.msk [vmem:[#allocation2 + $0x28] sm:$0xff] %vm1256, %v1325
        %1438 = vst.msk [vmem:[#allocation2 + $0x30] sm:$0xff] %vm1256, %v1333
        %1439 = vst.msk [vmem:[#allocation2 + $0x38] sm:$0xff] %vm1256, %v1341
        %1440 = vst.msk [vmem:[#allocation2 + $0x40] sm:$0xff] %vm1256, %v1349
        %1441 = vst.msk [vmem:[#allocation2 + $0x48] sm:$0xff] %vm1256, %v1357
        %1442 = vst.msk [vmem:[#allocation2 + $0x50] sm:$0xff] %vm1256, %v1365
        %1443 = vst.msk [vmem:[#allocation2 + $0x58] sm:$0xff] %vm1256, %v1373
        %1444 = vst.msk [vmem:[#allocation2 + $0x60] sm:$0xff] %vm1256, %v1381
        %1445 = vst.msk [vmem:[#allocation2 + $0x68] sm:$0xff] %vm1256, %v1389
        %1446 = vst.msk [vmem:[#allocation2 + $0x70] sm:$0xff] %vm1256, %v1397
        %1447 = vst.msk [vmem:[#allocation2 + $0x78] sm:$0xff] %vm1256, %v1405
        %1448 = vst.msk [vmem:[#allocation2 + $0x80] sm:$0xff] %vm1256, %v1413
        %v1449 = vld [vmem:[#allocation2 + $0x88] sm:$0x1]
        %v1450 = vsel %vm1260, %v1409, %v1449
        %1451 = vst [vmem:[#allocation2 + $0x88] sm:$0x1] %v1450
        %s1452 = scalar_lea.vmem [#allocation2], 152
        %1453 = vst.msk [vmem:[%s1452] sm:$0xff] %vm1256, 0
        %1454 = vst.msk [vmem:[%s1452 + $0x8] sm:$0xff] %vm1256, 0
        %1455 = vst.msk [vmem:[%s1452 + $0x90] sm:$0xff] %vm1256, 0
        %v1456 = vpack.c.bf16 %v552, %v551
        %v1457 = vpack.c.bf16 %v554, %v553
        %v1458 = vpack.c.bf16 %v556, %v555
        %v1459 = vpack.c.bf16 %v558, %v557
        %v1460 = vpack.c.bf16 %v560, %v559
        %v1461 = vpack.c.bf16 %v562, %v561
        %v1462 = vpack.c.bf16 %v564, %v563
        %v1463 = vpack.c.bf16 %v566, %v565
        %v1464 = vpack.c.bf16 %v568, %v567
        %v1465 = vpack.c.bf16 %v570, %v569
        %v1466 = vpack.c.bf16 %v572, %v571
        %v1467 = vpack.c.bf16 %v574, %v573
        %v1468 = vpack.c.bf16 %v576, %v575
        %v1469 = vpack.c.bf16 %v578, %v577
        %v1470 = vpack.c.bf16 %v580, %v579
        %v1471 = vpack.c.bf16 %v582, %v581
        %1472 = vst.msk [vmem:[%s1452 + $0x10] sm:$0xff] %vm1256, %v1456
        %1473 = vst.msk [vmem:[%s1452 + $0x18] sm:$0xff] %vm1256, %v1457
        %1474 = vst.msk [vmem:[%s1452 + $0x20] sm:$0xff] %vm1256, %v1458
        %1475 = vst.msk [vmem:[%s1452 + $0x28] sm:$0xff] %vm1256, %v1459
        %1476 = vst.msk [vmem:[%s1452 + $0x30] sm:$0xff] %vm1256, %v1460
        %1477 = vst.msk [vmem:[%s1452 + $0x38] sm:$0xff] %vm1256, %v1461
        %1478 = vst.msk [vmem:[%s1452 + $0x40] sm:$0xff] %vm1256, %v1462
        %1479 = vst.msk [vmem:[%s1452 + $0x48] sm:$0xff] %vm1256, %v1463
        %1480 = vst.msk [vmem:[%s1452 + $0x50] sm:$0xff] %vm1256, %v1464
        %1481 = vst.msk [vmem:[%s1452 + $0x58] sm:$0xff] %vm1256, %v1465
        %1482 = vst.msk [vmem:[%s1452 + $0x60] sm:$0xff] %vm1256, %v1466
        %1483 = vst.msk [vmem:[%s1452 + $0x68] sm:$0xff] %vm1256, %v1467
        %1484 = vst.msk [vmem:[%s1452 + $0x70] sm:$0xff] %vm1256, %v1468
        %1485 = vst.msk [vmem:[%s1452 + $0x78] sm:$0xff] %vm1256, %v1469
        %1486 = vst.msk [vmem:[%s1452 + $0x80] sm:$0xff] %vm1256, %v1470
        %1487 = vst.msk [vmem:[%s1452 + $0x88] sm:$0xff] %vm1256, %v1471
        %s1488 = scalar_lea.vmem [#allocation2], 304
        %1489 = vst.msk [vmem:[%s1488] sm:$0xff] %vm1256, 0
        %vm1490 = vsmask.f32 7424
        %vm1491 = vmand %vm1264, %vm1490
        %v1492 = vld [vmem:[%s1488 + $0x8] sm:$0xff]
        %v1493 = vsel %vm1491, 0, %v1492
        %1494 = vst [vmem:[%s1488 + $0x8] sm:$0xff] %v1493
        %vm1495 = vcmask 261127
        %vm1496 = vsmask.f32 7966
        %vm1497 = vmand %vm1495, %vm1496
        %v1498 = vld [vmem:[%s1488 + $0x88] sm:$0x80]
        %v1499 = vsel %vm1497, 0, %v1498
        %1500 = vst [vmem:[%s1488 + $0x88] sm:$0x80] %v1499
        %1501 = vst.msk [vmem:[%s1488 + $0x90] sm:$0xff] %vm1256, 0
        %v1502 = vpack.c.bf16 %v1225, %v1224
        %v1503 = vpack.c.bf16 %v1227, %v1226
        %v1504 = vpack.c.bf16 %v1229, %v1228
        %v1505 = vpack.c.bf16 %v1231, %v1230
        %v1506 = vpack.c.bf16 %v1233, %v1232
        %v1507 = vpack.c.bf16 %v1235, %v1234
        %v1508 = vpack.c.bf16 %v1237, %v1236
        %v1509 = vpack.c.bf16 %v1239, %v1238
        %v1510 = vpack.c.bf16 %v1241, %v1240
        %v1511 = vpack.c.bf16 %v1243, %v1242
        %v1512 = vpack.c.bf16 %v1245, %v1244
        %v1513 = vpack.c.bf16 %v1247, %v1246
        %v1514 = vpack.c.bf16 %v1249, %v1248
        %v1515 = vpack.c.bf16 %v1251, %v1250
        %v1516 = vpack.c.bf16 %v1253, %v1252
        %v1517 = vpack.c.bf16 %v1255, %v1254
        %v1519 = vshll.u32 %v1502, 16
        %v1521 = vrot.slane %v1519, 1
        %v1522 = vshrl.u32 %v1502, 16
        %v1524 = vor.u32 %v1522, %v1521
        %v1526 = vshll.u32 %v1503, 16
        %v1528 = vrot.slane %v1526, 1
        %v1529 = vsel %vm1490, %v1524, %v1528
        %v1530 = vshrl.u32 %v1503, 16
        %v1532 = vor.u32 %v1530, %v1528
        %v1534 = vshll.u32 %v1504, 16
        %v1536 = vrot.slane %v1534, 1
        %v1537 = vsel %vm1490, %v1532, %v1536
        %v1538 = vshrl.u32 %v1504, 16
        %v1540 = vor.u32 %v1538, %v1536
        %v1542 = vshll.u32 %v1505, 16
        %v1544 = vrot.slane %v1542, 1
        %v1545 = vsel %vm1490, %v1540, %v1544
        %v1546 = vshrl.u32 %v1505, 16
        %v1548 = vor.u32 %v1546, %v1544
        %v1550 = vshll.u32 %v1506, 16
        %v1552 = vrot.slane %v1550, 1
        %v1553 = vsel %vm1490, %v1548, %v1552
        %v1554 = vshrl.u32 %v1506, 16
        %v1556 = vor.u32 %v1554, %v1552
        %v1558 = vshll.u32 %v1507, 16
        %v1560 = vrot.slane %v1558, 1
        %v1561 = vsel %vm1490, %v1556, %v1560
        %v1562 = vshrl.u32 %v1507, 16
        %v1564 = vor.u32 %v1562, %v1560
        %v1566 = vshll.u32 %v1508, 16
        %v1568 = vrot.slane %v1566, 1
        %v1569 = vsel %vm1490, %v1564, %v1568
        %v1570 = vshrl.u32 %v1508, 16
        %v1572 = vor.u32 %v1570, %v1568
        %v1574 = vshll.u32 %v1509, 16
        %v1576 = vrot.slane %v1574, 1
        %v1577 = vsel %vm1490, %v1572, %v1576
        %v1578 = vshrl.u32 %v1509, 16
        %v1580 = vor.u32 %v1578, %v1576
        %v1582 = vshll.u32 %v1510, 16
        %v1584 = vrot.slane %v1582, 1
        %v1585 = vsel %vm1490, %v1580, %v1584
        %v1586 = vshrl.u32 %v1510, 16
        %v1588 = vor.u32 %v1586, %v1584
        %v1590 = vshll.u32 %v1511, 16
        %v1592 = vrot.slane %v1590, 1
        %v1593 = vsel %vm1490, %v1588, %v1592
        %v1594 = vshrl.u32 %v1511, 16
        %v1596 = vor.u32 %v1594, %v1592
        %v1598 = vshll.u32 %v1512, 16
        %v1600 = vrot.slane %v1598, 1
        %v1601 = vsel %vm1490, %v1596, %v1600
        %v1602 = vshrl.u32 %v1512, 16
        %v1604 = vor.u32 %v1602, %v1600
        %v1606 = vshll.u32 %v1513, 16
        %v1608 = vrot.slane %v1606, 1
        %v1609 = vsel %vm1490, %v1604, %v1608
        %v1610 = vshrl.u32 %v1513, 16
        %v1612 = vor.u32 %v1610, %v1608
        %v1614 = vshll.u32 %v1514, 16
        %v1616 = vrot.slane %v1614, 1
        %v1617 = vsel %vm1490, %v1612, %v1616
        %v1618 = vshrl.u32 %v1514, 16
        %v1620 = vor.u32 %v1618, %v1616
        %v1622 = vshll.u32 %v1515, 16
        %v1624 = vrot.slane %v1622, 1
        %v1625 = vsel %vm1490, %v1620, %v1624
        %v1626 = vshrl.u32 %v1515, 16
        %v1628 = vor.u32 %v1626, %v1624
        %v1630 = vshll.u32 %v1516, 16
        %v1632 = vrot.slane %v1630, 1
        %v1633 = vsel %vm1490, %v1628, %v1632
        %v1634 = vshrl.u32 %v1516, 16
        %v1636 = vor.u32 %v1634, %v1632
        %v1638 = vshll.u32 %v1517, 16
        %v1640 = vrot.slane %v1638, 1
        %v1641 = vsel %vm1490, %v1636, %v1640
        %v1642 = vshrl.u32 %v1517, 16
        %v1644 = vor.u32 %v1642, %v1640
        %v1662 = vld [vmem:[%s1488 + $0x8] sm:$0x80]
        %v1663 = vsel %vm1497, %v1521, %v1662
        %1664 = vst [vmem:[%s1488 + $0x8] sm:$0x80] %v1663
        %1665 = vst.msk [vmem:[%s1488 + $0x10] sm:$0xff] %vm1256, %v1529
        %1666 = vst.msk [vmem:[%s1488 + $0x18] sm:$0xff] %vm1256, %v1537
        %1667 = vst.msk [vmem:[%s1488 + $0x20] sm:$0xff] %vm1256, %v1545
        %1668 = vst.msk [vmem:[%s1488 + $0x28] sm:$0xff] %vm1256, %v1553
        %1669 = vst.msk [vmem:[%s1488 + $0x30] sm:$0xff] %vm1256, %v1561
        %1670 = vst.msk [vmem:[%s1488 + $0x38] sm:$0xff] %vm1256, %v1569
        %1671 = vst.msk [vmem:[%s1488 + $0x40] sm:$0xff] %vm1256, %v1577
        %1672 = vst.msk [vmem:[%s1488 + $0x48] sm:$0xff] %vm1256, %v1585
        %1673 = vst.msk [vmem:[%s1488 + $0x50] sm:$0xff] %vm1256, %v1593
        %1674 = vst.msk [vmem:[%s1488 + $0x58] sm:$0xff] %vm1256, %v1601
        %1675 = vst.msk [vmem:[%s1488 + $0x60] sm:$0xff] %vm1256, %v1609
        %1676 = vst.msk [vmem:[%s1488 + $0x68] sm:$0xff] %vm1256, %v1617
        %1677 = vst.msk [vmem:[%s1488 + $0x70] sm:$0xff] %vm1256, %v1625
        %1678 = vst.msk [vmem:[%s1488 + $0x78] sm:$0xff] %vm1256, %v1633
        %1679 = vst.msk [vmem:[%s1488 + $0x80] sm:$0xff] %vm1256, %v1641
        %v1680 = vld [vmem:[%s1488 + $0x88] sm:$0xff]
        %v1681 = vsel %vm1491, %v1644, %v1680
        %1682 = vst [vmem:[%s1488 + $0x88] sm:$0xff] %v1681
        %v1683 = vld [vmem:[#allocation2] sm:$0xff]
        %v1684 = vld [vmem:[#allocation2 + $0x8] sm:$0xff]
        %v1685 = vld [vmem:[#allocation2 + $0x10] sm:$0xff]
        %v1686 = vld [vmem:[#allocation2 + $0x18] sm:$0xff]
        %v1687 = vld [vmem:[#allocation2 + $0x20] sm:$0xff]
        %v1688 = vld [vmem:[#allocation2 + $0x28] sm:$0xff]
        %v1689 = vld [vmem:[#allocation2 + $0x30] sm:$0xff]
        %v1690 = vld [vmem:[#allocation2 + $0x38] sm:$0xff]
        %v1691 = vld [vmem:[#allocation2 + $0x40] sm:$0xff]
        %v1692 = vld [vmem:[#allocation2 + $0x48] sm:$0xff]
        %v1693 = vld [vmem:[#allocation2 + $0x50] sm:$0xff]
        %v1694 = vld [vmem:[#allocation2 + $0x58] sm:$0xff]
        %v1695 = vld [vmem:[#allocation2 + $0x60] sm:$0xff]
        %v1696 = vld [vmem:[#allocation2 + $0x68] sm:$0xff]
        %v1697 = vld [vmem:[#allocation2 + $0x70] sm:$0xff]
        %v1698 = vld [vmem:[#allocation2 + $0x78] sm:$0xff]
        %1699 = vst.msk [vmem:[#allocation3] sm:$0xff] %vm1256, %v1683
        %1700 = vst.msk [vmem:[#allocation3 + $0x18] sm:$0xff] %vm1256, %v1684
        %1701 = vst.msk [vmem:[#allocation3 + $0x30] sm:$0xff] %vm1256, %v1685
        %1702 = vst.msk [vmem:[#allocation3 + $0x48] sm:$0xff] %vm1256, %v1686
        %1703 = vst.msk [vmem:[#allocation3 + $0x60] sm:$0xff] %vm1256, %v1687
        %1704 = vst.msk [vmem:[#allocation3 + $0x78] sm:$0xff] %vm1256, %v1688
        %1705 = vst.msk [vmem:[#allocation3 + $0x90] sm:$0xff] %vm1256, %v1689
        %1706 = vst.msk [vmem:[#allocation3 + $0xa8] sm:$0xff] %vm1256, %v1690
        %1707 = vst.msk [vmem:[#allocation3 + $0xc0] sm:$0xff] %vm1256, %v1691
        %1708 = vst.msk [vmem:[#allocation3 + $0xd8] sm:$0xff] %vm1256, %v1692
        %1709 = vst.msk [vmem:[#allocation3 + $0xf0] sm:$0xff] %vm1256, %v1693
        %1710 = vst.msk [vmem:[#allocation3 + $0x108] sm:$0xff] %vm1256, %v1694
        %1711 = vst.msk [vmem:[#allocation3 + $0x120] sm:$0xff] %vm1256, %v1695
        %1712 = vst.msk [vmem:[#allocation3 + $0x138] sm:$0xff] %vm1256, %v1696
        %1713 = vst.msk [vmem:[#allocation3 + $0x150] sm:$0xff] %vm1256, %v1697
        %1714 = vst.msk [vmem:[#allocation3 + $0x168] sm:$0xff] %vm1256, %v1698
        %v1715 = vld [vmem:[%s1452 + $0x8] sm:$0xff]
        %v1716 = vld [vmem:[%s1452 + $0x10] sm:$0xff]
        %v1717 = vld [vmem:[%s1452 + $0x18] sm:$0xff]
        %v1718 = vld [vmem:[%s1452 + $0x20] sm:$0xff]
        %v1719 = vld [vmem:[%s1452 + $0x28] sm:$0xff]
        %v1720 = vld [vmem:[%s1452 + $0x30] sm:$0xff]
        %v1721 = vld [vmem:[%s1452 + $0x38] sm:$0xff]
        %v1722 = vld [vmem:[%s1452 + $0x40] sm:$0xff]
        %v1723 = vld [vmem:[%s1452 + $0x48] sm:$0xff]
        %v1724 = vld [vmem:[%s1452 + $0x50] sm:$0xff]
        %v1725 = vld [vmem:[%s1452 + $0x58] sm:$0xff]
        %v1726 = vld [vmem:[%s1452 + $0x60] sm:$0xff]
        %v1727 = vld [vmem:[%s1452 + $0x68] sm:$0xff]
        %v1728 = vld [vmem:[%s1452 + $0x70] sm:$0xff]
        %v1729 = vld [vmem:[%s1452 + $0x78] sm:$0xff]
        %v1730 = vld [vmem:[%s1452 + $0x80] sm:$0xff]
        %1747 = vrot.lane.b32.xlu0 %v1715, 32
        %v1748 = vpop.permute.xlu0 %1747
        %1749 = vrot.lane.b32.xlu0 %v1716, 32
        %v1750 = vpop.permute.xlu0 %1749
        %1751 = vrot.lane.b32.xlu0 %v1717, 32
        %v1752 = vpop.permute.xlu0 %1751
        %1753 = vrot.lane.b32.xlu0 %v1718, 32
        %v1754 = vpop.permute.xlu0 %1753
        %1755 = vrot.lane.b32.xlu0 %v1719, 32
        %v1756 = vpop.permute.xlu0 %1755
        %1757 = vrot.lane.b32.xlu0 %v1720, 32
        %v1758 = vpop.permute.xlu0 %1757
        %1759 = vrot.lane.b32.xlu0 %v1721, 32
        %v1760 = vpop.permute.xlu0 %1759
        %1761 = vrot.lane.b32.xlu0 %v1722, 32
        %v1762 = vpop.permute.xlu0 %1761
        %1763 = vrot.lane.b32.xlu0 %v1723, 32
        %v1764 = vpop.permute.xlu0 %1763
        %1765 = vrot.lane.b32.xlu0 %v1724, 32
        %v1766 = vpop.permute.xlu0 %1765
        %1767 = vrot.lane.b32.xlu0 %v1725, 32
        %v1768 = vpop.permute.xlu0 %1767
        %1769 = vrot.lane.b32.xlu0 %v1726, 32
        %v1770 = vpop.permute.xlu0 %1769
        %1771 = vrot.lane.b32.xlu0 %v1727, 32
        %v1772 = vpop.permute.xlu0 %1771
        %1773 = vrot.lane.b32.xlu0 %v1728, 32
        %v1774 = vpop.permute.xlu0 %1773
        %1775 = vrot.lane.b32.xlu0 %v1729, 32
        %v1776 = vpop.permute.xlu0 %1775
        %1777 = vrot.lane.b32.xlu0 %v1730, 32
        %v1778 = vpop.permute.xlu0 %1777
        %vm1795 = vcmask 523520
        %1796 = vst.msk [vmem:[#allocation3] sm:$0xff] %vm1795, %v1748
        %1797 = vst.msk [vmem:[#allocation3 + $0x18] sm:$0xff] %vm1795, %v1750
        %1798 = vst.msk [vmem:[#allocation3 + $0x30] sm:$0xff] %vm1795, %v1752
        %1799 = vst.msk [vmem:[#allocation3 + $0x48] sm:$0xff] %vm1795, %v1754
        %1800 = vst.msk [vmem:[#allocation3 + $0x60] sm:$0xff] %vm1795, %v1756
        %1801 = vst.msk [vmem:[#allocation3 + $0x78] sm:$0xff] %vm1795, %v1758
        %1802 = vst.msk [vmem:[#allocation3 + $0x90] sm:$0xff] %vm1795, %v1760
        %1803 = vst.msk [vmem:[#allocation3 + $0xa8] sm:$0xff] %vm1795, %v1762
        %1804 = vst.msk [vmem:[#allocation3 + $0xc0] sm:$0xff] %vm1795, %v1764
        %1805 = vst.msk [vmem:[#allocation3 + $0xd8] sm:$0xff] %vm1795, %v1766
        %1806 = vst.msk [vmem:[#allocation3 + $0xf0] sm:$0xff] %vm1795, %v1768
        %1807 = vst.msk [vmem:[#allocation3 + $0x108] sm:$0xff] %vm1795, %v1770
        %1808 = vst.msk [vmem:[#allocation3 + $0x120] sm:$0xff] %vm1795, %v1772
        %1809 = vst.msk [vmem:[#allocation3 + $0x138] sm:$0xff] %vm1795, %v1774
        %1810 = vst.msk [vmem:[#allocation3 + $0x150] sm:$0xff] %vm1795, %v1776
        %1811 = vst.msk [vmem:[#allocation3 + $0x168] sm:$0xff] %vm1795, %v1778
        %v1812 = vld [vmem:[%s1488 + $0x8] sm:$0xff]
        %v1813 = vld [vmem:[%s1488 + $0x10] sm:$0xff]
        %v1814 = vld [vmem:[%s1488 + $0x18] sm:$0xff]
        %v1815 = vld [vmem:[%s1488 + $0x20] sm:$0xff]
        %v1816 = vld [vmem:[%s1488 + $0x28] sm:$0xff]
        %v1817 = vld [vmem:[%s1488 + $0x30] sm:$0xff]
        %v1818 = vld [vmem:[%s1488 + $0x38] sm:$0xff]
        %v1819 = vld [vmem:[%s1488 + $0x40] sm:$0xff]
        %v1820 = vld [vmem:[%s1488 + $0x48] sm:$0xff]
        %v1821 = vld [vmem:[%s1488 + $0x50] sm:$0xff]
        %v1822 = vld [vmem:[%s1488 + $0x58] sm:$0xff]
        %v1823 = vld [vmem:[%s1488 + $0x60] sm:$0xff]
        %v1824 = vld [vmem:[%s1488 + $0x68] sm:$0xff]
        %v1825 = vld [vmem:[%s1488 + $0x70] sm:$0xff]
        %v1826 = vld [vmem:[%s1488 + $0x78] sm:$0xff]
        %v1827 = vld [vmem:[%s1488 + $0x80] sm:$0xff]
        %1844 = vrot.lane.b32.xlu0 %v1812, 64
        %v1845 = vpop.permute.xlu0 %1844
        %1846 = vrot.lane.b32.xlu0 %v1813, 64
        %v1847 = vpop.permute.xlu0 %1846
        %1848 = vrot.lane.b32.xlu0 %v1814, 64
        %v1849 = vpop.permute.xlu0 %1848
        %1850 = vrot.lane.b32.xlu0 %v1815, 64
        %v1851 = vpop.permute.xlu0 %1850
        %1852 = vrot.lane.b32.xlu0 %v1816, 64
        %v1853 = vpop.permute.xlu0 %1852
        %1854 = vrot.lane.b32.xlu0 %v1817, 64
        %v1855 = vpop.permute.xlu0 %1854
        %1856 = vrot.lane.b32.xlu0 %v1818, 64
        %v1857 = vpop.permute.xlu0 %1856
        %1858 = vrot.lane.b32.xlu0 %v1819, 64
        %v1859 = vpop.permute.xlu0 %1858
        %1860 = vrot.lane.b32.xlu0 %v1820, 64
        %v1861 = vpop.permute.xlu0 %1860
        %1862 = vrot.lane.b32.xlu0 %v1821, 64
        %v1863 = vpop.permute.xlu0 %1862
        %1864 = vrot.lane.b32.xlu0 %v1822, 64
        %v1865 = vpop.permute.xlu0 %1864
        %1866 = vrot.lane.b32.xlu0 %v1823, 64
        %v1867 = vpop.permute.xlu0 %1866
        %1868 = vrot.lane.b32.xlu0 %v1824, 64
        %v1869 = vpop.permute.xlu0 %1868
        %1870 = vrot.lane.b32.xlu0 %v1825, 64
        %v1871 = vpop.permute.xlu0 %1870
        %1872 = vrot.lane.b32.xlu0 %v1826, 64
        %v1873 = vpop.permute.xlu0 %1872
        %1874 = vrot.lane.b32.xlu0 %v1827, 64
        %v1875 = vpop.permute.xlu0 %1874
        %vm1892 = vcmask 785920
        %1893 = vst.msk [vmem:[#allocation3] sm:$0xff] %vm1892, %v1845
        %1894 = vst.msk [vmem:[#allocation3 + $0x18] sm:$0xff] %vm1892, %v1847
        %1895 = vst.msk [vmem:[#allocation3 + $0x30] sm:$0xff] %vm1892, %v1849
        %1896 = vst.msk [vmem:[#allocation3 + $0x48] sm:$0xff] %vm1892, %v1851
        %1897 = vst.msk [vmem:[#allocation3 + $0x60] sm:$0xff] %vm1892, %v1853
        %1898 = vst.msk [vmem:[#allocation3 + $0x78] sm:$0xff] %vm1892, %v1855
        %1899 = vst.msk [vmem:[#allocation3 + $0x90] sm:$0xff] %vm1892, %v1857
        %1900 = vst.msk [vmem:[#allocation3 + $0xa8] sm:$0xff] %vm1892, %v1859
        %1901 = vst.msk [vmem:[#allocation3 + $0xc0] sm:$0xff] %vm1892, %v1861
        %1902 = vst.msk [vmem:[#allocation3 + $0xd8] sm:$0xff] %vm1892, %v1863
        %1903 = vst.msk [vmem:[#allocation3 + $0xf0] sm:$0xff] %vm1892, %v1865
        %1904 = vst.msk [vmem:[#allocation3 + $0x108] sm:$0xff] %vm1892, %v1867
        %1905 = vst.msk [vmem:[#allocation3 + $0x120] sm:$0xff] %vm1892, %v1869
        %1906 = vst.msk [vmem:[#allocation3 + $0x138] sm:$0xff] %vm1892, %v1871
        %1907 = vst.msk [vmem:[#allocation3 + $0x150] sm:$0xff] %vm1892, %v1873
        %1908 = vst.msk [vmem:[#allocation3 + $0x168] sm:$0xff] %vm1892, %v1875
        %v1909 = vld [vmem:[#allocation2 + $0x8] sm:$0xff]
        %v1910 = vld [vmem:[#allocation2 + $0x10] sm:$0xff]
        %v1911 = vld [vmem:[#allocation2 + $0x18] sm:$0xff]
        %v1912 = vld [vmem:[#allocation2 + $0x20] sm:$0xff]
        %v1913 = vld [vmem:[#allocation2 + $0x28] sm:$0xff]
        %v1914 = vld [vmem:[#allocation2 + $0x30] sm:$0xff]
        %v1915 = vld [vmem:[#allocation2 + $0x38] sm:$0xff]
        %v1916 = vld [vmem:[#allocation2 + $0x40] sm:$0xff]
        %v1917 = vld [vmem:[#allocation2 + $0x48] sm:$0xff]
        %v1918 = vld [vmem:[#allocation2 + $0x50] sm:$0xff]
        %v1919 = vld [vmem:[#allocation2 + $0x58] sm:$0xff]
        %v1920 = vld [vmem:[#allocation2 + $0x60] sm:$0xff]
        %v1921 = vld [vmem:[#allocation2 + $0x68] sm:$0xff]
        %v1922 = vld [vmem:[#allocation2 + $0x70] sm:$0xff]
        %v1923 = vld [vmem:[#allocation2 + $0x78] sm:$0xff]
        %v1924 = vld [vmem:[#allocation2 + $0x80] sm:$0xff]
        %1941 = vrot.lane.b32.xlu0 %v1909, 96
        %v1942 = vpop.permute.xlu0 %1941
        %1943 = vrot.lane.b32.xlu0 %v1910, 96
        %v1944 = vpop.permute.xlu0 %1943
        %1945 = vrot.lane.b32.xlu0 %v1911, 96
        %v1946 = vpop.permute.xlu0 %1945
        %1947 = vrot.lane.b32.xlu0 %v1912, 96
        %v1948 = vpop.permute.xlu0 %1947
        %1949 = vrot.lane.b32.xlu0 %v1913, 96
        %v1950 = vpop.permute.xlu0 %1949
        %1951 = vrot.lane.b32.xlu0 %v1914, 96
        %v1952 = vpop.permute.xlu0 %1951
        %1953 = vrot.lane.b32.xlu0 %v1915, 96
        %v1954 = vpop.permute.xlu0 %1953
        %1955 = vrot.lane.b32.xlu0 %v1916, 96
        %v1956 = vpop.permute.xlu0 %1955
        %1957 = vrot.lane.b32.xlu0 %v1917, 96
        %v1958 = vpop.permute.xlu0 %1957
        %1959 = vrot.lane.b32.xlu0 %v1918, 96
        %v1960 = vpop.permute.xlu0 %1959
        %1961 = vrot.lane.b32.xlu0 %v1919, 96
        %v1962 = vpop.permute.xlu0 %1961
        %1963 = vrot.lane.b32.xlu0 %v1920, 96
        %v1964 = vpop.permute.xlu0 %1963
        %1965 = vrot.lane.b32.xlu0 %v1921, 96
        %v1966 = vpop.permute.xlu0 %1965
        %1967 = vrot.lane.b32.xlu0 %v1922, 96
        %v1968 = vpop.permute.xlu0 %1967
        %1969 = vrot.lane.b32.xlu0 %v1923, 96
        %v1970 = vpop.permute.xlu0 %1969
        %1971 = vrot.lane.b32.xlu0 %v1924, 96
        %v1972 = vpop.permute.xlu0 %1971
        %vm1989 = vcmask 1048320
        %1990 = vst.msk [vmem:[#allocation3] sm:$0xff] %vm1989, %v1942
        %1991 = vst.msk [vmem:[#allocation3 + $0x18] sm:$0xff] %vm1989, %v1944
        %1992 = vst.msk [vmem:[#allocation3 + $0x30] sm:$0xff] %vm1989, %v1946
        %1993 = vst.msk [vmem:[#allocation3 + $0x48] sm:$0xff] %vm1989, %v1948
        %1994 = vst.msk [vmem:[#allocation3 + $0x60] sm:$0xff] %vm1989, %v1950
        %1995 = vst.msk [vmem:[#allocation3 + $0x78] sm:$0xff] %vm1989, %v1952
        %1996 = vst.msk [vmem:[#allocation3 + $0x90] sm:$0xff] %vm1989, %v1954
        %1997 = vst.msk [vmem:[#allocation3 + $0xa8] sm:$0xff] %vm1989, %v1956
        %1998 = vst.msk [vmem:[#allocation3 + $0xc0] sm:$0xff] %vm1989, %v1958
        %1999 = vst.msk [vmem:[#allocation3 + $0xd8] sm:$0xff] %vm1989, %v1960
        %2000 = vst.msk [vmem:[#allocation3 + $0xf0] sm:$0xff] %vm1989, %v1962
        %2001 = vst.msk [vmem:[#allocation3 + $0x108] sm:$0xff] %vm1989, %v1964
        %2002 = vst.msk [vmem:[#allocation3 + $0x120] sm:$0xff] %vm1989, %v1966
        %2003 = vst.msk [vmem:[#allocation3 + $0x138] sm:$0xff] %vm1989, %v1968
        %2004 = vst.msk [vmem:[#allocation3 + $0x150] sm:$0xff] %vm1989, %v1970
        %2005 = vst.msk [vmem:[#allocation3 + $0x168] sm:$0xff] %vm1989, %v1972
        %v2006 = vld [vmem:[%s1452 + $0x10] sm:$0xff]
        %v2007 = vld [vmem:[%s1452 + $0x18] sm:$0xff]
        %v2008 = vld [vmem:[%s1452 + $0x20] sm:$0xff]
        %v2009 = vld [vmem:[%s1452 + $0x28] sm:$0xff]
        %v2010 = vld [vmem:[%s1452 + $0x30] sm:$0xff]
        %v2011 = vld [vmem:[%s1452 + $0x38] sm:$0xff]
        %v2012 = vld [vmem:[%s1452 + $0x40] sm:$0xff]
        %v2013 = vld [vmem:[%s1452 + $0x48] sm:$0xff]
        %v2014 = vld [vmem:[%s1452 + $0x50] sm:$0xff]
        %v2015 = vld [vmem:[%s1452 + $0x58] sm:$0xff]
        %v2016 = vld [vmem:[%s1452 + $0x60] sm:$0xff]
        %v2017 = vld [vmem:[%s1452 + $0x68] sm:$0xff]
        %v2018 = vld [vmem:[%s1452 + $0x70] sm:$0xff]
        %v2019 = vld [vmem:[%s1452 + $0x78] sm:$0xff]
        %v2020 = vld [vmem:[%s1452 + $0x80] sm:$0xff]
        %v2021 = vld [vmem:[%s1452 + $0x88] sm:$0xff]
        %2022 = vst.msk [vmem:[#allocation3 + $0x8] sm:$0xff] %vm1256, %v2006
        %2023 = vst.msk [vmem:[#allocation3 + $0x20] sm:$0xff] %vm1256, %v2007
        %2024 = vst.msk [vmem:[#allocation3 + $0x38] sm:$0xff] %vm1256, %v2008
        %2025 = vst.msk [vmem:[#allocation3 + $0x50] sm:$0xff] %vm1256, %v2009
        %2026 = vst.msk [vmem:[#allocation3 + $0x68] sm:$0xff] %vm1256, %v2010
        %2027 = vst.msk [vmem:[#allocation3 + $0x80] sm:$0xff] %vm1256, %v2011
        %2028 = vst.msk [vmem:[#allocation3 + $0x98] sm:$0xff] %vm1256, %v2012
        %2029 = vst.msk [vmem:[#allocation3 + $0xb0] sm:$0xff] %vm1256, %v2013
        %2030 = vst.msk [vmem:[#allocation3 + $0xc8] sm:$0xff] %vm1256, %v2014
        %2031 = vst.msk [vmem:[#allocation3 + $0xe0] sm:$0xff] %vm1256, %v2015
        %2032 = vst.msk [vmem:[#allocation3 + $0xf8] sm:$0xff] %vm1256, %v2016
        %2033 = vst.msk [vmem:[#allocation3 + $0x110] sm:$0xff] %vm1256, %v2017
        %2034 = vst.msk [vmem:[#allocation3 + $0x128] sm:$0xff] %vm1256, %v2018
        %2035 = vst.msk [vmem:[#allocation3 + $0x140] sm:$0xff] %vm1256, %v2019
        %2036 = vst.msk [vmem:[#allocation3 + $0x158] sm:$0xff] %vm1256, %v2020
        %2037 = vst.msk [vmem:[#allocation3 + $0x170] sm:$0xff] %vm1256, %v2021
        %v2038 = vld [vmem:[%s1488 + $0x10] sm:$0xff]
        %v2039 = vld [vmem:[%s1488 + $0x18] sm:$0xff]
        %v2040 = vld [vmem:[%s1488 + $0x20] sm:$0xff]
        %v2041 = vld [vmem:[%s1488 + $0x28] sm:$0xff]
        %v2042 = vld [vmem:[%s1488 + $0x30] sm:$0xff]
        %v2043 = vld [vmem:[%s1488 + $0x38] sm:$0xff]
        %v2044 = vld [vmem:[%s1488 + $0x40] sm:$0xff]
        %v2045 = vld [vmem:[%s1488 + $0x48] sm:$0xff]
        %v2046 = vld [vmem:[%s1488 + $0x50] sm:$0xff]
        %v2047 = vld [vmem:[%s1488 + $0x58] sm:$0xff]
        %v2048 = vld [vmem:[%s1488 + $0x60] sm:$0xff]
        %v2049 = vld [vmem:[%s1488 + $0x68] sm:$0xff]
        %v2050 = vld [vmem:[%s1488 + $0x70] sm:$0xff]
        %v2051 = vld [vmem:[%s1488 + $0x78] sm:$0xff]
        %v2052 = vld [vmem:[%s1488 + $0x80] sm:$0xff]
        %v2053 = vld [vmem:[%s1488 + $0x88] sm:$0xff]
        %2070 = vrot.lane.b32.xlu0 %v2038, 32
        %v2071 = vpop.permute.xlu0 %2070
        %2072 = vrot.lane.b32.xlu0 %v2039, 32
        %v2073 = vpop.permute.xlu0 %2072
        %2074 = vrot.lane.b32.xlu0 %v2040, 32
        %v2075 = vpop.permute.xlu0 %2074
        %2076 = vrot.lane.b32.xlu0 %v2041, 32
        %v2077 = vpop.permute.xlu0 %2076
        %2078 = vrot.lane.b32.xlu0 %v2042, 32
        %v2079 = vpop.permute.xlu0 %2078
        %2080 = vrot.lane.b32.xlu0 %v2043, 32
        %v2081 = vpop.permute.xlu0 %2080
        %2082 = vrot.lane.b32.xlu0 %v2044, 32
        %v2083 = vpop.permute.xlu0 %2082
        %2084 = vrot.lane.b32.xlu0 %v2045, 32
        %v2085 = vpop.permute.xlu0 %2084
        %2086 = vrot.lane.b32.xlu0 %v2046, 32
        %v2087 = vpop.permute.xlu0 %2086
        %2088 = vrot.lane.b32.xlu0 %v2047, 32
        %v2089 = vpop.permute.xlu0 %2088
        %2090 = vrot.lane.b32.xlu0 %v2048, 32
        %v2091 = vpop.permute.xlu0 %2090
        %2092 = vrot.lane.b32.xlu0 %v2049, 32
        %v2093 = vpop.permute.xlu0 %2092
        %2094 = vrot.lane.b32.xlu0 %v2050, 32
        %v2095 = vpop.permute.xlu0 %2094
        %2096 = vrot.lane.b32.xlu0 %v2051, 32
        %v2097 = vpop.permute.xlu0 %2096
        %2098 = vrot.lane.b32.xlu0 %v2052, 32
        %v2099 = vpop.permute.xlu0 %2098
        %2100 = vrot.lane.b32.xlu0 %v2053, 32
        %v2101 = vpop.permute.xlu0 %2100
        %2118 = vst.msk [vmem:[#allocation3 + $0x8] sm:$0xff] %vm1795, %v2071
        %2119 = vst.msk [vmem:[#allocation3 + $0x20] sm:$0xff] %vm1795, %v2073
        %2120 = vst.msk [vmem:[#allocation3 + $0x38] sm:$0xff] %vm1795, %v2075
        %2121 = vst.msk [vmem:[#allocation3 + $0x50] sm:$0xff] %vm1795, %v2077
        %2122 = vst.msk [vmem:[#allocation3 + $0x68] sm:$0xff] %vm1795, %v2079
        %2123 = vst.msk [vmem:[#allocation3 + $0x80] sm:$0xff] %vm1795, %v2081
        %2124 = vst.msk [vmem:[#allocation3 + $0x98] sm:$0xff] %vm1795, %v2083
        %2125 = vst.msk [vmem:[#allocation3 + $0xb0] sm:$0xff] %vm1795, %v2085
        %2126 = vst.msk [vmem:[#allocation3 + $0xc8] sm:$0xff] %vm1795, %v2087
        %2127 = vst.msk [vmem:[#allocation3 + $0xe0] sm:$0xff] %vm1795, %v2089
        %2128 = vst.msk [vmem:[#allocation3 + $0xf8] sm:$0xff] %vm1795, %v2091
        %2129 = vst.msk [vmem:[#allocation3 + $0x110] sm:$0xff] %vm1795, %v2093
        %2130 = vst.msk [vmem:[#allocation3 + $0x128] sm:$0xff] %vm1795, %v2095
        %2131 = vst.msk [vmem:[#allocation3 + $0x140] sm:$0xff] %vm1795, %v2097
        %2132 = vst.msk [vmem:[#allocation3 + $0x158] sm:$0xff] %vm1795, %v2099
        %2133 = vst.msk [vmem:[#allocation3 + $0x170] sm:$0xff] %vm1795, %v2101
        %v2134 = vld [vmem:[#allocation2 + $0x10] sm:$0xff]
        %v2135 = vld [vmem:[#allocation2 + $0x18] sm:$0xff]
        %v2136 = vld [vmem:[#allocation2 + $0x20] sm:$0xff]
        %v2137 = vld [vmem:[#allocation2 + $0x28] sm:$0xff]
        %v2138 = vld [vmem:[#allocation2 + $0x30] sm:$0xff]
        %v2139 = vld [vmem:[#allocation2 + $0x38] sm:$0xff]
        %v2140 = vld [vmem:[#allocation2 + $0x40] sm:$0xff]
        %v2141 = vld [vmem:[#allocation2 + $0x48] sm:$0xff]
        %v2142 = vld [vmem:[#allocation2 + $0x50] sm:$0xff]
        %v2143 = vld [vmem:[#allocation2 + $0x58] sm:$0xff]
        %v2144 = vld [vmem:[#allocation2 + $0x60] sm:$0xff]
        %v2145 = vld [vmem:[#allocation2 + $0x68] sm:$0xff]
        %v2146 = vld [vmem:[#allocation2 + $0x70] sm:$0xff]
        %v2147 = vld [vmem:[#allocation2 + $0x78] sm:$0xff]
        %v2148 = vld [vmem:[#allocation2 + $0x80] sm:$0xff]
        %v2149 = vld [vmem:[#allocation2 + $0x88] sm:$0xff]
        %2166 = vrot.lane.b32.xlu0 %v2134, 64
        %v2167 = vpop.permute.xlu0 %2166
        %2168 = vrot.lane.b32.xlu0 %v2135, 64
        %v2169 = vpop.permute.xlu0 %2168
        %2170 = vrot.lane.b32.xlu0 %v2136, 64
        %v2171 = vpop.permute.xlu0 %2170
        %2172 = vrot.lane.b32.xlu0 %v2137, 64
        %v2173 = vpop.permute.xlu0 %2172
        %2174 = vrot.lane.b32.xlu0 %v2138, 64
        %v2175 = vpop.permute.xlu0 %2174
        %2176 = vrot.lane.b32.xlu0 %v2139, 64
        %v2177 = vpop.permute.xlu0 %2176
        %2178 = vrot.lane.b32.xlu0 %v2140, 64
        %v2179 = vpop.permute.xlu0 %2178
        %2180 = vrot.lane.b32.xlu0 %v2141, 64
        %v2181 = vpop.permute.xlu0 %2180
        %2182 = vrot.lane.b32.xlu0 %v2142, 64
        %v2183 = vpop.permute.xlu0 %2182
        %2184 = vrot.lane.b32.xlu0 %v2143, 64
        %v2185 = vpop.permute.xlu0 %2184
        %2186 = vrot.lane.b32.xlu0 %v2144, 64
        %v2187 = vpop.permute.xlu0 %2186
        %2188 = vrot.lane.b32.xlu0 %v2145, 64
        %v2189 = vpop.permute.xlu0 %2188
        %2190 = vrot.lane.b32.xlu0 %v2146, 64
        %v2191 = vpop.permute.xlu0 %2190
        %2192 = vrot.lane.b32.xlu0 %v2147, 64
        %v2193 = vpop.permute.xlu0 %2192
        %2194 = vrot.lane.b32.xlu0 %v2148, 64
        %v2195 = vpop.permute.xlu0 %2194
        %2196 = vrot.lane.b32.xlu0 %v2149, 64
        %v2197 = vpop.permute.xlu0 %2196
        %2214 = vst.msk [vmem:[#allocation3 + $0x8] sm:$0xff] %vm1892, %v2167
        %2215 = vst.msk [vmem:[#allocation3 + $0x20] sm:$0xff] %vm1892, %v2169
        %2216 = vst.msk [vmem:[#allocation3 + $0x38] sm:$0xff] %vm1892, %v2171
        %2217 = vst.msk [vmem:[#allocation3 + $0x50] sm:$0xff] %vm1892, %v2173
        %2218 = vst.msk [vmem:[#allocation3 + $0x68] sm:$0xff] %vm1892, %v2175
        %2219 = vst.msk [vmem:[#allocation3 + $0x80] sm:$0xff] %vm1892, %v2177
        %2220 = vst.msk [vmem:[#allocation3 + $0x98] sm:$0xff] %vm1892, %v2179
        %2221 = vst.msk [vmem:[#allocation3 + $0xb0] sm:$0xff] %vm1892, %v2181
        %2222 = vst.msk [vmem:[#allocation3 + $0xc8] sm:$0xff] %vm1892, %v2183
        %2223 = vst.msk [vmem:[#allocation3 + $0xe0] sm:$0xff] %vm1892, %v2185
        %2224 = vst.msk [vmem:[#allocation3 + $0xf8] sm:$0xff] %vm1892, %v2187
        %2225 = vst.msk [vmem:[#allocation3 + $0x110] sm:$0xff] %vm1892, %v2189
        %2226 = vst.msk [vmem:[#allocation3 + $0x128] sm:$0xff] %vm1892, %v2191
        %2227 = vst.msk [vmem:[#allocation3 + $0x140] sm:$0xff] %vm1892, %v2193
        %2228 = vst.msk [vmem:[#allocation3 + $0x158] sm:$0xff] %vm1892, %v2195
        %2229 = vst.msk [vmem:[#allocation3 + $0x170] sm:$0xff] %vm1892, %v2197
        %v2230 = vld [vmem:[%s1452 + $0x18] sm:$0xff]
        %v2231 = vld [vmem:[%s1452 + $0x20] sm:$0xff]
        %v2232 = vld [vmem:[%s1452 + $0x28] sm:$0xff]
        %v2233 = vld [vmem:[%s1452 + $0x30] sm:$0xff]
        %v2234 = vld [vmem:[%s1452 + $0x38] sm:$0xff]
        %v2235 = vld [vmem:[%s1452 + $0x40] sm:$0xff]
        %v2236 = vld [vmem:[%s1452 + $0x48] sm:$0xff]
        %v2237 = vld [vmem:[%s1452 + $0x50] sm:$0xff]
        %v2238 = vld [vmem:[%s1452 + $0x58] sm:$0xff]
        %v2239 = vld [vmem:[%s1452 + $0x60] sm:$0xff]
        %v2240 = vld [vmem:[%s1452 + $0x68] sm:$0xff]
        %v2241 = vld [vmem:[%s1452 + $0x70] sm:$0xff]
        %v2242 = vld [vmem:[%s1452 + $0x78] sm:$0xff]
        %v2243 = vld [vmem:[%s1452 + $0x80] sm:$0xff]
        %v2244 = vld [vmem:[%s1452 + $0x88] sm:$0xff]
        %v2245 = vld [vmem:[%s1452 + $0x90] sm:$0xff]
        %2262 = vrot.lane.b32.xlu0 %v2230, 96
        %v2263 = vpop.permute.xlu0 %2262
        %2264 = vrot.lane.b32.xlu0 %v2231, 96
        %v2265 = vpop.permute.xlu0 %2264
        %2266 = vrot.lane.b32.xlu0 %v2232, 96
        %v2267 = vpop.permute.xlu0 %2266
        %2268 = vrot.lane.b32.xlu0 %v2233, 96
        %v2269 = vpop.permute.xlu0 %2268
        %2270 = vrot.lane.b32.xlu0 %v2234, 96
        %v2271 = vpop.permute.xlu0 %2270
        %2272 = vrot.lane.b32.xlu0 %v2235, 96
        %v2273 = vpop.permute.xlu0 %2272
        %2274 = vrot.lane.b32.xlu0 %v2236, 96
        %v2275 = vpop.permute.xlu0 %2274
        %2276 = vrot.lane.b32.xlu0 %v2237, 96
        %v2277 = vpop.permute.xlu0 %2276
        %2278 = vrot.lane.b32.xlu0 %v2238, 96
        %v2279 = vpop.permute.xlu0 %2278
        %2280 = vrot.lane.b32.xlu0 %v2239, 96
        %v2281 = vpop.permute.xlu0 %2280
        %2282 = vrot.lane.b32.xlu0 %v2240, 96
        %v2283 = vpop.permute.xlu0 %2282
        %2284 = vrot.lane.b32.xlu0 %v2241, 96
        %v2285 = vpop.permute.xlu0 %2284
        %2286 = vrot.lane.b32.xlu0 %v2242, 96
        %v2287 = vpop.permute.xlu0 %2286
        %2288 = vrot.lane.b32.xlu0 %v2243, 96
        %v2289 = vpop.permute.xlu0 %2288
        %2290 = vrot.lane.b32.xlu0 %v2244, 96
        %v2291 = vpop.permute.xlu0 %2290
        %2292 = vrot.lane.b32.xlu0 %v2245, 96
        %v2293 = vpop.permute.xlu0 %2292
        %2310 = vst.msk [vmem:[#allocation3 + $0x8] sm:$0xff] %vm1989, %v2263
        %2311 = vst.msk [vmem:[#allocation3 + $0x20] sm:$0xff] %vm1989, %v2265
        %2312 = vst.msk [vmem:[#allocation3 + $0x38] sm:$0xff] %vm1989, %v2267
        %2313 = vst.msk [vmem:[#allocation3 + $0x50] sm:$0xff] %vm1989, %v2269
        %2314 = vst.msk [vmem:[#allocation3 + $0x68] sm:$0xff] %vm1989, %v2271
        %2315 = vst.msk [vmem:[#allocation3 + $0x80] sm:$0xff] %vm1989, %v2273
        %2316 = vst.msk [vmem:[#allocation3 + $0x98] sm:$0xff] %vm1989, %v2275
        %2317 = vst.msk [vmem:[#allocation3 + $0xb0] sm:$0xff] %vm1989, %v2277
        %2318 = vst.msk [vmem:[#allocation3 + $0xc8] sm:$0xff] %vm1989, %v2279
        %2319 = vst.msk [vmem:[#allocation3 + $0xe0] sm:$0xff] %vm1989, %v2281
        %2320 = vst.msk [vmem:[#allocation3 + $0xf8] sm:$0xff] %vm1989, %v2283
        %2321 = vst.msk [vmem:[#allocation3 + $0x110] sm:$0xff] %vm1989, %v2285
        %2322 = vst.msk [vmem:[#allocation3 + $0x128] sm:$0xff] %vm1989, %v2287
        %2323 = vst.msk [vmem:[#allocation3 + $0x140] sm:$0xff] %vm1989, %v2289
        %2324 = vst.msk [vmem:[#allocation3 + $0x158] sm:$0xff] %vm1989, %v2291
        %2325 = vst.msk [vmem:[#allocation3 + $0x170] sm:$0xff] %vm1989, %v2293
        %v2326 = vld [vmem:[%s1488 + $0x18] sm:$0xff]
        %v2327 = vld [vmem:[%s1488 + $0x20] sm:$0xff]
        %v2328 = vld [vmem:[%s1488 + $0x28] sm:$0xff]
        %v2329 = vld [vmem:[%s1488 + $0x30] sm:$0xff]
        %v2330 = vld [vmem:[%s1488 + $0x38] sm:$0xff]
        %v2331 = vld [vmem:[%s1488 + $0x40] sm:$0xff]
        %v2332 = vld [vmem:[%s1488 + $0x48] sm:$0xff]
        %v2333 = vld [vmem:[%s1488 + $0x50] sm:$0xff]
        %v2334 = vld [vmem:[%s1488 + $0x58] sm:$0xff]
        %v2335 = vld [vmem:[%s1488 + $0x60] sm:$0xff]
        %v2336 = vld [vmem:[%s1488 + $0x68] sm:$0xff]
        %v2337 = vld [vmem:[%s1488 + $0x70] sm:$0xff]
        %v2338 = vld [vmem:[%s1488 + $0x78] sm:$0xff]
        %v2339 = vld [vmem:[%s1488 + $0x80] sm:$0xff]
        %v2340 = vld [vmem:[%s1488 + $0x88] sm:$0xff]
        %v2341 = vld [vmem:[%s1488 + $0x90] sm:$0xff]
        %2342 = vst.msk [vmem:[#allocation3 + $0x10] sm:$0xff] %vm1256, %v2326
        %2343 = vst.msk [vmem:[#allocation3 + $0x28] sm:$0xff] %vm1256, %v2327
        %2344 = vst.msk [vmem:[#allocation3 + $0x40] sm:$0xff] %vm1256, %v2328
        %2345 = vst.msk [vmem:[#allocation3 + $0x58] sm:$0xff] %vm1256, %v2329
        %2346 = vst.msk [vmem:[#allocation3 + $0x70] sm:$0xff] %vm1256, %v2330
        %2347 = vst.msk [vmem:[#allocation3 + $0x88] sm:$0xff] %vm1256, %v2331
        %2348 = vst.msk [vmem:[#allocation3 + $0xa0] sm:$0xff] %vm1256, %v2332
        %2349 = vst.msk [vmem:[#allocation3 + $0xb8] sm:$0xff] %vm1256, %v2333
        %2350 = vst.msk [vmem:[#allocation3 + $0xd0] sm:$0xff] %vm1256, %v2334
        %2351 = vst.msk [vmem:[#allocation3 + $0xe8] sm:$0xff] %vm1256, %v2335
        %2352 = vst.msk [vmem:[#allocation3 + $0x100] sm:$0xff] %vm1256, %v2336
        %2353 = vst.msk [vmem:[#allocation3 + $0x118] sm:$0xff] %vm1256, %v2337
        %2354 = vst.msk [vmem:[#allocation3 + $0x130] sm:$0xff] %vm1256, %v2338
        %2355 = vst.msk [vmem:[#allocation3 + $0x148] sm:$0xff] %vm1256, %v2339
        %2356 = vst.msk [vmem:[#allocation3 + $0x160] sm:$0xff] %vm1256, %v2340
        %2357 = vst.msk [vmem:[#allocation3 + $0x178] sm:$0xff] %vm1256, %v2341
        %v2358 = vld [vmem:[#allocation3] sm:$0xff]
        %v2359 = vld [vmem:[#allocation3 + $0x8] sm:$0xff]
        %v2360 = vld [vmem:[#allocation3 + $0x10] sm:$0xff]
        %v2361 = vld [vmem:[#allocation3 + $0x18] sm:$0xff]
        %v2362 = vld [vmem:[#allocation3 + $0x20] sm:$0xff]
        %v2363 = vld [vmem:[#allocation3 + $0x28] sm:$0xff]
        %v2364 = vld [vmem:[#allocation3 + $0x30] sm:$0xff]
        %v2365 = vld [vmem:[#allocation3 + $0x38] sm:$0xff]
        %v2366 = vld [vmem:[#allocation3 + $0x40] sm:$0xff]
        %v2367 = vld [vmem:[#allocation3 + $0x48] sm:$0xff]
        %v2368 = vld [vmem:[#allocation3 + $0x50] sm:$0xff]
        %v2369 = vld [vmem:[#allocation3 + $0x58] sm:$0xff]
        %v2370 = vld [vmem:[#allocation3 + $0x60] sm:$0xff]
        %v2371 = vld [vmem:[#allocation3 + $0x68] sm:$0xff]
        %v2372 = vld [vmem:[#allocation3 + $0x70] sm:$0xff]
        %v2373 = vld [vmem:[#allocation3 + $0x78] sm:$0xff]
        %v2374 = vld [vmem:[#allocation3 + $0x80] sm:$0xff]
        %v2375 = vld [vmem:[#allocation3 + $0x88] sm:$0xff]
        %v2376 = vld [vmem:[#allocation3 + $0x90] sm:$0xff]
        %v2377 = vld [vmem:[#allocation3 + $0x98] sm:$0xff]
        %v2378 = vld [vmem:[#allocation3 + $0xa0] sm:$0xff]
        %v2379 = vld [vmem:[#allocation3 + $0xa8] sm:$0xff]
        %v2380 = vld [vmem:[#allocation3 + $0xb0] sm:$0xff]
        %v2381 = vld [vmem:[#allocation3 + $0xb8] sm:$0xff]
        %v2382 = vld [vmem:[#allocation3 + $0xc0] sm:$0xff]
        %v2383 = vld [vmem:[#allocation3 + $0xc8] sm:$0xff]
        %v2384 = vld [vmem:[#allocation3 + $0xd0] sm:$0xff]
        %v2385 = vld [vmem:[#allocation3 + $0xd8] sm:$0xff]
        %v2386 = vld [vmem:[#allocation3 + $0xe0] sm:$0xff]
        %v2387 = vld [vmem:[#allocation3 + $0xe8] sm:$0xff]
        %v2388 = vld [vmem:[#allocation3 + $0xf0] sm:$0xff]
        %v2389 = vld [vmem:[#allocation3 + $0xf8] sm:$0xff]
        %v2390 = vld [vmem:[#allocation3 + $0x100] sm:$0xff]
        %v2391 = vld [vmem:[#allocation3 + $0x108] sm:$0xff]
        %v2392 = vld [vmem:[#allocation3 + $0x110] sm:$0xff]
        %v2393 = vld [vmem:[#allocation3 + $0x118] sm:$0xff]
        %v2394 = vld [vmem:[#allocation3 + $0x120] sm:$0xff]
        %v2395 = vld [vmem:[#allocation3 + $0x128] sm:$0xff]
        %v2396 = vld [vmem:[#allocation3 + $0x130] sm:$0xff]
        %v2397 = vld [vmem:[#allocation3 + $0x138] sm:$0xff]
        %v2398 = vld [vmem:[#allocation3 + $0x140] sm:$0xff]
        %v2399 = vld [vmem:[#allocation3 + $0x148] sm:$0xff]
        %v2400 = vld [vmem:[#allocation3 + $0x150] sm:$0xff]
        %v2401 = vld [vmem:[#allocation3 + $0x158] sm:$0xff]
        %v2402 = vld [vmem:[#allocation3 + $0x160] sm:$0xff]
        %v2403 = vld [vmem:[#allocation3 + $0x168] sm:$0xff]
        %v2404 = vld [vmem:[#allocation3 + $0x170] sm:$0xff]
        %v2405 = vld [vmem:[#allocation3 + $0x178] sm:$0xff]
        %v2406 = vld [vmem:[%s2] sm:$0xf]
        %v2407 = vld [vmem:[%s2 + $0x4] sm:$0xf]
        %v2408 = vld [vmem:[%s2 + $0x8] sm:$0xf]
        %v2409 = vld [vmem:[%s2 + $0xc] sm:$0xf]
        %v2410 = vld [vmem:[%s2 + $0x10] sm:$0xf]
        %v2411 = vld [vmem:[%s2 + $0x14] sm:$0xf]
        %v2412 = vld [vmem:[%s2 + $0x18] sm:$0xf]
        %v2413 = vld [vmem:[%s2 + $0x1c] sm:$0xf]
        %v2414 = vld [vmem:[%s2 + $0x20] sm:$0xf]
        %v2415 = vld [vmem:[%s2 + $0x24] sm:$0xf]
        %v2416 = vld [vmem:[%s2 + $0x28] sm:$0xf]
        %v2417 = vld [vmem:[%s2 + $0x2c] sm:$0xf]
        %v2418 = vld [vmem:[%s2 + $0x30] sm:$0xf]
        %v2419 = vld [vmem:[%s2 + $0x34] sm:$0xf]
        %v2420 = vld [vmem:[%s2 + $0x38] sm:$0xf]
        %v2421 = vld [vmem:[%s2 + $0x3c] sm:$0xf]
        %v2422 = vld [vmem:[%s2 + $0x40] sm:$0xf]
        %v2423 = vld [vmem:[%s2 + $0x44] sm:$0xf]
        %v2424 = vld [vmem:[%s2 + $0x48] sm:$0xf]
        %v2425 = vld [vmem:[%s2 + $0x4c] sm:$0xf]
        %v2426 = vld [vmem:[%s2 + $0x50] sm:$0xf]
        %v2427 = vld [vmem:[%s2 + $0x54] sm:$0xf]
        %v2428 = vld [vmem:[%s2 + $0x58] sm:$0xf]
        %v2429 = vld [vmem:[%s2 + $0x5c] sm:$0xf]
        %v2430 = vld [vmem:[%s2 + $0x60] sm:$0xf]
        %v2431 = vld [vmem:[%s2 + $0x64] sm:$0xf]
        %v2432 = vld [vmem:[%s2 + $0x68] sm:$0xf]
        %v2433 = vld [vmem:[%s2 + $0x6c] sm:$0xf]
        %v2434 = vld [vmem:[%s2 + $0x70] sm:$0xf]
        %v2435 = vld [vmem:[%s2 + $0x74] sm:$0xf]
        %v2436 = vld [vmem:[%s2 + $0x78] sm:$0xf]
        %v2437 = vld [vmem:[%s2 + $0x7c] sm:$0xf]
        %v2438 = vld [vmem:[%s2 + $0x80] sm:$0xf]
        %v2439 = vld [vmem:[%s2 + $0x84] sm:$0xf]
        %v2440 = vld [vmem:[%s2 + $0x88] sm:$0xf]
        %v2441 = vld [vmem:[%s2 + $0x8c] sm:$0xf]
        %v2478 = vunpack.c.l.b16 %v2406
        %v2479 = vunpack.c.l.b16 %v2407
        %v2480 = vunpack.c.l.b16 %v2408
        %v2481 = vunpack.c.l.b16 %v2409
        %v2482 = vunpack.c.l.b16 %v2410
        %v2483 = vunpack.c.l.b16 %v2411
        %v2484 = vunpack.c.l.b16 %v2412
        %v2485 = vunpack.c.l.b16 %v2413
        %v2486 = vunpack.c.l.b16 %v2414
        %v2487 = vunpack.c.l.b16 %v2415
        %v2488 = vunpack.c.l.b16 %v2416
        %v2489 = vunpack.c.l.b16 %v2417
        %v2490 = vunpack.c.l.b16 %v2418
        %v2491 = vunpack.c.l.b16 %v2419
        %v2492 = vunpack.c.l.b16 %v2420
        %v2493 = vunpack.c.l.b16 %v2421
        %v2494 = vunpack.c.l.b16 %v2422
        %v2495 = vunpack.c.l.b16 %v2423
        %v2496 = vunpack.c.l.b16 %v2424
        %v2497 = vunpack.c.l.b16 %v2425
        %v2498 = vunpack.c.l.b16 %v2426
        %v2499 = vunpack.c.l.b16 %v2427
        %v2500 = vunpack.c.l.b16 %v2428
        %v2501 = vunpack.c.l.b16 %v2429
        %v2502 = vunpack.c.l.b16 %v2430
        %v2503 = vunpack.c.l.b16 %v2431
        %v2504 = vunpack.c.l.b16 %v2432
        %v2505 = vunpack.c.l.b16 %v2433
        %v2506 = vunpack.c.l.b16 %v2434
        %v2507 = vunpack.c.l.b16 %v2435
        %v2508 = vunpack.c.l.b16 %v2436
        %v2509 = vunpack.c.l.b16 %v2437
        %v2510 = vunpack.c.l.b16 %v2438
        %v2511 = vunpack.c.l.b16 %v2439
        %v2512 = vunpack.c.l.b16 %v2440
        %v2513 = vunpack.c.l.b16 %v2441
        %v2514 = vpack.c.b16 %v2479, %v2478
        %v2515 = vpack.c.b16 %v2481, %v2480
        %v2516 = vpack.c.b16 %v2483, %v2482
        %v2517 = vpack.c.b16 %v2485, %v2484
        %v2518 = vpack.c.b16 %v2487, %v2486
        %v2519 = vpack.c.b16 %v2489, %v2488
        %v2520 = vpack.c.b16 %v2491, %v2490
        %v2521 = vpack.c.b16 %v2493, %v2492
        %v2522 = vpack.c.b16 %v2495, %v2494
        %v2523 = vpack.c.b16 %v2497, %v2496
        %v2524 = vpack.c.b16 %v2499, %v2498
        %v2525 = vpack.c.b16 %v2501, %v2500
        %v2526 = vpack.c.b16 %v2503, %v2502
        %v2527 = vpack.c.b16 %v2505, %v2504
        %v2528 = vpack.c.b16 %v2507, %v2506
        %v2529 = vpack.c.b16 %v2509, %v2508
        %v2530 = vpack.c.b16 %v2511, %v2510
        %v2531 = vpack.c.b16 %v2513, %v2512
        %v2551 = vsel %vm1256, %v2360, 0
        %v2554 = vsel %vm1256, %v2363, 0
        %v2557 = vsel %vm1256, %v2366, 0
        %v2560 = vsel %vm1256, %v2369, 0
        %v2563 = vsel %vm1256, %v2372, 0
        %v2566 = vsel %vm1256, %v2375, 0
        %v2569 = vsel %vm1256, %v2378, 0
        %v2572 = vsel %vm1256, %v2381, 0
        %v2575 = vsel %vm1256, %v2384, 0
        %v2578 = vsel %vm1256, %v2387, 0
        %v2581 = vsel %vm1256, %v2390, 0
        %v2584 = vsel %vm1256, %v2393, 0
        %v2587 = vsel %vm1256, %v2396, 0
        %v2590 = vsel %vm1256, %v2399, 0
        %v2593 = vsel %vm1256, %v2402, 0
        %v2596 = vsel %vm1256, %v2405, 0
        %2598 = vmatprep.subr.bf16.mxu0 0
        %2599 = vmatpush1.bf16.msra.mxu0 %v2514
        %2600 = vmatprep.subr.bf16.mxu0 0
        %2601 = vmatpush1.bf16.msra.mxu0 %v2515
        %2602 = vmatprep.subr.bf16.mxu0 0
        %2603 = vmatpush1.bf16.msra.mxu0 %v2516
        %2604 = vmatprep.subr.bf16.mxu0 0
        %2605 = vmatpush1.bf16.msra.mxu0 %v2517
        %2606 = vmatprep.subr.bf16.mxu0 0
        %2607 = vmatpush1.bf16.msra.mxu0 %v2518
        %2608 = vmatprep.subr.bf16.mxu0 0
        %2609 = vmatpush1.bf16.msra.mxu0 %v2519
        %2610 = vmatprep.subr.bf16.mxu0 0
        %2611 = vmatpush1.bf16.msra.mxu0 %v2520
        %2612 = vmatprep.subr.bf16.mxu0 0
        %2613 = vmatpush1.bf16.msra.mxu0 %v2521
        %2614 = vmatprep.subr.bf16.mxu0 0
        %2615 = vmatpush1.bf16.msra.mxu0 %v2522
        %2616 = vmatprep.subr.bf16.mxu0 0
        %2617 = vmatpush1.bf16.msra.mxu0 %v2523
        %2618 = vmatprep.subr.bf16.mxu0 0
        %2619 = vmatpush1.bf16.msra.mxu0 %v2524
        %2620 = vmatprep.subr.bf16.mxu0 0
        %2621 = vmatpush1.bf16.msra.mxu0 %v2525
        %2622 = vmatprep.subr.bf16.mxu0 0
        %2623 = vmatpush1.bf16.msra.mxu0 %v2526
        %2624 = vmatprep.subr.bf16.mxu0 0
        %2625 = vmatpush1.bf16.msra.mxu0 %v2527
        %2626 = vmatprep.subr.bf16.mxu0 0
        %2627 = vmatpush1.bf16.msra.mxu0 %v2528
        %2628 = vmatprep.subr.bf16.mxu0 0
        %2629 = vmatpush1.bf16.msra.mxu0 %v2529
        %2630 = vmatprep.mubr.bf16.mxu0 %v2359
        %2631 = vmatmul.mubr.bf16.gmra.mrb[0].mxu0 %v2358
        %v2632 = vpop.f32.mrb[0].mxu0
        %v2633 = vadd.f32 0.0, %v2632
        %v2634 = vpop.f32.mrb[0].mxu0
        %v2635 = vpop.f32.mrb[0].mxu0
        %v2636 = vadd.f32 0.0, %v2635
        %v2637 = vpop.f32.mrb[0].mxu0
        %2638 = vmatprep.mubr.bf16.mxu0 %v2362
        %2639 = vmatmul.mubr.bf16.gmra.mrb[0].mxu0 %v2361
        %v2640 = vpop.f32.mrb[0].mxu0
        %v2641 = vadd.f32 0.0, %v2640
        %v2642 = vpop.f32.mrb[0].mxu0
        %v2643 = vpop.f32.mrb[0].mxu0
        %v2644 = vadd.f32 0.0, %v2643
        %v2645 = vpop.f32.mrb[0].mxu0
        %2646 = vmatprep.mubr.bf16.mxu0 %v2365
        %2647 = vmatmul.mubr.bf16.gmra.mrb[0].mxu0 %v2364
        %v2648 = vpop.f32.mrb[0].mxu0
        %v2649 = vadd.f32 0.0, %v2648
        %v2650 = vpop.f32.mrb[0].mxu0
        %v2651 = vpop.f32.mrb[0].mxu0
        %v2652 = vadd.f32 0.0, %v2651
        %v2653 = vpop.f32.mrb[0].mxu0
        %2654 = vmatprep.mubr.bf16.mxu0 %v2368
        %2655 = vmatmul.mubr.bf16.gmra.mrb[0].mxu0 %v2367
        %v2656 = vpop.f32.mrb[0].mxu0
        %v2657 = vadd.f32 0.0, %v2656
        %v2658 = vpop.f32.mrb[0].mxu0
        %v2659 = vpop.f32.mrb[0].mxu0
        %v2660 = vadd.f32 0.0, %v2659
        %v2661 = vpop.f32.mrb[0].mxu0
        %2662 = vmatprep.mubr.bf16.mxu0 %v2371
        %2663 = vmatmul.mubr.bf16.gmra.mrb[0].mxu0 %v2370
        %v2664 = vpop.f32.mrb[0].mxu0
        %v2665 = vadd.f32 0.0, %v2664
        %v2666 = vpop.f32.mrb[0].mxu0
        %v2667 = vpop.f32.mrb[0].mxu0
        %v2668 = vadd.f32 0.0, %v2667
        %v2669 = vpop.f32.mrb[0].mxu0
        %2670 = vmatprep.mubr.bf16.mxu0 %v2374
        %2671 = vmatmul.mubr.bf16.gmra.mrb[0].mxu0 %v2373
        %v2672 = vpop.f32.mrb[0].mxu0
        %v2673 = vadd.f32 0.0, %v2672
        %v2674 = vpop.f32.mrb[0].mxu0
        %v2675 = vpop.f32.mrb[0].mxu0
        %v2676 = vadd.f32 0.0, %v2675
        %v2677 = vpop.f32.mrb[0].mxu0
        %2678 = vmatprep.mubr.bf16.mxu0 %v2377
        %2679 = vmatmul.mubr.bf16.gmra.mrb[0].mxu0 %v2376
        %v2680 = vpop.f32.mrb[0].mxu0
        %v2681 = vadd.f32 0.0, %v2680
        %v2682 = vpop.f32.mrb[0].mxu0
        %v2683 = vpop.f32.mrb[0].mxu0
        %v2684 = vadd.f32 0.0, %v2683
        %v2685 = vpop.f32.mrb[0].mxu0
        %2686 = vmatprep.mubr.bf16.mxu0 %v2380
        %2687 = vmatmul.mubr.bf16.gmra.mrb[0].mxu0 %v2379
        %v2688 = vpop.f32.mrb[0].mxu0
        %v2689 = vadd.f32 0.0, %v2688
        %v2690 = vpop.f32.mrb[0].mxu0
        %v2691 = vpop.f32.mrb[0].mxu0
        %v2692 = vadd.f32 0.0, %v2691
        %v2693 = vpop.f32.mrb[0].mxu0
        %2694 = vmatprep.mubr.bf16.mxu0 %v2383
        %2695 = vmatmul.mubr.bf16.gmra.mrb[0].mxu0 %v2382
        %v2696 = vpop.f32.mrb[0].mxu0
        %v2697 = vadd.f32 0.0, %v2696
        %v2698 = vpop.f32.mrb[0].mxu0
        %v2699 = vpop.f32.mrb[0].mxu0
        %v2700 = vadd.f32 0.0, %v2699
        %v2701 = vpop.f32.mrb[0].mxu0
        %2702 = vmatprep.mubr.bf16.mxu0 %v2386
        %2703 = vmatmul.mubr.bf16.gmra.mrb[0].mxu0 %v2385
        %v2704 = vpop.f32.mrb[0].mxu0
        %v2705 = vadd.f32 0.0, %v2704
        %v2706 = vpop.f32.mrb[0].mxu0
        %v2707 = vpop.f32.mrb[0].mxu0
        %v2708 = vadd.f32 0.0, %v2707
        %v2709 = vpop.f32.mrb[0].mxu0
        %2710 = vmatprep.mubr.bf16.mxu0 %v2389
        %2711 = vmatmul.mubr.bf16.gmra.mrb[0].mxu0 %v2388
        %v2712 = vpop.f32.mrb[0].mxu0
        %v2713 = vadd.f32 0.0, %v2712
        %v2714 = vpop.f32.mrb[0].mxu0
        %v2715 = vpop.f32.mrb[0].mxu0
        %v2716 = vadd.f32 0.0, %v2715
        %v2717 = vpop.f32.mrb[0].mxu0
        %2718 = vmatprep.mubr.bf16.mxu0 %v2392
        %2719 = vmatmul.mubr.bf16.gmra.mrb[0].mxu0 %v2391
        %v2720 = vpop.f32.mrb[0].mxu0
        %v2721 = vadd.f32 0.0, %v2720
        %v2722 = vpop.f32.mrb[0].mxu0
        %v2723 = vpop.f32.mrb[0].mxu0
        %v2724 = vadd.f32 0.0, %v2723
        %v2725 = vpop.f32.mrb[0].mxu0
        %2726 = vmatprep.mubr.bf16.mxu0 %v2395
        %2727 = vmatmul.mubr.bf16.gmra.mrb[0].mxu0 %v2394
        %v2728 = vpop.f32.mrb[0].mxu0
        %v2729 = vadd.f32 0.0, %v2728
        %v2730 = vpop.f32.mrb[0].mxu0
        %v2731 = vpop.f32.mrb[0].mxu0
        %v2732 = vadd.f32 0.0, %v2731
        %v2733 = vpop.f32.mrb[0].mxu0
        %2734 = vmatprep.mubr.bf16.mxu0 %v2398
        %2735 = vmatmul.mubr.bf16.gmra.mrb[0].mxu0 %v2397
        %v2736 = vpop.f32.mrb[0].mxu0
        %v2737 = vadd.f32 0.0, %v2736
        %v2738 = vpop.f32.mrb[0].mxu0
        %v2739 = vpop.f32.mrb[0].mxu0
        %v2740 = vadd.f32 0.0, %v2739
        %v2741 = vpop.f32.mrb[0].mxu0
        %2742 = vmatprep.mubr.bf16.mxu0 %v2401
        %2743 = vmatmul.mubr.bf16.gmra.mrb[0].mxu0 %v2400
        %v2744 = vpop.f32.mrb[0].mxu0
        %v2745 = vadd.f32 0.0, %v2744
        %v2746 = vpop.f32.mrb[0].mxu0
        %v2747 = vpop.f32.mrb[0].mxu0
        %v2748 = vadd.f32 0.0, %v2747
        %v2749 = vpop.f32.mrb[0].mxu0
        %2750 = vmatprep.mubr.bf16.mxu0 %v2404
        %2751 = vmatmul.mubr.bf16.gmra.mrb[0].mxu0 %v2403
        %v2752 = vpop.f32.mrb[0].mxu0
        %v2753 = vadd.f32 0.0, %v2752
        %v2754 = vpop.f32.mrb[0].mxu0
        %v2755 = vpop.f32.mrb[0].mxu0
        %v2756 = vadd.f32 0.0, %v2755
        %v2757 = vpop.f32.mrb[0].mxu0
        %2758 = vdwg.mxu0
        %2759 = vmatprep.subr.bf16.mxu0 0
        %2760 = vmatpush1.bf16.msra.mxu0 %v2530
        %2761 = vmatprep.subr.bf16.mxu0 0
        %2762 = vmatpush1.bf16.msra.mxu0 %v2531
        %2763 = vmatprep.subr.bf16.mxu0 0
        %2764 = vmatpush1.bf16.msra.mxu0 0
        %2765 = vmatprep.subr.bf16.mxu0 0
        %2766 = vmatpush1.bf16.msra.mxu0 0
        %2767 = vmatprep.subr.bf16.mxu0 0
        %2768 = vmatpush1.bf16.msra.mxu0 0
        %2769 = vmatprep.subr.bf16.mxu0 0
        %2770 = vmatpush1.bf16.msra.mxu0 0
        %2771 = vmatprep.subr.bf16.mxu0 0
        %2772 = vmatpush1.bf16.msra.mxu0 0
        %2773 = vmatprep.subr.bf16.mxu0 0
        %2774 = vmatpush1.bf16.msra.mxu0 0
        %2775 = vmatprep.subr.bf16.mxu0 0
        %2776 = vmatpush1.bf16.msra.mxu0 0
        %2777 = vmatprep.subr.bf16.mxu0 0
        %2778 = vmatpush1.bf16.msra.mxu0 0
        %2779 = vmatprep.subr.bf16.mxu0 0
        %2780 = vmatpush1.bf16.msra.mxu0 0
        %2781 = vmatprep.subr.bf16.mxu0 0
        %2782 = vmatpush1.bf16.msra.mxu0 0
        %2783 = vmatprep.subr.bf16.mxu0 0
        %2784 = vmatpush1.bf16.msra.mxu0 0
        %2785 = vmatprep.subr.bf16.mxu0 0
        %2786 = vmatpush1.bf16.msra.mxu0 0
        %2787 = vmatprep.subr.bf16.mxu0 0
        %2788 = vmatpush1.bf16.msra.mxu0 0
        %2789 = vmatprep.subr.bf16.mxu0 0
        %2790 = vmatpush1.bf16.msra.mxu0 0
        %2791 = vmatprep.mubr.bf16.mxu0 0
        %2792 = vmatmul.mubr.bf16.gmra.mrb[0].mxu0 %v2551
        %v2793 = vpop.f32.mrb[0].mxu0
        %v2794 = vadd.f32 %v2633, %v2793
        %v2795 = vpop.f32.mrb[0].mxu0
        %v2796 = vpop.f32.mrb[0].mxu0
        %v2797 = vadd.f32 %v2636, %v2796
        %v2798 = vpop.f32.mrb[0].mxu0
        %2799 = vmatprep.mubr.bf16.mxu0 0
        %2800 = vmatmul.mubr.bf16.gmra.mrb[0].mxu0 %v2554
        %v2801 = vpop.f32.mrb[0].mxu0
        %v2802 = vadd.f32 %v2641, %v2801
        %v2803 = vpop.f32.mrb[0].mxu0
        %v2804 = vpop.f32.mrb[0].mxu0
        %v2805 = vadd.f32 %v2644, %v2804
        %v2806 = vpop.f32.mrb[0].mxu0
        %2807 = vmatprep.mubr.bf16.mxu0 0
        %2808 = vmatmul.mubr.bf16.gmra.mrb[0].mxu0 %v2557
        %v2809 = vpop.f32.mrb[0].mxu0
        %v2810 = vadd.f32 %v2649, %v2809
        %v2811 = vpop.f32.mrb[0].mxu0
        %v2812 = vpop.f32.mrb[0].mxu0
        %v2813 = vadd.f32 %v2652, %v2812
        %v2814 = vpop.f32.mrb[0].mxu0
        %2815 = vmatprep.mubr.bf16.mxu0 0
        %2816 = vmatmul.mubr.bf16.gmra.mrb[0].mxu0 %v2560
        %v2817 = vpop.f32.mrb[0].mxu0
        %v2818 = vadd.f32 %v2657, %v2817
        %v2819 = vpop.f32.mrb[0].mxu0
        %v2820 = vpop.f32.mrb[0].mxu0
        %v2821 = vadd.f32 %v2660, %v2820
        %v2822 = vpop.f32.mrb[0].mxu0
        %2823 = vmatprep.mubr.bf16.mxu0 0
        %2824 = vmatmul.mubr.bf16.gmra.mrb[0].mxu0 %v2563
        %v2825 = vpop.f32.mrb[0].mxu0
        %v2826 = vadd.f32 %v2665, %v2825
        %v2827 = vpop.f32.mrb[0].mxu0
        %v2828 = vpop.f32.mrb[0].mxu0
        %v2829 = vadd.f32 %v2668, %v2828
        %v2830 = vpop.f32.mrb[0].mxu0
        %2831 = vmatprep.mubr.bf16.mxu0 0
        %2832 = vmatmul.mubr.bf16.gmra.mrb[0].mxu0 %v2566
        %v2833 = vpop.f32.mrb[0].mxu0
        %v2834 = vadd.f32 %v2673, %v2833
        %v2835 = vpop.f32.mrb[0].mxu0
        %v2836 = vpop.f32.mrb[0].mxu0
        %v2837 = vadd.f32 %v2676, %v2836
        %v2838 = vpop.f32.mrb[0].mxu0
        %2839 = vmatprep.mubr.bf16.mxu0 0
        %2840 = vmatmul.mubr.bf16.gmra.mrb[0].mxu0 %v2569
        %v2841 = vpop.f32.mrb[0].mxu0
        %v2842 = vadd.f32 %v2681, %v2841
        %v2843 = vpop.f32.mrb[0].mxu0
        %v2844 = vpop.f32.mrb[0].mxu0
        %v2845 = vadd.f32 %v2684, %v2844
        %v2846 = vpop.f32.mrb[0].mxu0
        %2847 = vmatprep.mubr.bf16.mxu0 0
        %2848 = vmatmul.mubr.bf16.gmra.mrb[0].mxu0 %v2572
        %v2849 = vpop.f32.mrb[0].mxu0
        %v2850 = vadd.f32 %v2689, %v2849
        %v2851 = vpop.f32.mrb[0].mxu0
        %v2852 = vpop.f32.mrb[0].mxu0
        %v2853 = vadd.f32 %v2692, %v2852
        %v2854 = vpop.f32.mrb[0].mxu0
        %2855 = vmatprep.mubr.bf16.mxu0 0
        %2856 = vmatmul.mubr.bf16.gmra.mrb[0].mxu0 %v2575
        %v2857 = vpop.f32.mrb[0].mxu0
        %v2858 = vadd.f32 %v2697, %v2857
        %v2859 = vpop.f32.mrb[0].mxu0
        %v2860 = vpop.f32.mrb[0].mxu0
        %v2861 = vadd.f32 %v2700, %v2860
        %v2862 = vpop.f32.mrb[0].mxu0
        %2863 = vmatprep.mubr.bf16.mxu0 0
        %2864 = vmatmul.mubr.bf16.gmra.mrb[0].mxu0 %v2578
        %v2865 = vpop.f32.mrb[0].mxu0
        %v2866 = vadd.f32 %v2705, %v2865
        %v2867 = vpop.f32.mrb[0].mxu0
        %v2868 = vpop.f32.mrb[0].mxu0
        %v2869 = vadd.f32 %v2708, %v2868
        %v2870 = vpop.f32.mrb[0].mxu0
        %2871 = vmatprep.mubr.bf16.mxu0 0
        %2872 = vmatmul.mubr.bf16.gmra.mrb[0].mxu0 %v2581
        %v2873 = vpop.f32.mrb[0].mxu0
        %v2874 = vadd.f32 %v2713, %v2873
        %v2875 = vpop.f32.mrb[0].mxu0
        %v2876 = vpop.f32.mrb[0].mxu0
        %v2877 = vadd.f32 %v2716, %v2876
        %v2878 = vpop.f32.mrb[0].mxu0
        %2879 = vmatprep.mubr.bf16.mxu0 0
        %2880 = vmatmul.mubr.bf16.gmra.mrb[0].mxu0 %v2584
        %v2881 = vpop.f32.mrb[0].mxu0
        %v2882 = vadd.f32 %v2721, %v2881
        %v2883 = vpop.f32.mrb[0].mxu0
        %v2884 = vpop.f32.mrb[0].mxu0
        %v2885 = vadd.f32 %v2724, %v2884
        %v2886 = vpop.f32.mrb[0].mxu0
        %2887 = vmatprep.mubr.bf16.mxu0 0
        %2888 = vmatmul.mubr.bf16.gmra.mrb[0].mxu0 %v2587
        %v2889 = vpop.f32.mrb[0].mxu0
        %v2890 = vadd.f32 %v2729, %v2889
        %v2891 = vpop.f32.mrb[0].mxu0
        %v2892 = vpop.f32.mrb[0].mxu0
        %v2893 = vadd.f32 %v2732, %v2892
        %v2894 = vpop.f32.mrb[0].mxu0
        %2895 = vmatprep.mubr.bf16.mxu0 0
        %2896 = vmatmul.mubr.bf16.gmra.mrb[0].mxu0 %v2590
        %v2897 = vpop.f32.mrb[0].mxu0
        %v2898 = vadd.f32 %v2737, %v2897
        %v2899 = vpop.f32.mrb[0].mxu0
        %v2900 = vpop.f32.mrb[0].mxu0
        %v2901 = vadd.f32 %v2740, %v2900
        %v2902 = vpop.f32.mrb[0].mxu0
        %2903 = vmatprep.mubr.bf16.mxu0 0
        %2904 = vmatmul.mubr.bf16.gmra.mrb[0].mxu0 %v2593
        %v2905 = vpop.f32.mrb[0].mxu0
        %v2906 = vadd.f32 %v2745, %v2905
        %v2907 = vpop.f32.mrb[0].mxu0
        %v2908 = vpop.f32.mrb[0].mxu0
        %v2909 = vadd.f32 %v2748, %v2908
        %v2910 = vpop.f32.mrb[0].mxu0
        %2911 = vmatprep.mubr.bf16.mxu0 0
        %2912 = vmatmul.mubr.bf16.gmra.mrb[0].mxu0 %v2596
        %v2913 = vpop.f32.mrb[0].mxu0
        %v2914 = vadd.f32 %v2753, %v2913
        %v2915 = vpop.f32.mrb[0].mxu0
        %v2916 = vpop.f32.mrb[0].mxu0
        %v2917 = vadd.f32 %v2756, %v2916
        %v2918 = vpop.f32.mrb[0].mxu0
        %2919 = vdwg.mxu0
        %v2920 = vmax.f32 %v2794, 0.0
        %v2921 = vmax.f32 %v2797, 0.0
        %v2922 = vmax.f32 %v2802, 0.0
        %v2923 = vmax.f32 %v2805, 0.0
        %v2924 = vmax.f32 %v2810, 0.0
        %v2925 = vmax.f32 %v2813, 0.0
        %v2926 = vmax.f32 %v2818, 0.0
        %v2927 = vmax.f32 %v2821, 0.0
        %v2928 = vmax.f32 %v2826, 0.0
        %v2929 = vmax.f32 %v2829, 0.0
        %v2930 = vmax.f32 %v2834, 0.0
        %v2931 = vmax.f32 %v2837, 0.0
        %v2932 = vmax.f32 %v2842, 0.0
        %v2933 = vmax.f32 %v2845, 0.0
        %v2934 = vmax.f32 %v2850, 0.0
        %v2935 = vmax.f32 %v2853, 0.0
        %v2936 = vmax.f32 %v2858, 0.0
        %v2937 = vmax.f32 %v2861, 0.0
        %v2938 = vmax.f32 %v2866, 0.0
        %v2939 = vmax.f32 %v2869, 0.0
        %v2940 = vmax.f32 %v2874, 0.0
        %v2941 = vmax.f32 %v2877, 0.0
        %v2942 = vmax.f32 %v2882, 0.0
        %v2943 = vmax.f32 %v2885, 0.0
        %v2944 = vmax.f32 %v2890, 0.0
        %v2945 = vmax.f32 %v2893, 0.0
        %v2946 = vmax.f32 %v2898, 0.0
        %v2947 = vmax.f32 %v2901, 0.0
        %v2948 = vmax.f32 %v2906, 0.0
        %v2949 = vmax.f32 %v2909, 0.0
        %v2950 = vmax.f32 %v2914, 0.0
        %v2951 = vmax.f32 %v2917, 0.0
        %v2952 = vpack.c.bf16 %v2921, %v2920
        %v2953 = vpack.c.bf16 %v2923, %v2922
        %v2954 = vpack.c.bf16 %v2925, %v2924
        %v2955 = vpack.c.bf16 %v2927, %v2926
        %v2956 = vpack.c.bf16 %v2929, %v2928
        %v2957 = vpack.c.bf16 %v2931, %v2930
        %v2958 = vpack.c.bf16 %v2933, %v2932
        %v2959 = vpack.c.bf16 %v2935, %v2934
        %v2960 = vpack.c.bf16 %v2937, %v2936
        %v2961 = vpack.c.bf16 %v2939, %v2938
        %v2962 = vpack.c.bf16 %v2941, %v2940
        %v2963 = vpack.c.bf16 %v2943, %v2942
        %v2964 = vpack.c.bf16 %v2945, %v2944
        %v2965 = vpack.c.bf16 %v2947, %v2946
        %v2966 = vpack.c.bf16 %v2949, %v2948
        %v2967 = vpack.c.bf16 %v2951, %v2950
        %v2968 = vld [vmem:[%s3] sm:$0xf]
        %v2969 = vld [vmem:[%s3 + $0x4] sm:$0xf]
        %v2970 = vld [vmem:[%s3 + $0x8] sm:$0xf]
        %v2971 = vld [vmem:[%s3 + $0xc] sm:$0xf]
        %v2976 = vunpack.c.l.b16 %v2968
        %v2977 = vunpack.c.l.b16 %v2969
        %v2978 = vunpack.c.l.b16 %v2970
        %v2979 = vunpack.c.l.b16 %v2971
        %v2980 = vpack.c.b16 %v2977, %v2976
        %v2981 = vpack.c.b16 %v2979, %v2978
        %v2985 = vsel %vm1256, %v2952, 0
        %v2988 = vsel %vm1256, %v2953, 0
        %v2991 = vsel %vm1256, %v2954, 0
        %v2994 = vsel %vm1256, %v2955, 0
        %v2997 = vsel %vm1256, %v2956, 0
        %v3000 = vsel %vm1256, %v2957, 0
        %v3003 = vsel %vm1256, %v2958, 0
        %v3006 = vsel %vm1256, %v2959, 0
        %v3009 = vsel %vm1256, %v2960, 0
        %v3012 = vsel %vm1256, %v2961, 0
        %v3015 = vsel %vm1256, %v2962, 0
        %v3018 = vsel %vm1256, %v2963, 0
        %v3021 = vsel %vm1256, %v2964, 0
        %v3024 = vsel %vm1256, %v2965, 0
        %v3027 = vsel %vm1256, %v2966, 0
        %v3030 = vsel %vm1256, %v2967, 0
        %3032 = vmatprep.subr.bf16.mxu0 0
        %3033 = vmatpush1.bf16.msra.mxu0 %v2980
        %3034 = vmatprep.subr.bf16.mxu0 0
        %3035 = vmatpush1.bf16.msra.mxu0 %v2981
        %3036 = vmatprep.subr.bf16.mxu0 0
        %3037 = vmatpush1.bf16.msra.mxu0 0
        %3038 = vmatprep.subr.bf16.mxu0 0
        %3039 = vmatpush1.bf16.msra.mxu0 0
        %3040 = vmatprep.subr.bf16.mxu0 0
        %3041 = vmatpush1.bf16.msra.mxu0 0
        %3042 = vmatprep.subr.bf16.mxu0 0
        %3043 = vmatpush1.bf16.msra.mxu0 0
        %3044 = vmatprep.subr.bf16.mxu0 0
        %3045 = vmatpush1.bf16.msra.mxu0 0
        %3046 = vmatprep.subr.bf16.mxu0 0
        %3047 = vmatpush1.bf16.msra.mxu0 0
        %3048 = vmatprep.subr.bf16.mxu0 0
        %3049 = vmatpush1.bf16.msra.mxu0 0
        %3050 = vmatprep.subr.bf16.mxu0 0
        %3051 = vmatpush1.bf16.msra.mxu0 0
        %3052 = vmatprep.subr.bf16.mxu0 0
        %3053 = vmatpush1.bf16.msra.mxu0 0
        %3054 = vmatprep.subr.bf16.mxu0 0
        %3055 = vmatpush1.bf16.msra.mxu0 0
        %3056 = vmatprep.subr.bf16.mxu0 0
        %3057 = vmatpush1.bf16.msra.mxu0 0
        %3058 = vmatprep.subr.bf16.mxu0 0
        %3059 = vmatpush1.bf16.msra.mxu0 0
        %3060 = vmatprep.subr.bf16.mxu0 0
        %3061 = vmatpush1.bf16.msra.mxu0 0
        %3062 = vmatprep.subr.bf16.mxu0 0
        %3063 = vmatpush1.bf16.msra.mxu0 0
        %3064 = vmatprep.mubr.bf16.mxu0 0
        %3065 = vmatmul.mubr.bf16.gmra.mrb[0].mxu0 %v2985
        %v3066 = vpop.f32.mrb[0].mxu0
        %v3067 = vadd.f32 0.0, %v3066
        %v3068 = vpop.f32.mrb[0].mxu0
        %v3069 = vpop.f32.mrb[0].mxu0
        %v3070 = vadd.f32 0.0, %v3069
        %v3071 = vpop.f32.mrb[0].mxu0
        %3072 = vmatprep.mubr.bf16.mxu0 0
        %3073 = vmatmul.mubr.bf16.gmra.mrb[0].mxu0 %v2988
        %v3074 = vpop.f32.mrb[0].mxu0
        %v3075 = vadd.f32 0.0, %v3074
        %v3076 = vpop.f32.mrb[0].mxu0
        %v3077 = vpop.f32.mrb[0].mxu0
        %v3078 = vadd.f32 0.0, %v3077
        %v3079 = vpop.f32.mrb[0].mxu0
        %3080 = vmatprep.mubr.bf16.mxu0 0
        %3081 = vmatmul.mubr.bf16.gmra.mrb[0].mxu0 %v2991
        %v3082 = vpop.f32.mrb[0].mxu0
        %v3083 = vadd.f32 0.0, %v3082
        %v3084 = vpop.f32.mrb[0].mxu0
        %v3085 = vpop.f32.mrb[0].mxu0
        %v3086 = vadd.f32 0.0, %v3085
        %v3087 = vpop.f32.mrb[0].mxu0
        %3088 = vmatprep.mubr.bf16.mxu0 0
        %3089 = vmatmul.mubr.bf16.gmra.mrb[0].mxu0 %v2994
        %v3090 = vpop.f32.mrb[0].mxu0
        %v3091 = vadd.f32 0.0, %v3090
        %v3092 = vpop.f32.mrb[0].mxu0
        %v3093 = vpop.f32.mrb[0].mxu0
        %v3094 = vadd.f32 0.0, %v3093
        %v3095 = vpop.f32.mrb[0].mxu0
        %3096 = vmatprep.mubr.bf16.mxu0 0
        %3097 = vmatmul.mubr.bf16.gmra.mrb[0].mxu0 %v2997
        %v3098 = vpop.f32.mrb[0].mxu0
        %v3099 = vadd.f32 0.0, %v3098
        %v3100 = vpop.f32.mrb[0].mxu0
        %v3101 = vpop.f32.mrb[0].mxu0
        %v3102 = vadd.f32 0.0, %v3101
        %v3103 = vpop.f32.mrb[0].mxu0
        %3104 = vmatprep.mubr.bf16.mxu0 0
        %3105 = vmatmul.mubr.bf16.gmra.mrb[0].mxu0 %v3000
        %v3106 = vpop.f32.mrb[0].mxu0
        %v3107 = vadd.f32 0.0, %v3106
        %v3108 = vpop.f32.mrb[0].mxu0
        %v3109 = vpop.f32.mrb[0].mxu0
        %v3110 = vadd.f32 0.0, %v3109
        %v3111 = vpop.f32.mrb[0].mxu0
        %3112 = vmatprep.mubr.bf16.mxu0 0
        %3113 = vmatmul.mubr.bf16.gmra.mrb[0].mxu0 %v3003
        %v3114 = vpop.f32.mrb[0].mxu0
        %v3115 = vadd.f32 0.0, %v3114
        %v3116 = vpop.f32.mrb[0].mxu0
        %v3117 = vpop.f32.mrb[0].mxu0
        %v3118 = vadd.f32 0.0, %v3117
        %v3119 = vpop.f32.mrb[0].mxu0
        %3120 = vmatprep.mubr.bf16.mxu0 0
        %3121 = vmatmul.mubr.bf16.gmra.mrb[0].mxu0 %v3006
        %v3122 = vpop.f32.mrb[0].mxu0
        %v3123 = vadd.f32 0.0, %v3122
        %v3124 = vpop.f32.mrb[0].mxu0
        %v3125 = vpop.f32.mrb[0].mxu0
        %v3126 = vadd.f32 0.0, %v3125
        %v3127 = vpop.f32.mrb[0].mxu0
        %3128 = vmatprep.mubr.bf16.mxu0 0
        %3129 = vmatmul.mubr.bf16.gmra.mrb[0].mxu0 %v3009
        %v3130 = vpop.f32.mrb[0].mxu0
        %v3131 = vadd.f32 0.0, %v3130
        %v3132 = vpop.f32.mrb[0].mxu0
        %v3133 = vpop.f32.mrb[0].mxu0
        %v3134 = vadd.f32 0.0, %v3133
        %v3135 = vpop.f32.mrb[0].mxu0
        %3136 = vmatprep.mubr.bf16.mxu0 0
        %3137 = vmatmul.mubr.bf16.gmra.mrb[0].mxu0 %v3012
        %v3138 = vpop.f32.mrb[0].mxu0
        %v3139 = vadd.f32 0.0, %v3138
        %v3140 = vpop.f32.mrb[0].mxu0
        %v3141 = vpop.f32.mrb[0].mxu0
        %v3142 = vadd.f32 0.0, %v3141
        %v3143 = vpop.f32.mrb[0].mxu0
        %3144 = vmatprep.mubr.bf16.mxu0 0
        %3145 = vmatmul.mubr.bf16.gmra.mrb[0].mxu0 %v3015
        %v3146 = vpop.f32.mrb[0].mxu0
        %v3147 = vadd.f32 0.0, %v3146
        %v3148 = vpop.f32.mrb[0].mxu0
        %v3149 = vpop.f32.mrb[0].mxu0
        %v3150 = vadd.f32 0.0, %v3149
        %v3151 = vpop.f32.mrb[0].mxu0
        %3152 = vmatprep.mubr.bf16.mxu0 0
        %3153 = vmatmul.mubr.bf16.gmra.mrb[0].mxu0 %v3018
        %v3154 = vpop.f32.mrb[0].mxu0
        %v3155 = vadd.f32 0.0, %v3154
        %v3156 = vpop.f32.mrb[0].mxu0
        %v3157 = vpop.f32.mrb[0].mxu0
        %v3158 = vadd.f32 0.0, %v3157
        %v3159 = vpop.f32.mrb[0].mxu0
        %3160 = vmatprep.mubr.bf16.mxu0 0
        %3161 = vmatmul.mubr.bf16.gmra.mrb[0].mxu0 %v3021
        %v3162 = vpop.f32.mrb[0].mxu0
        %v3163 = vadd.f32 0.0, %v3162
        %v3164 = vpop.f32.mrb[0].mxu0
        %v3165 = vpop.f32.mrb[0].mxu0
        %v3166 = vadd.f32 0.0, %v3165
        %v3167 = vpop.f32.mrb[0].mxu0
        %3168 = vmatprep.mubr.bf16.mxu0 0
        %3169 = vmatmul.mubr.bf16.gmra.mrb[0].mxu0 %v3024
        %v3170 = vpop.f32.mrb[0].mxu0
        %v3171 = vadd.f32 0.0, %v3170
        %v3172 = vpop.f32.mrb[0].mxu0
        %v3173 = vpop.f32.mrb[0].mxu0
        %v3174 = vadd.f32 0.0, %v3173
        %v3175 = vpop.f32.mrb[0].mxu0
        %3176 = vmatprep.mubr.bf16.mxu0 0
        %3177 = vmatmul.mubr.bf16.gmra.mrb[0].mxu0 %v3027
        %v3178 = vpop.f32.mrb[0].mxu0
        %v3179 = vadd.f32 0.0, %v3178
        %v3180 = vpop.f32.mrb[0].mxu0
        %v3181 = vpop.f32.mrb[0].mxu0
        %v3182 = vadd.f32 0.0, %v3181
        %v3183 = vpop.f32.mrb[0].mxu0
        %3184 = vmatprep.mubr.bf16.mxu0 0
        %3185 = vmatmul.mubr.bf16.gmra.mrb[0].mxu0 %v3030
        %v3186 = vpop.f32.mrb[0].mxu0
        %v3187 = vadd.f32 0.0, %v3186
        %v3188 = vpop.f32.mrb[0].mxu0
        %v3189 = vpop.f32.mrb[0].mxu0
        %v3190 = vadd.f32 0.0, %v3189
        %v3191 = vpop.f32.mrb[0].mxu0
        %3192 = vdwg.mxu0
        %v3193 = vmax.f32 %v3067, 0.0
        %v3194 = vmax.f32 %v3070, 0.0
        %v3195 = vmax.f32 %v3075, 0.0
        %v3196 = vmax.f32 %v3078, 0.0
        %v3197 = vmax.f32 %v3083, 0.0
        %v3198 = vmax.f32 %v3086, 0.0
        %v3199 = vmax.f32 %v3091, 0.0
        %v3200 = vmax.f32 %v3094, 0.0
        %v3201 = vmax.f32 %v3099, 0.0
        %v3202 = vmax.f32 %v3102, 0.0
        %v3203 = vmax.f32 %v3107, 0.0
        %v3204 = vmax.f32 %v3110, 0.0
        %v3205 = vmax.f32 %v3115, 0.0
        %v3206 = vmax.f32 %v3118, 0.0
        %v3207 = vmax.f32 %v3123, 0.0
        %v3208 = vmax.f32 %v3126, 0.0
        %v3209 = vmax.f32 %v3131, 0.0
        %v3210 = vmax.f32 %v3134, 0.0
        %v3211 = vmax.f32 %v3139, 0.0
        %v3212 = vmax.f32 %v3142, 0.0
        %v3213 = vmax.f32 %v3147, 0.0
        %v3214 = vmax.f32 %v3150, 0.0
        %v3215 = vmax.f32 %v3155, 0.0
        %v3216 = vmax.f32 %v3158, 0.0
        %v3217 = vmax.f32 %v3163, 0.0
        %v3218 = vmax.f32 %v3166, 0.0
        %v3219 = vmax.f32 %v3171, 0.0
        %v3220 = vmax.f32 %v3174, 0.0
        %v3221 = vmax.f32 %v3179, 0.0
        %v3222 = vmax.f32 %v3182, 0.0
        %v3223 = vmax.f32 %v3187, 0.0
        %v3224 = vmax.f32 %v3190, 0.0
        %v3225 = vpack.c.bf16 %v3194, %v3193
        %v3226 = vpack.c.bf16 %v3196, %v3195
        %v3227 = vpack.c.bf16 %v3198, %v3197
        %v3228 = vpack.c.bf16 %v3200, %v3199
        %v3229 = vpack.c.bf16 %v3202, %v3201
        %v3230 = vpack.c.bf16 %v3204, %v3203
        %v3231 = vpack.c.bf16 %v3206, %v3205
        %v3232 = vpack.c.bf16 %v3208, %v3207
        %v3233 = vpack.c.bf16 %v3210, %v3209
        %v3234 = vpack.c.bf16 %v3212, %v3211
        %v3235 = vpack.c.bf16 %v3214, %v3213
        %v3236 = vpack.c.bf16 %v3216, %v3215
        %v3237 = vpack.c.bf16 %v3218, %v3217
        %v3238 = vpack.c.bf16 %v3220, %v3219
        %v3239 = vpack.c.bf16 %v3222, %v3221
        %v3240 = vpack.c.bf16 %v3224, %v3223
        %v3257 = vunpack.c.l.b16 %v3225
        %v3258 = vunpack.c.h.b16 %v3225
        %v3259 = vunpack.c.l.b16 %v3226
        %v3260 = vunpack.c.h.b16 %v3226
        %v3261 = vunpack.c.l.b16 %v3227
        %v3262 = vunpack.c.h.b16 %v3227
        %v3263 = vunpack.c.l.b16 %v3228
        %v3264 = vunpack.c.h.b16 %v3228
        %v3265 = vunpack.c.l.b16 %v3229
        %v3266 = vunpack.c.h.b16 %v3229
        %v3267 = vunpack.c.l.b16 %v3230
        %v3268 = vunpack.c.h.b16 %v3230
        %v3269 = vunpack.c.l.b16 %v3231
        %v3270 = vunpack.c.h.b16 %v3231
        %v3271 = vunpack.c.l.b16 %v3232
        %v3272 = vunpack.c.h.b16 %v3232
        %v3273 = vunpack.c.l.b16 %v3233
        %v3274 = vunpack.c.h.b16 %v3233
        %v3275 = vunpack.c.l.b16 %v3234
        %v3276 = vunpack.c.h.b16 %v3234
        %v3277 = vunpack.c.l.b16 %v3235
        %v3278 = vunpack.c.h.b16 %v3235
        %v3279 = vunpack.c.l.b16 %v3236
        %v3280 = vunpack.c.h.b16 %v3236
        %v3281 = vunpack.c.l.b16 %v3237
        %v3282 = vunpack.c.h.b16 %v3237
        %v3283 = vunpack.c.l.b16 %v3238
        %v3284 = vunpack.c.h.b16 %v3238
        %v3285 = vunpack.c.l.b16 %v3239
        %v3286 = vunpack.c.h.b16 %v3239
        %v3287 = vunpack.c.l.b16 %v3240
        %v3288 = vunpack.c.h.b16 %v3240
        %v3289 = vpack.c.b16 %v3257, %v3257
        %v3290 = vpack.c.b16 %v3258, %v3258
        %v3291 = vpack.c.b16 %v3259, %v3259
        %v3292 = vpack.c.b16 %v3260, %v3260
        %v3293 = vpack.c.b16 %v3261, %v3261
        %v3294 = vpack.c.b16 %v3262, %v3262
        %v3295 = vpack.c.b16 %v3263, %v3263
        %v3296 = vpack.c.b16 %v3264, %v3264
        %v3297 = vpack.c.b16 %v3265, %v3265
        %v3298 = vpack.c.b16 %v3266, %v3266
        %v3299 = vpack.c.b16 %v3267, %v3267
        %v3300 = vpack.c.b16 %v3268, %v3268
        %v3301 = vpack.c.b16 %v3269, %v3269
        %v3302 = vpack.c.b16 %v3270, %v3270
        %v3303 = vpack.c.b16 %v3271, %v3271
        %v3304 = vpack.c.b16 %v3272, %v3272
        %v3305 = vpack.c.b16 %v3273, %v3273
        %v3306 = vpack.c.b16 %v3274, %v3274
        %v3307 = vpack.c.b16 %v3275, %v3275
        %v3308 = vpack.c.b16 %v3276, %v3276
        %v3309 = vpack.c.b16 %v3277, %v3277
        %v3310 = vpack.c.b16 %v3278, %v3278
        %v3311 = vpack.c.b16 %v3279, %v3279
        %v3312 = vpack.c.b16 %v3280, %v3280
        %v3313 = vpack.c.b16 %v3281, %v3281
        %v3314 = vpack.c.b16 %v3282, %v3282
        %v3315 = vpack.c.b16 %v3283, %v3283
        %v3316 = vpack.c.b16 %v3284, %v3284
        %v3317 = vpack.c.b16 %v3285, %v3285
        %v3318 = vpack.c.b16 %v3286, %v3286
        %v3319 = vpack.c.b16 %v3287, %v3287
        %v3320 = vpack.c.b16 %v3288, %v3288
        %3353 = vst [vmem:[%s190] sm:$0xf] %v3289
        %3354 = vst [vmem:[%s190 + $0x4] sm:$0xf] %v3290
        %3355 = vst [vmem:[%s190 + $0x8] sm:$0xf] %v3291
        %3356 = vst [vmem:[%s190 + $0xc] sm:$0xf] %v3292
        %3357 = vst [vmem:[%s190 + $0x10] sm:$0xf] %v3293
        %3358 = vst [vmem:[%s190 + $0x14] sm:$0xf] %v3294
        %3359 = vst [vmem:[%s190 + $0x18] sm:$0xf] %v3295
        %3360 = vst [vmem:[%s190 + $0x1c] sm:$0xf] %v3296
        %3361 = vst [vmem:[%s190 + $0x20] sm:$0xf] %v3297
        %3362 = vst [vmem:[%s190 + $0x24] sm:$0xf] %v3298
        %3363 = vst [vmem:[%s190 + $0x28] sm:$0xf] %v3299
        %3364 = vst [vmem:[%s190 + $0x2c] sm:$0xf] %v3300
        %3365 = vst [vmem:[%s190 + $0x30] sm:$0xf] %v3301
        %3366 = vst [vmem:[%s190 + $0x34] sm:$0xf] %v3302
        %3367 = vst [vmem:[%s190 + $0x38] sm:$0xf] %v3303
        %3368 = vst [vmem:[%s190 + $0x3c] sm:$0xf] %v3304
        %3369 = vst [vmem:[%s190 + $0x40] sm:$0xf] %v3305
        %3370 = vst [vmem:[%s190 + $0x44] sm:$0xf] %v3306
        %3371 = vst [vmem:[%s190 + $0x48] sm:$0xf] %v3307
        %3372 = vst [vmem:[%s190 + $0x4c] sm:$0xf] %v3308
        %3373 = vst [vmem:[%s190 + $0x50] sm:$0xf] %v3309
        %3374 = vst [vmem:[%s190 + $0x54] sm:$0xf] %v3310
        %3375 = vst [vmem:[%s190 + $0x58] sm:$0xf] %v3311
        %3376 = vst [vmem:[%s190 + $0x5c] sm:$0xf] %v3312
        %3377 = vst [vmem:[%s190 + $0x60] sm:$0xf] %v3313
        %3378 = vst [vmem:[%s190 + $0x64] sm:$0xf] %v3314
        %3379 = vst [vmem:[%s190 + $0x68] sm:$0xf] %v3315
        %3380 = vst [vmem:[%s190 + $0x6c] sm:$0xf] %v3316
        %3381 = vst [vmem:[%s190 + $0x70] sm:$0xf] %v3317
        %3382 = vst [vmem:[%s190 + $0x74] sm:$0xf] %v3318
        %3383 = vst [vmem:[%s190 + $0x78] sm:$0xf] %v3319
        %3384 = vst [vmem:[%s190 + $0x7c] sm:$0xf] %v3320
        %s3385 = sand.u32 %s115, 1
        %s3386 = scalar_lea.sflag [#allocation5], %s3385
        %s3387 = sand.u32 %s115, 1
        %s3388 = smul.addr %s3387, 128
        %s3389 = scalar_lea.vmem [#allocation4], %s3388
        // Predicated region
        $region37: #{bottleneck_noresidual_forward.1} parent=35 // pred_check
          %p3390 = pneg %p125
        $region38: #{bottleneck_noresidual_forward.1} parent=35 // pred_check_branch
          %3392 = sbr.rel (%p3390) target = $region40
        $region39: #{bottleneck_noresidual_forward.1} parent=35 // pred_region
          %s3394 = ssub.s32 2048, 2048
          %3395 = vsyncadd %s3386, %s3394
          %s3396 = smul.addr %s18, 32
          %s3397 = smul.addr %s3396, 64
          %s3398 = scalar_lea.hbm %s4, %s3397
          %s3399 = sshll.u32 %s3389, 4
          %s3400 = int_to_ptr.vmem [resolvable:$true] %s3399
          %3405 = dma.vmem_to_hbm [thread:$0]  %s3400, 2048, %s3398, %s3386, 64, 64, 4
        $region40: #{bottleneck_noresidual_forward.1} parent=35 // pred_fallthru
          _
      $region36: #{bottleneck_noresidual_forward.1} parent=5 // pred_fallthru
        _
      %p3406 = scmp.le.s32.totalorder 2, %s13
      // Predicated region
      $region41: #{bottleneck_noresidual_forward.1} parent=5 // pred_check
        %p3407 = pneg %p3406
      $region42: #{bottleneck_noresidual_forward.1} parent=5 // pred_check_branch
        %3409 = sbr.rel (%p3407) target = $region44
      $region43: #{bottleneck_noresidual_forward.1} parent=5 // pred_region
        %s3410 = ssub.s32 %s13, 2
        // Predicated region
        $region45: #{bottleneck_noresidual_forward.1} parent=43 // pred_check
          %p3411 = pneg %p131
        $region46: #{bottleneck_noresidual_forward.1} parent=43 // pred_check_branch
          %3413 = sbr.rel (%p3411) target = $region48
        $region47: #{bottleneck_noresidual_forward.1} parent=43 // pred_region
          %s3414 = sand.u32 %s116, 1
          %s3415 = scalar_lea.sflag [#allocation5], %s3414
          %s3416 = sand.u32 %s116, 1
          %s3417 = smul.addr %s3416, 128
          %s3418 = scalar_lea.vmem [#allocation4], %s3417
          %3419 = dma.done %s3415, 2048
        $region48: #{bottleneck_noresidual_forward.1} parent=43 // pred_fallthru
          _
      $region44: #{bottleneck_noresidual_forward.1} parent=5 // pred_fallthru
        _
    $region6: #{bottleneck_noresidual_forward.1} parent=1 // loop_footer
      %s17 = sadd.s32 1, %s13
    $region7: #{bottleneck_noresidual_forward.1} parent=1 // loop_footer_branch
      %12 = sbr.rel target = $region3
    $region8: #{bottleneck_noresidual_forward.1} parent=1 // loop_exit
      _
    %3420 = vsyncpa [#allocation5], 1
    %s3421 = scalar_lea.sflag [#allocation5], 1
    %3422 = vsyncpa %s3421, 1

</llo_original>
